<compile_context>
chip_gen: v6e
topology: v6e:2x2x1
jax: 0.10.0
libtpu: 0.0.40
codegen_flags: <defaults>
</compile_context>

<pallas_src>
import functools
import math

import jax
import jax.numpy as jnp
import numpy as np
from jax.experimental import pallas as pl
from jax.experimental.pallas import tpu as pltpu


def _round_up(n: int, m: int) -> int:
    return ((n + m - 1) // m) * m


def block_kernel(x_ref,
                 g1_ref, b1_ref,
                 wq_ref, bq_ref, wk_ref, bk_ref, wv_ref, bv_ref,
                 wo_ref, bo_ref,
                 g2_ref, b2_ref,
                 w1_ref, bm1_ref, w2_ref, bm2_ref,
                 o_ref,
                 *, num_heads, head_dim, true_embed, seq_len):
    S, H, hd, E = seq_len, num_heads, head_dim, true_embed
    f32, bf16 = jnp.float32, jnp.bfloat16

    x = x_ref[0]                         # (S, Ep); pad lanes are zero
    Ep = x.shape[-1]

    # LayerNorm over the *true* E features only (pad lanes masked out and
    # zeroed; gamma/beta pads are zero so pad lanes stay exactly 0 downstream).
    if E == Ep:
        mask = None
    else:
        mask = (jax.lax.broadcasted_iota(jnp.int32, (1, Ep), 1) < E).astype(f32)
    inv_e = 1.0 / E

    def layernorm(t, g, b, eps=1e-5):
        tm = t if mask is None else t * mask
        mu = jnp.sum(tm, axis=-1, keepdims=True) * inv_e
        d = t - mu
        if mask is not None:
            d = d * mask
        var = jnp.sum(d * d, axis=-1, keepdims=True) * inv_e
        return d * jax.lax.rsqrt(var + eps) * g + b

    # ---- LayerNorm 1 ----
    xn = layernorm(x, g1_ref[...], b1_ref[...])
    xn_b = xn.astype(bf16)

    # ---- Q/K/V projections: three full-width dots (no fused-qkv lane slices).
    # 1/sqrt(hd) is pre-folded into wq/bq in the wrapper.
    q = jnp.dot(xn_b, wq_ref[...], preferred_element_type=f32) + bq_ref[...]
    k = jnp.dot(xn_b, wk_ref[...], preferred_element_type=f32) + bk_ref[...]
    v = jnp.dot(xn_b, wv_ref[...], preferred_element_type=f32) + bv_ref[...]

    # ---- Per-head attention: statically unrolled loop of 2-D matmuls.
    # No (H*S)^2 score matrix, no cross-head mask.  The output projection is
    # applied per head (static leading-dim index into wo_ref) and accumulated,
    # which avoids a lane concatenate of the head outputs.
    attn_out = jnp.zeros((S, Ep), f32)
    for h in range(H):
        lo = h * hd
        qh = q[:, lo:lo + hd].astype(bf16)                        # (S, hd)
        kh = k[:, lo:lo + hd].astype(bf16)
        vh = v[:, lo:lo + hd].astype(bf16)

        s = jax.lax.dot_general(qh, kh, (((1,), (1,)), ((), ())),
                                preferred_element_type=f32)       # (S, S)
        s = s - jnp.max(s, axis=-1, keepdims=True)
        p = jnp.exp(s)
        denom = jnp.sum(p, axis=-1, keepdims=True)                # (S, 1)
        pv = jnp.dot(p.astype(bf16), vh, preferred_element_type=f32)   # (S, hd)
        # Delayed softmax normalisation on the small (S, hd) result.
        pv = pv * pl.reciprocal(denom, approx=True)
        attn_out += jnp.dot(pv.astype(bf16), wo_ref[h],
                            preferred_element_type=f32)           # (S, Ep)
    attn_out = attn_out + bo_ref[...]

    x = x + attn_out                      # residual 1

    # ---- LayerNorm 2 + MLP (exact erf GELU, matching torch.nn.GELU default) ----
    xn2 = layernorm(x, g2_ref[...], b2_ref[...])
    h1 = jnp.dot(xn2.astype(bf16), w1_ref[...], preferred_element_type=f32) + bm1_ref[...]
    h1 = 0.5 * h1 * (1.0 + jax.lax.erf(h1 * (1.0 / math.sqrt(2.0))))
    h2 = jnp.dot(h1.astype(bf16), w2_ref[...], preferred_element_type=f32) + bm2_ref[...]

    o_ref[0] = (x + h2).astype(o_ref.dtype)   # residual 2; (S, Ep) lane-dense store


def transformer_block(x, params, num_heads):
    B, S, E = x.shape
    hidden = params["w1"].shape[1]
    hd = E // num_heads
    Ep = _round_up(E, 128)
    Hp = _round_up(hidden, 128)

    f32, bf16 = jnp.float32, jnp.bfloat16
    scale = 1.0 / math.sqrt(hd)

    def pad2(a, rows, cols):
        return jnp.pad(a, ((0, rows - a.shape[0]), (0, cols - a.shape[1])))

    def pad_row(a, cols):
        return jnp.pad(a, (0, cols - a.shape[0])).reshape(1, cols)

    # Weights pre-transposed to (in, out); matmul operands cast to bf16 (f32
    # accumulation in-kernel), small elementwise params stay f32.
    wq = pad2(params["wq"] * scale, Ep, E).astype(bf16)
    wk = pad2(params["wk"], Ep, E).astype(bf16)
    wv = pad2(params["wv"], Ep, E).astype(bf16)
    bq = (params["bq"] * scale).reshape(1, E).astype(f32)
    bk = params["bk"].reshape(1, E).astype(f32)
    bv = params["bv"].reshape(1, E).astype(f32)

    wo3 = params["wo"].reshape(num_heads, hd, E)                  # rows ordered (h, d)
    wo3 = jnp.pad(wo3, ((0, 0), (0, 0), (0, Ep - E))).astype(bf16)
    bo = pad_row(params["bo"], Ep).astype(f32)

    g1 = pad_row(params["g1"], Ep).astype(f32)    # gamma/beta pads are ZERO so
    b1 = pad_row(params["b1"], Ep).astype(f32)    # LN output pad lanes stay 0
    g2 = pad_row(params["g2"], Ep).astype(f32)
    b2 = pad_row(params["b2"], Ep).astype(f32)

    w1 = pad2(params["w1"], Ep, Hp).astype(bf16)
    bm1 = pad_row(params["bm1"], Hp).astype(f32)
    w2 = pad2(params["w2"], Hp, Ep).astype(bf16)
    bm2 = pad_row(params["bm2"], Ep).astype(f32)

    x_p = jnp.pad(x, ((0, 0), (0, 0), (0, Ep - E)))

    param_vals = [g1, b1, wq, bq, wk, bk, wv, bv, wo3, bo,
                  g2, b2, w1, bm1, w2, bm2]

    flops = B * (
        3 * 2 * S * Ep * E                               # q/k/v projections
        + num_heads * (2 * S * S * hd                    # scores
                       + 2 * S * S * hd                  # PV
                       + 2 * S * hd * Ep)                # per-head out projection
        + 2 * S * Ep * Hp + 2 * S * Hp * Ep)             # MLP
    transcendentals = B * (num_heads * S * S + S * Hp)   # exp + erf
    bytes_accessed = int(2 * B * S * Ep * 4
                         + sum(int(a.size) * a.dtype.itemsize for a in param_vals))

    def make_weight_spec(a, single_buffer):
        nd = a.ndim
        index_map = lambda b, _n=nd: (0,) * _n
        if single_buffer:
            # Constant-index weights are fetched once; don't double-buffer them
            # (halves weight VMEM residency — matters under v7x's 64 MiB/TC).
            return pl.BlockSpec(a.shape, index_map,
                                pipeline_mode=pl.Buffered(buffer_count=1))
        return pl.BlockSpec(a.shape, index_map)

    def build_call(single_buffer_weights):
        in_specs = [pl.BlockSpec((1, S, Ep), lambda b: (b, 0, 0))]
        in_specs += [make_weight_spec(a, single_buffer_weights) for a in param_vals]
        return pl.pallas_call(
            functools.partial(block_kernel, num_heads=num_heads, head_dim=hd,
                              true_embed=E, seq_len=S),
            out_shape=jax.ShapeDtypeStruct((B, S, Ep), x.dtype),
            grid_spec=pltpu.PrefetchScalarGridSpec(
                num_scalar_prefetch=0,
                grid=(B,),                       # one token slab per grid step
                in_specs=in_specs,
                out_specs=pl.BlockSpec((1, S, Ep), lambda b: (b, 0, 0)),
            ),
            compiler_params=pltpu.CompilerParams(
                dimension_semantics=("parallel",),
                vmem_limit_bytes=32 * 1024 * 1024,
            ),
            cost_estimate=pl.CostEstimate(
                flops=flops, transcendentals=transcendentals,
                bytes_accessed=bytes_accessed),
        )

    try:
        out_p = build_call(True)(x_p, *param_vals)
    except Exception:
        # pipeline_mode=pl.Buffered(1) not supported by this jax build;
        # fall back to default (double-buffered) weight blocks.
        out_p = build_call(False)(x_p, *param_vals)

    return out_p[..., :E]


def reference_block(x, p, num_heads):
    """Pure-JAX f32 reference mirroring the PyTorch module."""
    B, S, E = x.shape
    hd = E // num_heads

    def ln(t, g, b):
        mu = t.mean(-1, keepdims=True)
        var = ((t - mu) ** 2).mean(-1, keepdims=True)
        return (t - mu) / jnp.sqrt(var + 1e-5) * g + b

    xn = ln(x, p["g1"], p["b1"])
    q = xn @ p["wq"] + p["bq"]
    k = xn @ p["wk"] + p["bk"]
    v = xn @ p["wv"] + p["bv"]
    q = q.reshape(B, S, num_heads, hd).transpose(0, 2, 1, 3)
    k = k.reshape(B, S, num_heads, hd).transpose(0, 2, 1, 3)
    v = v.reshape(B, S, num_heads, hd).transpose(0, 2, 1, 3)
    s = jnp.einsum("bhqd,bhkd->bhqk", q, k) / math.sqrt(hd)
    a = jax.nn.softmax(s, axis=-1)
    o = jnp.einsum("bhqk,bhkd->bhqd", a, v).transpose(0, 2, 1, 3).reshape(B, S, E)
    o = o @ p["wo"] + p["bo"]
    x = x + o
    xn2 = ln(x, p["g2"], p["b2"])
    h = xn2 @ p["w1"] + p["bm1"]
    h = 0.5 * h * (1.0 + jax.lax.erf(h / math.sqrt(2.0)))
    h = h @ p["w2"] + p["bm2"]
    return x + h


def init_params(key, embed_dim, num_heads, mlp_ratio=4):
    hidden = int(embed_dim * mlp_ratio)
    E = embed_dim
    ks = jax.random.split(key, 16)
    f32 = jnp.float32

    def w(k, shape, s=0.02):
        return s * jax.random.normal(k, shape, f32)

    return {
        "g1": 1.0 + w(ks[0], (E,)),   "b1": w(ks[1], (E,)),
        "wq": w(ks[2], (E, E)),       "bq": w(ks[3], (E,)),
        "wk": w(ks[4], (E, E)),       "bk": w(ks[5], (E,)),
        "wv": w(ks[6], (E, E)),       "bv": w(ks[7], (E,)),
        "wo": w(ks[8], (E, E)),       "bo": w(ks[9], (E,)),
        "g2": 1.0 + w(ks[10], (E,)),  "b2": w(ks[11], (E,)),
        "w1": w(ks[12], (E, hidden)), "bm1": w(ks[13], (hidden,)),
        "w2": w(ks[14], (hidden, E)), "bm2": w(ks[15], (E,)),
    }


if __name__ == "__main__":
    B, S, E, H = 2, 8, 32, 4          # batch, seq, embed_dim, heads (mlp hidden=128)
    key = jax.random.PRNGKey(0)
    kx, kp = jax.random.split(key)
    x = jax.random.normal(kx, (B, S, E), jnp.float32)
    params = init_params(kp, E, H, mlp_ratio=4)

    out = transformer_block(x, params, num_heads=H)
    out = jax.block_until_ready(out)

    ref = reference_block(x, params, num_heads=H)
    # Tolerance covers bf16 matmul operands (f32 accumulation) and the
    # approx softmax reciprocal; matmul-only bf16 keeps this well inside 2e-2.
    np.testing.assert_allclose(np.asarray(out), np.asarray(ref), rtol=2e-2, atol=2e-2)

    print("KERNEL_OK")
</pallas_src>

<mosaic_0001>
module attributes {stable_mosaic.version = 11 : i64} {
  func.func @block_kernel(%arg0: i32, %arg1: memref<1x8x128xf32, #tpu.memory_space<vmem>>, %arg2: memref<1x128xf32, #tpu.memory_space<vmem>>, %arg3: memref<1x128xf32, #tpu.memory_space<vmem>>, %arg4: memref<128x32xbf16, #tpu.memory_space<vmem>>, %arg5: memref<1x32xf32, #tpu.memory_space<vmem>>, %arg6: memref<128x32xbf16, #tpu.memory_space<vmem>>, %arg7: memref<1x32xf32, #tpu.memory_space<vmem>>, %arg8: memref<128x32xbf16, #tpu.memory_space<vmem>>, %arg9: memref<1x32xf32, #tpu.memory_space<vmem>>, %arg10: memref<4x8x128xbf16, #tpu.memory_space<vmem>>, %arg11: memref<1x128xf32, #tpu.memory_space<vmem>>, %arg12: memref<1x128xf32, #tpu.memory_space<vmem>>, %arg13: memref<1x128xf32, #tpu.memory_space<vmem>>, %arg14: memref<128x128xbf16, #tpu.memory_space<vmem>>, %arg15: memref<1x128xf32, #tpu.memory_space<vmem>>, %arg16: memref<128x128xbf16, #tpu.memory_space<vmem>>, %arg17: memref<1x128xf32, #tpu.memory_space<vmem>>, %arg18: memref<1x8x128xf32, #tpu.memory_space<vmem>>) attributes {dimension_semantics = [#tpu.dimension_semantics<parallel>], iteration_bounds = array<i64: 2>, scalar_prefetch = 0 : i64, scratch_operands = 0 : i64, tpu.core_type = #tpu.core_type<tc>, window_params = [{transform_indices = @transform_0, window_bounds = array<i64: 1, 8, 128>}, {pipeline_mode = #tpu.pipeline_mode<synchronous>, transform_indices = @transform_1, window_bounds = array<i64: 1, 128>}, {pipeline_mode = #tpu.pipeline_mode<synchronous>, transform_indices = @transform_2, window_bounds = array<i64: 1, 128>}, {pipeline_mode = #tpu.pipeline_mode<synchronous>, transform_indices = @transform_3, window_bounds = array<i64: 128, 32>}, {pipeline_mode = #tpu.pipeline_mode<synchronous>, transform_indices = @transform_4, window_bounds = array<i64: 1, 32>}, {pipeline_mode = #tpu.pipeline_mode<synchronous>, transform_indices = @transform_5, window_bounds = array<i64: 128, 32>}, {pipeline_mode = #tpu.pipeline_mode<synchronous>, transform_indices = @transform_6, window_bounds = array<i64: 1, 32>}, {pipeline_mode = #tpu.pipeline_mode<synchronous>, transform_indices = @transform_7, window_bounds = array<i64: 128, 32>}, {pipeline_mode = #tpu.pipeline_mode<synchronous>, transform_indices = @transform_8, window_bounds = array<i64: 1, 32>}, {pipeline_mode = #tpu.pipeline_mode<synchronous>, transform_indices = @transform_9, window_bounds = array<i64: 4, 8, 128>}, {pipeline_mode = #tpu.pipeline_mode<synchronous>, transform_indices = @transform_10, window_bounds = array<i64: 1, 128>}, {pipeline_mode = #tpu.pipeline_mode<synchronous>, transform_indices = @transform_11, window_bounds = array<i64: 1, 128>}, {pipeline_mode = #tpu.pipeline_mode<synchronous>, transform_indices = @transform_12, window_bounds = array<i64: 1, 128>}, {pipeline_mode = #tpu.pipeline_mode<synchronous>, transform_indices = @transform_13, window_bounds = array<i64: 128, 128>}, {pipeline_mode = #tpu.pipeline_mode<synchronous>, transform_indices = @transform_14, window_bounds = array<i64: 1, 128>}, {pipeline_mode = #tpu.pipeline_mode<synchronous>, transform_indices = @transform_15, window_bounds = array<i64: 128, 128>}, {pipeline_mode = #tpu.pipeline_mode<synchronous>, transform_indices = @transform_16, window_bounds = array<i64: 1, 128>}, {transform_indices = @transform_17, window_bounds = array<i64: 1, 8, 128>}]} {
    %c0 = arith.constant 0 : index
    %c0_0 = arith.constant 0 : index
    %c0_1 = arith.constant 0 : index
    %0 = vector.load %arg1[%c0, %c0_0, %c0_1] : memref<1x8x128xf32, #tpu.memory_space<vmem>>, vector<1x8x128xf32>
    %1 = vector.shape_cast %0 : vector<1x8x128xf32> to vector<8x128xf32>
    %2 = tpu.iota {dimensions = array<i32: 1>} : vector<1x128xi32>
    %c32_i32 = arith.constant 32 : i32
    %3 = vector.broadcast %c32_i32 : i32 to vector<1x128xi32>
    %4 = arith.cmpi slt, %2, %3 : vector<1x128xi32>
    %5 = arith.extui %4 : vector<1x128xi1> to vector<1x128xi32>
    %6 = arith.sitofp %5 : vector<1x128xi32> to vector<1x128xf32>
    %c0_2 = arith.constant 0 : index
    %c0_3 = arith.constant 0 : index
    %7 = vector.load %arg2[%c0_2, %c0_3] : memref<1x128xf32, #tpu.memory_space<vmem>>, vector<1x128xf32>
    %c0_4 = arith.constant 0 : index
    %c0_5 = arith.constant 0 : index
    %8 = vector.load %arg3[%c0_4, %c0_5] : memref<1x128xf32, #tpu.memory_space<vmem>>, vector<1x128xf32>
    %9 = vector.broadcast %6 : vector<1x128xf32> to vector<8x128xf32>
    %10 = arith.mulf %1, %9 : vector<8x128xf32>
    %cst = arith.constant dense<0.000000e+00> : vector<8xf32>
    %11 = vector.multi_reduction <add>, %10, %cst [1] : vector<8x128xf32> to vector<8xf32>
    %12 = vector.shape_cast %11 : vector<8xf32> to vector<8x1xf32>
    %cst_6 = arith.constant 3.125000e-02 : f32
    %13 = vector.broadcast %cst_6 : f32 to vector<8x1xf32>
    %14 = arith.mulf %12, %13 : vector<8x1xf32>
    %15 = vector.broadcast %14 : vector<8x1xf32> to vector<8x128xf32>
    %16 = arith.subf %1, %15 : vector<8x128xf32>
    %17 = vector.broadcast %6 : vector<1x128xf32> to vector<8x128xf32>
    %18 = arith.mulf %16, %17 : vector<8x128xf32>
    %19 = arith.mulf %18, %18 : vector<8x128xf32>
    %cst_7 = arith.constant dense<0.000000e+00> : vector<8xf32>
    %20 = vector.multi_reduction <add>, %19, %cst_7 [1] : vector<8x128xf32> to vector<8xf32>
    %21 = vector.shape_cast %20 : vector<8xf32> to vector<8x1xf32>
    %cst_8 = arith.constant 3.125000e-02 : f32
    %22 = vector.broadcast %cst_8 : f32 to vector<8x1xf32>
    %23 = arith.mulf %21, %22 : vector<8x1xf32>
    %cst_9 = arith.constant 9.99999974E-6 : f32
    %24 = vector.broadcast %cst_9 : f32 to vector<8x1xf32>
    %25 = arith.addf %23, %24 : vector<8x1xf32>
    %26 = math.rsqrt %25 : vector<8x1xf32>
    %27 = vector.broadcast %26 : vector<8x1xf32> to vector<8x128xf32>
    %28 = arith.mulf %18, %27 : vector<8x128xf32>
    %29 = vector.broadcast %7 : vector<1x128xf32> to vector<8x128xf32>
    %30 = arith.mulf %28, %29 : vector<8x128xf32>
    %31 = vector.broadcast %8 : vector<1x128xf32> to vector<8x128xf32>
    %32 = arith.addf %30, %31 : vector<8x128xf32>
    %33 = arith.truncf %32 : vector<8x128xf32> to vector<8x128xbf16>
    %c0_10 = arith.constant 0 : index
    %c0_11 = arith.constant 0 : index
    %34 = vector.load %arg4[%c0_10, %c0_11] : memref<128x32xbf16, #tpu.memory_space<vmem>>, vector<128x32xbf16>
    %cst_12 = arith.constant dense<0.000000e+00> : vector<8x32xf32>
    %35 = tpu.matmul %33, %34, %cst_12 {dimension_numbers = #tpu.dot_dimension_numbers<[1], [0], [0], [1], [0, 0, 1, 1], [], []>} : vector<8x128xbf16>, vector<128x32xbf16>, vector<8x32xf32> -> vector<8x32xf32>
    %c0_13 = arith.constant 0 : index
    %c0_14 = arith.constant 0 : index
    %36 = vector.load %arg5[%c0_13, %c0_14] : memref<1x32xf32, #tpu.memory_space<vmem>>, vector<1x32xf32>
    %37 = vector.broadcast %36 : vector<1x32xf32> to vector<8x32xf32>
    %38 = arith.addf %35, %37 : vector<8x32xf32>
    %c0_15 = arith.constant 0 : index
    %c0_16 = arith.constant 0 : index
    %39 = vector.load %arg6[%c0_15, %c0_16] : memref<128x32xbf16, #tpu.memory_space<vmem>>, vector<128x32xbf16>
    %cst_17 = arith.constant dense<0.000000e+00> : vector<8x32xf32>
    %40 = tpu.matmul %33, %39, %cst_17 {dimension_numbers = #tpu.dot_dimension_numbers<[1], [0], [0], [1], [0, 0, 1, 1], [], []>} : vector<8x128xbf16>, vector<128x32xbf16>, vector<8x32xf32> -> vector<8x32xf32>
    %c0_18 = arith.constant 0 : index
    %c0_19 = arith.constant 0 : index
    %41 = vector.load %arg7[%c0_18, %c0_19] : memref<1x32xf32, #tpu.memory_space<vmem>>, vector<1x32xf32>
    %42 = vector.broadcast %41 : vector<1x32xf32> to vector<8x32xf32>
    %43 = arith.addf %40, %42 : vector<8x32xf32>
    %c0_20 = arith.constant 0 : index
    %c0_21 = arith.constant 0 : index
    %44 = vector.load %arg8[%c0_20, %c0_21] : memref<128x32xbf16, #tpu.memory_space<vmem>>, vector<128x32xbf16>
    %cst_22 = arith.constant dense<0.000000e+00> : vector<8x32xf32>
    %45 = tpu.matmul %33, %44, %cst_22 {dimension_numbers = #tpu.dot_dimension_numbers<[1], [0], [0], [1], [0, 0, 1, 1], [], []>} : vector<8x128xbf16>, vector<128x32xbf16>, vector<8x32xf32> -> vector<8x32xf32>
    %c0_23 = arith.constant 0 : index
    %c0_24 = arith.constant 0 : index
    %46 = vector.load %arg9[%c0_23, %c0_24] : memref<1x32xf32, #tpu.memory_space<vmem>>, vector<1x32xf32>
    %47 = vector.broadcast %46 : vector<1x32xf32> to vector<8x32xf32>
    %48 = arith.addf %45, %47 : vector<8x32xf32>
    %cst_25 = arith.constant 0.000000e+00 : f32
    %49 = vector.broadcast %cst_25 : f32 to vector<8x128xf32>
    %50 = vector.extract_strided_slice %38 {offsets = [0, 0], sizes = [8, 8], strides = [1, 1]} : vector<8x32xf32> to vector<8x8xf32>
    %51 = arith.truncf %50 : vector<8x8xf32> to vector<8x8xbf16>
    %52 = vector.extract_strided_slice %43 {offsets = [0, 0], sizes = [8, 8], strides = [1, 1]} : vector<8x32xf32> to vector<8x8xf32>
    %53 = arith.truncf %52 : vector<8x8xf32> to vector<8x8xbf16>
    %54 = vector.extract_strided_slice %48 {offsets = [0, 0], sizes = [8, 8], strides = [1, 1]} : vector<8x32xf32> to vector<8x8xf32>
    %55 = arith.truncf %54 : vector<8x8xf32> to vector<8x8xbf16>
    %cst_26 = arith.constant dense<0.000000e+00> : vector<8x8xf32>
    %56 = tpu.matmul %51, %53, %cst_26 {dimension_numbers = #tpu.dot_dimension_numbers<[1], [1], [0], [0], [0, 0, 1, 0], [], []>} : vector<8x8xbf16>, vector<8x8xbf16>, vector<8x8xf32> -> vector<8x8xf32>
    %cst_27 = arith.constant dense<0xFF800000> : vector<8xf32>
    %57 = vector.multi_reduction <maximumf>, %56, %cst_27 [1] : vector<8x8xf32> to vector<8xf32>
    %58 = vector.shape_cast %57 : vector<8xf32> to vector<8x1xf32>
    %59 = vector.broadcast %58 : vector<8x1xf32> to vector<8x8xf32>
    %60 = arith.subf %56, %59 : vector<8x8xf32>
    %61 = math.exp %60 : vector<8x8xf32>
    %cst_28 = arith.constant dense<0.000000e+00> : vector<8xf32>
    %62 = vector.multi_reduction <add>, %61, %cst_28 [1] : vector<8x8xf32> to vector<8xf32>
    %63 = vector.shape_cast %62 : vector<8xf32> to vector<8x1xf32>
    %64 = arith.truncf %61 : vector<8x8xf32> to vector<8x8xbf16>
    %cst_29 = arith.constant dense<0.000000e+00> : vector<8x8xf32>
    %65 = tpu.matmul %64, %55, %cst_29 {dimension_numbers = #tpu.dot_dimension_numbers<[1], [0], [0], [1], [0, 0, 1, 1], [], []>} : vector<8x8xbf16>, vector<8x8xbf16>, vector<8x8xf32> -> vector<8x8xf32>
    %66 = tpu.reciprocal %63 {approx = true} : vector<8x1xf32> -> vector<8x1xf32>
    %67 = vector.broadcast %66 : vector<8x1xf32> to vector<8x8xf32>
    %68 = arith.mulf %65, %67 : vector<8x8xf32>
    %69 = arith.truncf %68 : vector<8x8xf32> to vector<8x8xbf16>
    %c0_30 = arith.constant 0 : index
    %c0_31 = arith.constant 0 : index
    %c0_32 = arith.constant 0 : index
    %70 = vector.load %arg10[%c0_30, %c0_31, %c0_32] : memref<4x8x128xbf16, #tpu.memory_space<vmem>>, vector<1x8x128xbf16>
    %71 = vector.shape_cast %70 : vector<1x8x128xbf16> to vector<8x128xbf16>
    %cst_33 = arith.constant dense<0.000000e+00> : vector<8x128xf32>
    %72 = tpu.matmul %69, %71, %cst_33 {dimension_numbers = #tpu.dot_dimension_numbers<[1], [0], [0], [1], [0, 0, 1, 1], [], []>} : vector<8x8xbf16>, vector<8x128xbf16>, vector<8x128xf32> -> vector<8x128xf32>
    %73 = arith.addf %49, %72 : vector<8x128xf32>
    %74 = vector.extract_strided_slice %38 {offsets = [0, 8], sizes = [8, 8], strides = [1, 1]} : vector<8x32xf32> to vector<8x8xf32>
    %75 = arith.truncf %74 : vector<8x8xf32> to vector<8x8xbf16>
    %76 = vector.extract_strided_slice %43 {offsets = [0, 8], sizes = [8, 8], strides = [1, 1]} : vector<8x32xf32> to vector<8x8xf32>
    %77 = arith.truncf %76 : vector<8x8xf32> to vector<8x8xbf16>
    %78 = vector.extract_strided_slice %48 {offsets = [0, 8], sizes = [8, 8], strides = [1, 1]} : vector<8x32xf32> to vector<8x8xf32>
    %79 = arith.truncf %78 : vector<8x8xf32> to vector<8x8xbf16>
    %cst_34 = arith.constant dense<0.000000e+00> : vector<8x8xf32>
    %80 = tpu.matmul %75, %77, %cst_34 {dimension_numbers = #tpu.dot_dimension_numbers<[1], [1], [0], [0], [0, 0, 1, 0], [], []>} : vector<8x8xbf16>, vector<8x8xbf16>, vector<8x8xf32> -> vector<8x8xf32>
    %cst_35 = arith.constant dense<0xFF800000> : vector<8xf32>
    %81 = vector.multi_reduction <maximumf>, %80, %cst_35 [1] : vector<8x8xf32> to vector<8xf32>
    %82 = vector.shape_cast %81 : vector<8xf32> to vector<8x1xf32>
    %83 = vector.broadcast %82 : vector<8x1xf32> to vector<8x8xf32>
    %84 = arith.subf %80, %83 : vector<8x8xf32>
    %85 = math.exp %84 : vector<8x8xf32>
    %cst_36 = arith.constant dense<0.000000e+00> : vector<8xf32>
    %86 = vector.multi_reduction <add>, %85, %cst_36 [1] : vector<8x8xf32> to vector<8xf32>
    %87 = vector.shape_cast %86 : vector<8xf32> to vector<8x1xf32>
    %88 = arith.truncf %85 : vector<8x8xf32> to vector<8x8xbf16>
    %cst_37 = arith.constant dense<0.000000e+00> : vector<8x8xf32>
    %89 = tpu.matmul %88, %79, %cst_37 {dimension_numbers = #tpu.dot_dimension_numbers<[1], [0], [0], [1], [0, 0, 1, 1], [], []>} : vector<8x8xbf16>, vector<8x8xbf16>, vector<8x8xf32> -> vector<8x8xf32>
    %90 = tpu.reciprocal %87 {approx = true} : vector<8x1xf32> -> vector<8x1xf32>
    %91 = vector.broadcast %90 : vector<8x1xf32> to vector<8x8xf32>
    %92 = arith.mulf %89, %91 : vector<8x8xf32>
    %93 = arith.truncf %92 : vector<8x8xf32> to vector<8x8xbf16>
    %c1 = arith.constant 1 : index
    %c0_38 = arith.constant 0 : index
    %c0_39 = arith.constant 0 : index
    %94 = vector.load %arg10[%c1, %c0_38, %c0_39] : memref<4x8x128xbf16, #tpu.memory_space<vmem>>, vector<1x8x128xbf16>
    %95 = vector.shape_cast %94 : vector<1x8x128xbf16> to vector<8x128xbf16>
    %cst_40 = arith.constant dense<0.000000e+00> : vector<8x128xf32>
    %96 = tpu.matmul %93, %95, %cst_40 {dimension_numbers = #tpu.dot_dimension_numbers<[1], [0], [0], [1], [0, 0, 1, 1], [], []>} : vector<8x8xbf16>, vector<8x128xbf16>, vector<8x128xf32> -> vector<8x128xf32>
    %97 = arith.addf %73, %96 : vector<8x128xf32>
    %98 = vector.extract_strided_slice %38 {offsets = [0, 16], sizes = [8, 8], strides = [1, 1]} : vector<8x32xf32> to vector<8x8xf32>
    %99 = arith.truncf %98 : vector<8x8xf32> to vector<8x8xbf16>
    %100 = vector.extract_strided_slice %43 {offsets = [0, 16], sizes = [8, 8], strides = [1, 1]} : vector<8x32xf32> to vector<8x8xf32>
    %101 = arith.truncf %100 : vector<8x8xf32> to vector<8x8xbf16>
    %102 = vector.extract_strided_slice %48 {offsets = [0, 16], sizes = [8, 8], strides = [1, 1]} : vector<8x32xf32> to vector<8x8xf32>
    %103 = arith.truncf %102 : vector<8x8xf32> to vector<8x8xbf16>
    %cst_41 = arith.constant dense<0.000000e+00> : vector<8x8xf32>
    %104 = tpu.matmul %99, %101, %cst_41 {dimension_numbers = #tpu.dot_dimension_numbers<[1], [1], [0], [0], [0, 0, 1, 0], [], []>} : vector<8x8xbf16>, vector<8x8xbf16>, vector<8x8xf32> -> vector<8x8xf32>
    %cst_42 = arith.constant dense<0xFF800000> : vector<8xf32>
    %105 = vector.multi_reduction <maximumf>, %104, %cst_42 [1] : vector<8x8xf32> to vector<8xf32>
    %106 = vector.shape_cast %105 : vector<8xf32> to vector<8x1xf32>
    %107 = vector.broadcast %106 : vector<8x1xf32> to vector<8x8xf32>
    %108 = arith.subf %104, %107 : vector<8x8xf32>
    %109 = math.exp %108 : vector<8x8xf32>
    %cst_43 = arith.constant dense<0.000000e+00> : vector<8xf32>
    %110 = vector.multi_reduction <add>, %109, %cst_43 [1] : vector<8x8xf32> to vector<8xf32>
    %111 = vector.shape_cast %110 : vector<8xf32> to vector<8x1xf32>
    %112 = arith.truncf %109 : vector<8x8xf32> to vector<8x8xbf16>
    %cst_44 = arith.constant dense<0.000000e+00> : vector<8x8xf32>
    %113 = tpu.matmul %112, %103, %cst_44 {dimension_numbers = #tpu.dot_dimension_numbers<[1], [0], [0], [1], [0, 0, 1, 1], [], []>} : vector<8x8xbf16>, vector<8x8xbf16>, vector<8x8xf32> -> vector<8x8xf32>
    %114 = tpu.reciprocal %111 {approx = true} : vector<8x1xf32> -> vector<8x1xf32>
    %115 = vector.broadcast %114 : vector<8x1xf32> to vector<8x8xf32>
    %116 = arith.mulf %113, %115 : vector<8x8xf32>
    %117 = arith.truncf %116 : vector<8x8xf32> to vector<8x8xbf16>
    %c2 = arith.constant 2 : index
    %c0_45 = arith.constant 0 : index
    %c0_46 = arith.constant 0 : index
    %118 = vector.load %arg10[%c2, %c0_45, %c0_46] : memref<4x8x128xbf16, #tpu.memory_space<vmem>>, vector<1x8x128xbf16>
    %119 = vector.shape_cast %118 : vector<1x8x128xbf16> to vector<8x128xbf16>
    %cst_47 = arith.constant dense<0.000000e+00> : vector<8x128xf32>
    %120 = tpu.matmul %117, %119, %cst_47 {dimension_numbers = #tpu.dot_dimension_numbers<[1], [0], [0], [1], [0, 0, 1, 1], [], []>} : vector<8x8xbf16>, vector<8x128xbf16>, vector<8x128xf32> -> vector<8x128xf32>
    %121 = arith.addf %97, %120 : vector<8x128xf32>
    %122 = vector.extract_strided_slice %38 {offsets = [0, 24], sizes = [8, 8], strides = [1, 1]} : vector<8x32xf32> to vector<8x8xf32>
    %123 = arith.truncf %122 : vector<8x8xf32> to vector<8x8xbf16>
    %124 = vector.extract_strided_slice %43 {offsets = [0, 24], sizes = [8, 8], strides = [1, 1]} : vector<8x32xf32> to vector<8x8xf32>
    %125 = arith.truncf %124 : vector<8x8xf32> to vector<8x8xbf16>
    %126 = vector.extract_strided_slice %48 {offsets = [0, 24], sizes = [8, 8], strides = [1, 1]} : vector<8x32xf32> to vector<8x8xf32>
    %127 = arith.truncf %126 : vector<8x8xf32> to vector<8x8xbf16>
    %cst_48 = arith.constant dense<0.000000e+00> : vector<8x8xf32>
    %128 = tpu.matmul %123, %125, %cst_48 {dimension_numbers = #tpu.dot_dimension_numbers<[1], [1], [0], [0], [0, 0, 1, 0], [], []>} : vector<8x8xbf16>, vector<8x8xbf16>, vector<8x8xf32> -> vector<8x8xf32>
    %cst_49 = arith.constant dense<0xFF800000> : vector<8xf32>
    %129 = vector.multi_reduction <maximumf>, %128, %cst_49 [1] : vector<8x8xf32> to vector<8xf32>
    %130 = vector.shape_cast %129 : vector<8xf32> to vector<8x1xf32>
    %131 = vector.broadcast %130 : vector<8x1xf32> to vector<8x8xf32>
    %132 = arith.subf %128, %131 : vector<8x8xf32>
    %133 = math.exp %132 : vector<8x8xf32>
    %cst_50 = arith.constant dense<0.000000e+00> : vector<8xf32>
    %134 = vector.multi_reduction <add>, %133, %cst_50 [1] : vector<8x8xf32> to vector<8xf32>
    %135 = vector.shape_cast %134 : vector<8xf32> to vector<8x1xf32>
    %136 = arith.truncf %133 : vector<8x8xf32> to vector<8x8xbf16>
    %cst_51 = arith.constant dense<0.000000e+00> : vector<8x8xf32>
    %137 = tpu.matmul %136, %127, %cst_51 {dimension_numbers = #tpu.dot_dimension_numbers<[1], [0], [0], [1], [0, 0, 1, 1], [], []>} : vector<8x8xbf16>, vector<8x8xbf16>, vector<8x8xf32> -> vector<8x8xf32>
    %138 = tpu.reciprocal %135 {approx = true} : vector<8x1xf32> -> vector<8x1xf32>
    %139 = vector.broadcast %138 : vector<8x1xf32> to vector<8x8xf32>
    %140 = arith.mulf %137, %139 : vector<8x8xf32>
    %141 = arith.truncf %140 : vector<8x8xf32> to vector<8x8xbf16>
    %c3 = arith.constant 3 : index
    %c0_52 = arith.constant 0 : index
    %c0_53 = arith.constant 0 : index
    %142 = vector.load %arg10[%c3, %c0_52, %c0_53] : memref<4x8x128xbf16, #tpu.memory_space<vmem>>, vector<1x8x128xbf16>
    %143 = vector.shape_cast %142 : vector<1x8x128xbf16> to vector<8x128xbf16>
    %cst_54 = arith.constant dense<0.000000e+00> : vector<8x128xf32>
    %144 = tpu.matmul %141, %143, %cst_54 {dimension_numbers = #tpu.dot_dimension_numbers<[1], [0], [0], [1], [0, 0, 1, 1], [], []>} : vector<8x8xbf16>, vector<8x128xbf16>, vector<8x128xf32> -> vector<8x128xf32>
    %145 = arith.addf %121, %144 : vector<8x128xf32>
    %c0_55 = arith.constant 0 : index
    %c0_56 = arith.constant 0 : index
    %146 = vector.load %arg11[%c0_55, %c0_56] : memref<1x128xf32, #tpu.memory_space<vmem>>, vector<1x128xf32>
    %147 = vector.broadcast %146 : vector<1x128xf32> to vector<8x128xf32>
    %148 = arith.addf %145, %147 : vector<8x128xf32>
    %149 = arith.addf %1, %148 : vector<8x128xf32>
    %c0_57 = arith.constant 0 : index
    %c0_58 = arith.constant 0 : index
    %150 = vector.load %arg12[%c0_57, %c0_58] : memref<1x128xf32, #tpu.memory_space<vmem>>, vector<1x128xf32>
    %c0_59 = arith.constant 0 : index
    %c0_60 = arith.constant 0 : index
    %151 = vector.load %arg13[%c0_59, %c0_60] : memref<1x128xf32, #tpu.memory_space<vmem>>, vector<1x128xf32>
    %152 = vector.broadcast %6 : vector<1x128xf32> to vector<8x128xf32>
    %153 = arith.mulf %149, %152 : vector<8x128xf32>
    %cst_61 = arith.constant dense<0.000000e+00> : vector<8xf32>
    %154 = vector.multi_reduction <add>, %153, %cst_61 [1] : vector<8x128xf32> to vector<8xf32>
    %155 = vector.shape_cast %154 : vector<8xf32> to vector<8x1xf32>
    %cst_62 = arith.constant 3.125000e-02 : f32
    %156 = vector.broadcast %cst_62 : f32 to vector<8x1xf32>
    %157 = arith.mulf %155, %156 : vector<8x1xf32>
    %158 = vector.broadcast %157 : vector<8x1xf32> to vector<8x128xf32>
    %159 = arith.subf %149, %158 : vector<8x128xf32>
    %160 = vector.broadcast %6 : vector<1x128xf32> to vector<8x128xf32>
    %161 = arith.mulf %159, %160 : vector<8x128xf32>
    %162 = arith.mulf %161, %161 : vector<8x128xf32>
    %cst_63 = arith.constant dense<0.000000e+00> : vector<8xf32>
    %163 = vector.multi_reduction <add>, %162, %cst_63 [1] : vector<8x128xf32> to vector<8xf32>
    %164 = vector.shape_cast %163 : vector<8xf32> to vector<8x1xf32>
    %cst_64 = arith.constant 3.125000e-02 : f32
    %165 = vector.broadcast %cst_64 : f32 to vector<8x1xf32>
    %166 = arith.mulf %164, %165 : vector<8x1xf32>
    %cst_65 = arith.constant 9.99999974E-6 : f32
    %167 = vector.broadcast %cst_65 : f32 to vector<8x1xf32>
    %168 = arith.addf %166, %167 : vector<8x1xf32>
    %169 = math.rsqrt %168 : vector<8x1xf32>
    %170 = vector.broadcast %169 : vector<8x1xf32> to vector<8x128xf32>
    %171 = arith.mulf %161, %170 : vector<8x128xf32>
    %172 = vector.broadcast %150 : vector<1x128xf32> to vector<8x128xf32>
    %173 = arith.mulf %171, %172 : vector<8x128xf32>
    %174 = vector.broadcast %151 : vector<1x128xf32> to vector<8x128xf32>
    %175 = arith.addf %173, %174 : vector<8x128xf32>
    %176 = arith.truncf %175 : vector<8x128xf32> to vector<8x128xbf16>
    %c0_66 = arith.constant 0 : index
    %c0_67 = arith.constant 0 : index
    %177 = vector.load %arg14[%c0_66, %c0_67] : memref<128x128xbf16, #tpu.memory_space<vmem>>, vector<128x128xbf16>
    %cst_68 = arith.constant dense<0.000000e+00> : vector<8x128xf32>
    %178 = tpu.matmul %176, %177, %cst_68 {dimension_numbers = #tpu.dot_dimension_numbers<[1], [0], [0], [1], [0, 0, 1, 1], [], []>} : vector<8x128xbf16>, vector<128x128xbf16>, vector<8x128xf32> -> vector<8x128xf32>
    %c0_69 = arith.constant 0 : index
    %c0_70 = arith.constant 0 : index
    %179 = vector.load %arg15[%c0_69, %c0_70] : memref<1x128xf32, #tpu.memory_space<vmem>>, vector<1x128xf32>
    %180 = vector.broadcast %179 : vector<1x128xf32> to vector<8x128xf32>
    %181 = arith.addf %178, %180 : vector<8x128xf32>
    %cst_71 = arith.constant 5.000000e-01 : f32
    %182 = vector.broadcast %cst_71 : f32 to vector<8x128xf32>
    %183 = arith.mulf %182, %181 : vector<8x128xf32>
    %cst_72 = arith.constant 0.707106769 : f32
    %184 = vector.broadcast %cst_72 : f32 to vector<8x128xf32>
    %185 = arith.mulf %181, %184 : vector<8x128xf32>
    %186 = math.erf %185 : vector<8x128xf32>
    %cst_73 = arith.constant 1.000000e+00 : f32
    %187 = vector.broadcast %cst_73 : f32 to vector<8x128xf32>
    %188 = arith.addf %187, %186 : vector<8x128xf32>
    %189 = arith.mulf %183, %188 : vector<8x128xf32>
    %190 = arith.truncf %189 : vector<8x128xf32> to vector<8x128xbf16>
    %c0_74 = arith.constant 0 : index
    %c0_75 = arith.constant 0 : index
    %191 = vector.load %arg16[%c0_74, %c0_75] : memref<128x128xbf16, #tpu.memory_space<vmem>>, vector<128x128xbf16>
    %cst_76 = arith.constant dense<0.000000e+00> : vector<8x128xf32>
    %192 = tpu.matmul %190, %191, %cst_76 {dimension_numbers = #tpu.dot_dimension_numbers<[1], [0], [0], [1], [0, 0, 1, 1], [], []>} : vector<8x128xbf16>, vector<128x128xbf16>, vector<8x128xf32> -> vector<8x128xf32>
    %c0_77 = arith.constant 0 : index
    %c0_78 = arith.constant 0 : index
    %193 = vector.load %arg17[%c0_77, %c0_78] : memref<1x128xf32, #tpu.memory_space<vmem>>, vector<1x128xf32>
    %194 = vector.broadcast %193 : vector<1x128xf32> to vector<8x128xf32>
    %195 = arith.addf %192, %194 : vector<8x128xf32>
    %196 = arith.addf %149, %195 : vector<8x128xf32>
    %c0_79 = arith.constant 0 : index
    %c0_80 = arith.constant 0 : index
    %c0_81 = arith.constant 0 : index
    %197 = vector.load %arg18[%c0_79, %c0_80, %c0_81] : memref<1x8x128xf32, #tpu.memory_space<vmem>>, vector<1x8x128xf32>
    %198 = vector.shape_cast %197 : vector<1x8x128xf32> to vector<8x128xf32>
    %199 = vector.shape_cast %196 : vector<8x128xf32> to vector<1x8x128xf32>
    tpu.vector_store %arg18[%c0_79, %c0_80, %c0_81], %199 {strides = array<i32>} : memref<1x8x128xf32, #tpu.memory_space<vmem>>, vector<1x8x128xf32>,
    return
  }
  func.func @transform_0(%arg0: i32) -> (i32, i32, i32) {
    %c0_i32 = arith.constant 0 : i32
    %c0_i32_0 = arith.constant 0 : i32
    %c0_i32_1 = arith.constant 0 : i32
    return %arg0, %c0_i32, %c0_i32_0 : i32, i32, i32
  }
  func.func @transform_1(%arg0: i32) -> (i32, i32) {
    %c0_i32 = arith.constant 0 : i32
    %c0_i32_0 = arith.constant 0 : i32
    %c0_i32_1 = arith.constant 0 : i32
    return %c0_i32, %c0_i32_0 : i32, i32
  }
  func.func @transform_2(%arg0: i32) -> (i32, i32) {
    %c0_i32 = arith.constant 0 : i32
    %c0_i32_0 = arith.constant 0 : i32
    %c0_i32_1 = arith.constant 0 : i32
    return %c0_i32, %c0_i32_0 : i32, i32
  }
  func.func @transform_3(%arg0: i32) -> (i32, i32) {
    %c0_i32 = arith.constant 0 : i32
    %c0_i32_0 = arith.constant 0 : i32
    %c0_i32_1 = arith.constant 0 : i32
    return %c0_i32, %c0_i32_0 : i32, i32
  }
  func.func @transform_4(%arg0: i32) -> (i32, i32) {
    %c0_i32 = arith.constant 0 : i32
    %c0_i32_0 = arith.constant 0 : i32
    %c0_i32_1 = arith.constant 0 : i32
    return %c0_i32, %c0_i32_0 : i32, i32
  }
  func.func @transform_5(%arg0: i32) -> (i32, i32) {
    %c0_i32 = arith.constant 0 : i32
    %c0_i32_0 = arith.constant 0 : i32
    %c0_i32_1 = arith.constant 0 : i32
    return %c0_i32, %c0_i32_0 : i32, i32
  }
  func.func @transform_6(%arg0: i32) -> (i32, i32) {
    %c0_i32 = arith.constant 0 : i32
    %c0_i32_0 = arith.constant 0 : i32
    %c0_i32_1 = arith.constant 0 : i32
    return %c0_i32, %c0_i32_0 : i32, i32
  }
  func.func @transform_7(%arg0: i32) -> (i32, i32) {
    %c0_i32 = arith.constant 0 : i32
    %c0_i32_0 = arith.constant 0 : i32
    %c0_i32_1 = arith.constant 0 : i32
    return %c0_i32, %c0_i32_0 : i32, i32
  }
  func.func @transform_8(%arg0: i32) -> (i32, i32) {
    %c0_i32 = arith.constant 0 : i32
    %c0_i32_0 = arith.constant 0 : i32
    %c0_i32_1 = arith.constant 0 : i32
    return %c0_i32, %c0_i32_0 : i32, i32
  }
  func.func @transform_9(%arg0: i32) -> (i32, i32, i32) {
    %c0_i32 = arith.constant 0 : i32
    %c0_i32_0 = arith.constant 0 : i32
    %c0_i32_1 = arith.constant 0 : i32
    %c0_i32_2 = arith.constant 0 : i32
    return %c0_i32, %c0_i32_0, %c0_i32_1 : i32, i32, i32
  }
  func.func @transform_10(%arg0: i32) -> (i32, i32) {
    %c0_i32 = arith.constant 0 : i32
    %c0_i32_0 = arith.constant 0 : i32
    %c0_i32_1 = arith.constant 0 : i32
    return %c0_i32, %c0_i32_0 : i32, i32
  }
  func.func @transform_11(%arg0: i32) -> (i32, i32) {
    %c0_i32 = arith.constant 0 : i32
    %c0_i32_0 = arith.constant 0 : i32
    %c0_i32_1 = arith.constant 0 : i32
    return %c0_i32, %c0_i32_0 : i32, i32
  }
  func.func @transform_12(%arg0: i32) -> (i32, i32) {
    %c0_i32 = arith.constant 0 : i32
    %c0_i32_0 = arith.constant 0 : i32
    %c0_i32_1 = arith.constant 0 : i32
    return %c0_i32, %c0_i32_0 : i32, i32
  }
  func.func @transform_13(%arg0: i32) -> (i32, i32) {
    %c0_i32 = arith.constant 0 : i32
    %c0_i32_0 = arith.constant 0 : i32
    %c0_i32_1 = arith.constant 0 : i32
    return %c0_i32, %c0_i32_0 : i32, i32
  }
  func.func @transform_14(%arg0: i32) -> (i32, i32) {
    %c0_i32 = arith.constant 0 : i32
    %c0_i32_0 = arith.constant 0 : i32
    %c0_i32_1 = arith.constant 0 : i32
    return %c0_i32, %c0_i32_0 : i32, i32
  }
  func.func @transform_15(%arg0: i32) -> (i32, i32) {
    %c0_i32 = arith.constant 0 : i32
    %c0_i32_0 = arith.constant 0 : i32
    %c0_i32_1 = arith.constant 0 : i32
    return %c0_i32, %c0_i32_0 : i32, i32
  }
  func.func @transform_16(%arg0: i32) -> (i32, i32) {
    %c0_i32 = arith.constant 0 : i32
    %c0_i32_0 = arith.constant 0 : i32
    %c0_i32_1 = arith.constant 0 : i32
    return %c0_i32, %c0_i32_0 : i32, i32
  }
  func.func @transform_17(%arg0: i32) -> (i32, i32, i32) {
    %c0_i32 = arith.constant 0 : i32
    %c0_i32_0 = arith.constant 0 : i32
    %c0_i32_1 = arith.constant 0 : i32
    return %arg0, %c0_i32, %c0_i32_0 : i32, i32, i32
  }
}

module attributes {stable_mosaic.version = 11 : i64} {
  func.func @block_kernel(%arg0: i32, %arg1: memref<1x8x128xf32, #tpu.memory_space<vmem>>, %arg2: memref<1x128xf32, #tpu.memory_space<vmem>>, %arg3: memref<1x128xf32, #tpu.memory_space<vmem>>, %arg4: memref<128x32xbf16, #tpu.memory_space<vmem>>, %arg5: memref<1x32xf32, #tpu.memory_space<vmem>>, %arg6: memref<128x32xbf16, #tpu.memory_space<vmem>>, %arg7: memref<1x32xf32, #tpu.memory_space<vmem>>, %arg8: memref<128x32xbf16, #tpu.memory_space<vmem>>, %arg9: memref<1x32xf32, #tpu.memory_space<vmem>>, %arg10: memref<4x8x128xbf16, #tpu.memory_space<vmem>>, %arg11: memref<1x128xf32, #tpu.memory_space<vmem>>, %arg12: memref<1x128xf32, #tpu.memory_space<vmem>>, %arg13: memref<1x128xf32, #tpu.memory_space<vmem>>, %arg14: memref<128x128xbf16, #tpu.memory_space<vmem>>, %arg15: memref<1x128xf32, #tpu.memory_space<vmem>>, %arg16: memref<128x128xbf16, #tpu.memory_space<vmem>>, %arg17: memref<1x128xf32, #tpu.memory_space<vmem>>, %arg18: memref<1x8x128xf32, #tpu.memory_space<vmem>>) attributes {dimension_semantics = [#tpu.dimension_semantics<parallel>], iteration_bounds = array<i64: 2>, scalar_prefetch = 0 : i64, scratch_operands = 0 : i64, tpu.core_type = #tpu.core_type<tc>, window_params = [{transform_indices = @transform_0, window_bounds = array<i64: 1, 8, 128>}, {pipeline_mode = #tpu.pipeline_mode<synchronous>, transform_indices = @transform_1, window_bounds = array<i64: 1, 128>}, {pipeline_mode = #tpu.pipeline_mode<synchronous>, transform_indices = @transform_2, window_bounds = array<i64: 1, 128>}, {pipeline_mode = #tpu.pipeline_mode<synchronous>, transform_indices = @transform_3, window_bounds = array<i64: 128, 32>}, {pipeline_mode = #tpu.pipeline_mode<synchronous>, transform_indices = @transform_4, window_bounds = array<i64: 1, 32>}, {pipeline_mode = #tpu.pipeline_mode<synchronous>, transform_indices = @transform_5, window_bounds = array<i64: 128, 32>}, {pipeline_mode = #tpu.pipeline_mode<synchronous>, transform_indices = @transform_6, window_bounds = array<i64: 1, 32>}, {pipeline_mode = #tpu.pipeline_mode<synchronous>, transform_indices = @transform_7, window_bounds = array<i64: 128, 32>}, {pipeline_mode = #tpu.pipeline_mode<synchronous>, transform_indices = @transform_8, window_bounds = array<i64: 1, 32>}, {pipeline_mode = #tpu.pipeline_mode<synchronous>, transform_indices = @transform_9, window_bounds = array<i64: 4, 8, 128>}, {pipeline_mode = #tpu.pipeline_mode<synchronous>, transform_indices = @transform_10, window_bounds = array<i64: 1, 128>}, {pipeline_mode = #tpu.pipeline_mode<synchronous>, transform_indices = @transform_11, window_bounds = array<i64: 1, 128>}, {pipeline_mode = #tpu.pipeline_mode<synchronous>, transform_indices = @transform_12, window_bounds = array<i64: 1, 128>}, {pipeline_mode = #tpu.pipeline_mode<synchronous>, transform_indices = @transform_13, window_bounds = array<i64: 128, 128>}, {pipeline_mode = #tpu.pipeline_mode<synchronous>, transform_indices = @transform_14, window_bounds = array<i64: 1, 128>}, {pipeline_mode = #tpu.pipeline_mode<synchronous>, transform_indices = @transform_15, window_bounds = array<i64: 128, 128>}, {pipeline_mode = #tpu.pipeline_mode<synchronous>, transform_indices = @transform_16, window_bounds = array<i64: 1, 128>}, {transform_indices = @transform_17, window_bounds = array<i64: 1, 8, 128>}]} {
    %c0 = arith.constant 0 : index
    %c0_0 = arith.constant 0 : index
    %c0_1 = arith.constant 0 : index
    %0 = vector.load %arg1[%c0, %c0_0, %c0_1] : memref<1x8x128xf32, #tpu.memory_space<vmem>>, vector<1x8x128xf32>
    %1 = vector.shape_cast %0 : vector<1x8x128xf32> to vector<8x128xf32>
    %2 = tpu.iota {dimensions = array<i32: 1>} : vector<1x128xi32>
    %c32_i32 = arith.constant 32 : i32
    %3 = vector.broadcast %c32_i32 : i32 to vector<1x128xi32>
    %4 = arith.cmpi slt, %2, %3 : vector<1x128xi32>
    %5 = arith.extui %4 : vector<1x128xi1> to vector<1x128xi32>
    %6 = arith.sitofp %5 : vector<1x128xi32> to vector<1x128xf32>
    %c0_2 = arith.constant 0 : index
    %c0_3 = arith.constant 0 : index
    %7 = vector.load %arg2[%c0_2, %c0_3] : memref<1x128xf32, #tpu.memory_space<vmem>>, vector<1x128xf32>
    %c0_4 = arith.constant 0 : index
    %c0_5 = arith.constant 0 : index
    %8 = vector.load %arg3[%c0_4, %c0_5] : memref<1x128xf32, #tpu.memory_space<vmem>>, vector<1x128xf32>
    %9 = vector.broadcast %6 : vector<1x128xf32> to vector<8x128xf32>
    %10 = arith.mulf %1, %9 : vector<8x128xf32>
    %cst = arith.constant dense<0.000000e+00> : vector<8xf32>
    %11 = vector.multi_reduction <add>, %10, %cst [1] : vector<8x128xf32> to vector<8xf32>
    %12 = vector.shape_cast %11 : vector<8xf32> to vector<8x1xf32>
    %cst_6 = arith.constant 3.125000e-02 : f32
    %13 = vector.broadcast %cst_6 : f32 to vector<8x1xf32>
    %14 = arith.mulf %12, %13 : vector<8x1xf32>
    %15 = vector.broadcast %14 : vector<8x1xf32> to vector<8x128xf32>
    %16 = arith.subf %1, %15 : vector<8x128xf32>
    %17 = vector.broadcast %6 : vector<1x128xf32> to vector<8x128xf32>
    %18 = arith.mulf %16, %17 : vector<8x128xf32>
    %19 = arith.mulf %18, %18 : vector<8x128xf32>
    %cst_7 = arith.constant dense<0.000000e+00> : vector<8xf32>
    %20 = vector.multi_reduction <add>, %19, %cst_7 [1] : vector<8x128xf32> to vector<8xf32>
    %21 = vector.shape_cast %20 : vector<8xf32> to vector<8x1xf32>
    %cst_8 = arith.constant 3.125000e-02 : f32
    %22 = vector.broadcast %cst_8 : f32 to vector<8x1xf32>
    %23 = arith.mulf %21, %22 : vector<8x1xf32>
    %cst_9 = arith.constant 9.99999974E-6 : f32
    %24 = vector.broadcast %cst_9 : f32 to vector<8x1xf32>
    %25 = arith.addf %23, %24 : vector<8x1xf32>
    %26 = math.rsqrt %25 : vector<8x1xf32>
    %27 = vector.broadcast %26 : vector<8x1xf32> to vector<8x128xf32>
    %28 = arith.mulf %18, %27 : vector<8x128xf32>
    %29 = vector.broadcast %7 : vector<1x128xf32> to vector<8x128xf32>
    %30 = arith.mulf %28, %29 : vector<8x128xf32>
    %31 = vector.broadcast %8 : vector<1x128xf32> to vector<8x128xf32>
    %32 = arith.addf %30, %31 : vector<8x128xf32>
    %33 = arith.truncf %32 : vector<8x128xf32> to vector<8x128xbf16>
    %c0_10 = arith.constant 0 : index
    %c0_11 = arith.constant 0 : index
    %34 = vector.load %arg4[%c0_10, %c0_11] : memref<128x32xbf16, #tpu.memory_space<vmem>>, vector<128x32xbf16>
    %cst_12 = arith.constant dense<0.000000e+00> : vector<8x32xf32>
    %35 = tpu.matmul %33, %34, %cst_12 {dimension_numbers = #tpu.dot_dimension_numbers<[1], [0], [0], [1], [0, 0, 1, 1], [], []>} : vector<8x128xbf16>, vector<128x32xbf16>, vector<8x32xf32> -> vector<8x32xf32>
    %c0_13 = arith.constant 0 : index
    %c0_14 = arith.constant 0 : index
    %36 = vector.load %arg5[%c0_13, %c0_14] : memref<1x32xf32, #tpu.memory_space<vmem>>, vector<1x32xf32>
    %37 = vector.broadcast %36 : vector<1x32xf32> to vector<8x32xf32>
    %38 = arith.addf %35, %37 : vector<8x32xf32>
    %c0_15 = arith.constant 0 : index
    %c0_16 = arith.constant 0 : index
    %39 = vector.load %arg6[%c0_15, %c0_16] : memref<128x32xbf16, #tpu.memory_space<vmem>>, vector<128x32xbf16>
    %cst_17 = arith.constant dense<0.000000e+00> : vector<8x32xf32>
    %40 = tpu.matmul %33, %39, %cst_17 {dimension_numbers = #tpu.dot_dimension_numbers<[1], [0], [0], [1], [0, 0, 1, 1], [], []>} : vector<8x128xbf16>, vector<128x32xbf16>, vector<8x32xf32> -> vector<8x32xf32>
    %c0_18 = arith.constant 0 : index
    %c0_19 = arith.constant 0 : index
    %41 = vector.load %arg7[%c0_18, %c0_19] : memref<1x32xf32, #tpu.memory_space<vmem>>, vector<1x32xf32>
    %42 = vector.broadcast %41 : vector<1x32xf32> to vector<8x32xf32>
    %43 = arith.addf %40, %42 : vector<8x32xf32>
    %c0_20 = arith.constant 0 : index
    %c0_21 = arith.constant 0 : index
    %44 = vector.load %arg8[%c0_20, %c0_21] : memref<128x32xbf16, #tpu.memory_space<vmem>>, vector<128x32xbf16>
    %cst_22 = arith.constant dense<0.000000e+00> : vector<8x32xf32>
    %45 = tpu.matmul %33, %44, %cst_22 {dimension_numbers = #tpu.dot_dimension_numbers<[1], [0], [0], [1], [0, 0, 1, 1], [], []>} : vector<8x128xbf16>, vector<128x32xbf16>, vector<8x32xf32> -> vector<8x32xf32>
    %c0_23 = arith.constant 0 : index
    %c0_24 = arith.constant 0 : index
    %46 = vector.load %arg9[%c0_23, %c0_24] : memref<1x32xf32, #tpu.memory_space<vmem>>, vector<1x32xf32>
    %47 = vector.broadcast %46 : vector<1x32xf32> to vector<8x32xf32>
    %48 = arith.addf %45, %47 : vector<8x32xf32>
    %cst_25 = arith.constant 0.000000e+00 : f32
    %49 = vector.broadcast %cst_25 : f32 to vector<8x128xf32>
    %50 = vector.extract_strided_slice %38 {offsets = [0, 0], sizes = [8, 8], strides = [1, 1]} : vector<8x32xf32> to vector<8x8xf32>
    %51 = arith.truncf %50 : vector<8x8xf32> to vector<8x8xbf16>
    %52 = vector.extract_strided_slice %43 {offsets = [0, 0], sizes = [8, 8], strides = [1, 1]} : vector<8x32xf32> to vector<8x8xf32>
    %53 = arith.truncf %52 : vector<8x8xf32> to vector<8x8xbf16>
    %54 = vector.extract_strided_slice %48 {offsets = [0, 0], sizes = [8, 8], strides = [1, 1]} : vector<8x32xf32> to vector<8x8xf32>
    %55 = arith.truncf %54 : vector<8x8xf32> to vector<8x8xbf16>
    %cst_26 = arith.constant dense<0.000000e+00> : vector<8x8xf32>
    %56 = tpu.matmul %51, %53, %cst_26 {dimension_numbers = #tpu.dot_dimension_numbers<[1], [1], [0], [0], [0, 0, 1, 0], [], []>} : vector<8x8xbf16>, vector<8x8xbf16>, vector<8x8xf32> -> vector<8x8xf32>
    %cst_27 = arith.constant dense<0xFF800000> : vector<8xf32>
    %57 = vector.multi_reduction <maximumf>, %56, %cst_27 [1] : vector<8x8xf32> to vector<8xf32>
    %58 = vector.shape_cast %57 : vector<8xf32> to vector<8x1xf32>
    %59 = vector.broadcast %58 : vector<8x1xf32> to vector<8x8xf32>
    %60 = arith.subf %56, %59 : vector<8x8xf32>
    %61 = math.exp %60 : vector<8x8xf32>
    %cst_28 = arith.constant dense<0.000000e+00> : vector<8xf32>
    %62 = vector.multi_reduction <add>, %61, %cst_28 [1] : vector<8x8xf32> to vector<8xf32>
    %63 = vector.shape_cast %62 : vector<8xf32> to vector<8x1xf32>
    %64 = arith.truncf %61 : vector<8x8xf32> to vector<8x8xbf16>
    %cst_29 = arith.constant dense<0.000000e+00> : vector<8x8xf32>
    %65 = tpu.matmul %64, %55, %cst_29 {dimension_numbers = #tpu.dot_dimension_numbers<[1], [0], [0], [1], [0, 0, 1, 1], [], []>} : vector<8x8xbf16>, vector<8x8xbf16>, vector<8x8xf32> -> vector<8x8xf32>
    %66 = tpu.reciprocal %63 {approx = true} : vector<8x1xf32> -> vector<8x1xf32>
    %67 = vector.broadcast %66 : vector<8x1xf32> to vector<8x8xf32>
    %68 = arith.mulf %65, %67 : vector<8x8xf32>
    %69 = arith.truncf %68 : vector<8x8xf32> to vector<8x8xbf16>
    %c0_30 = arith.constant 0 : index
    %c0_31 = arith.constant 0 : index
    %c0_32 = arith.constant 0 : index
    %70 = vector.load %arg10[%c0_30, %c0_31, %c0_32] : memref<4x8x128xbf16, #tpu.memory_space<vmem>>, vector<1x8x128xbf16>
    %71 = vector.shape_cast %70 : vector<1x8x128xbf16> to vector<8x128xbf16>
    %cst_33 = arith.constant dense<0.000000e+00> : vector<8x128xf32>
    %72 = tpu.matmul %69, %71, %cst_33 {dimension_numbers = #tpu.dot_dimension_numbers<[1], [0], [0], [1], [0, 0, 1, 1], [], []>} : vector<8x8xbf16>, vector<8x128xbf16>, vector<8x128xf32> -> vector<8x128xf32>
    %73 = arith.addf %49, %72 : vector<8x128xf32>
    %74 = vector.extract_strided_slice %38 {offsets = [0, 8], sizes = [8, 8], strides = [1, 1]} : vector<8x32xf32> to vector<8x8xf32>
    %75 = arith.truncf %74 : vector<8x8xf32> to vector<8x8xbf16>
    %76 = vector.extract_strided_slice %43 {offsets = [0, 8], sizes = [8, 8], strides = [1, 1]} : vector<8x32xf32> to vector<8x8xf32>
    %77 = arith.truncf %76 : vector<8x8xf32> to vector<8x8xbf16>
    %78 = vector.extract_strided_slice %48 {offsets = [0, 8], sizes = [8, 8], strides = [1, 1]} : vector<8x32xf32> to vector<8x8xf32>
    %79 = arith.truncf %78 : vector<8x8xf32> to vector<8x8xbf16>
    %cst_34 = arith.constant dense<0.000000e+00> : vector<8x8xf32>
    %80 = tpu.matmul %75, %77, %cst_34 {dimension_numbers = #tpu.dot_dimension_numbers<[1], [1], [0], [0], [0, 0, 1, 0], [], []>} : vector<8x8xbf16>, vector<8x8xbf16>, vector<8x8xf32> -> vector<8x8xf32>
    %cst_35 = arith.constant dense<0xFF800000> : vector<8xf32>
    %81 = vector.multi_reduction <maximumf>, %80, %cst_35 [1] : vector<8x8xf32> to vector<8xf32>
    %82 = vector.shape_cast %81 : vector<8xf32> to vector<8x1xf32>
    %83 = vector.broadcast %82 : vector<8x1xf32> to vector<8x8xf32>
    %84 = arith.subf %80, %83 : vector<8x8xf32>
    %85 = math.exp %84 : vector<8x8xf32>
    %cst_36 = arith.constant dense<0.000000e+00> : vector<8xf32>
    %86 = vector.multi_reduction <add>, %85, %cst_36 [1] : vector<8x8xf32> to vector<8xf32>
    %87 = vector.shape_cast %86 : vector<8xf32> to vector<8x1xf32>
    %88 = arith.truncf %85 : vector<8x8xf32> to vector<8x8xbf16>
    %cst_37 = arith.constant dense<0.000000e+00> : vector<8x8xf32>
    %89 = tpu.matmul %88, %79, %cst_37 {dimension_numbers = #tpu.dot_dimension_numbers<[1], [0], [0], [1], [0, 0, 1, 1], [], []>} : vector<8x8xbf16>, vector<8x8xbf16>, vector<8x8xf32> -> vector<8x8xf32>
    %90 = tpu.reciprocal %87 {approx = true} : vector<8x1xf32> -> vector<8x1xf32>
    %91 = vector.broadcast %90 : vector<8x1xf32> to vector<8x8xf32>
    %92 = arith.mulf %89, %91 : vector<8x8xf32>
    %93 = arith.truncf %92 : vector<8x8xf32> to vector<8x8xbf16>
    %c1 = arith.constant 1 : index
    %c0_38 = arith.constant 0 : index
    %c0_39 = arith.constant 0 : index
    %94 = vector.load %arg10[%c1, %c0_38, %c0_39] : memref<4x8x128xbf16, #tpu.memory_space<vmem>>, vector<1x8x128xbf16>
    %95 = vector.shape_cast %94 : vector<1x8x128xbf16> to vector<8x128xbf16>
    %cst_40 = arith.constant dense<0.000000e+00> : vector<8x128xf32>
    %96 = tpu.matmul %93, %95, %cst_40 {dimension_numbers = #tpu.dot_dimension_numbers<[1], [0], [0], [1], [0, 0, 1, 1], [], []>} : vector<8x8xbf16>, vector<8x128xbf16>, vector<8x128xf32> -> vector<8x128xf32>
    %97 = arith.addf %73, %96 : vector<8x128xf32>
    %98 = vector.extract_strided_slice %38 {offsets = [0, 16], sizes = [8, 8], strides = [1, 1]} : vector<8x32xf32> to vector<8x8xf32>
    %99 = arith.truncf %98 : vector<8x8xf32> to vector<8x8xbf16>
    %100 = vector.extract_strided_slice %43 {offsets = [0, 16], sizes = [8, 8], strides = [1, 1]} : vector<8x32xf32> to vector<8x8xf32>
    %101 = arith.truncf %100 : vector<8x8xf32> to vector<8x8xbf16>
    %102 = vector.extract_strided_slice %48 {offsets = [0, 16], sizes = [8, 8], strides = [1, 1]} : vector<8x32xf32> to vector<8x8xf32>
    %103 = arith.truncf %102 : vector<8x8xf32> to vector<8x8xbf16>
    %cst_41 = arith.constant dense<0.000000e+00> : vector<8x8xf32>
    %104 = tpu.matmul %99, %101, %cst_41 {dimension_numbers = #tpu.dot_dimension_numbers<[1], [1], [0], [0], [0, 0, 1, 0], [], []>} : vector<8x8xbf16>, vector<8x8xbf16>, vector<8x8xf32> -> vector<8x8xf32>
    %cst_42 = arith.constant dense<0xFF800000> : vector<8xf32>
    %105 = vector.multi_reduction <maximumf>, %104, %cst_42 [1] : vector<8x8xf32> to vector<8xf32>
    %106 = vector.shape_cast %105 : vector<8xf32> to vector<8x1xf32>
    %107 = vector.broadcast %106 : vector<8x1xf32> to vector<8x8xf32>
    %108 = arith.subf %104, %107 : vector<8x8xf32>
    %109 = math.exp %108 : vector<8x8xf32>
    %cst_43 = arith.constant dense<0.000000e+00> : vector<8xf32>
    %110 = vector.multi_reduction <add>, %109, %cst_43 [1] : vector<8x8xf32> to vector<8xf32>
    %111 = vector.shape_cast %110 : vector<8xf32> to vector<8x1xf32>
    %112 = arith.truncf %109 : vector<8x8xf32> to vector<8x8xbf16>
    %cst_44 = arith.constant dense<0.000000e+00> : vector<8x8xf32>
    %113 = tpu.matmul %112, %103, %cst_44 {dimension_numbers = #tpu.dot_dimension_numbers<[1], [0], [0], [1], [0, 0, 1, 1], [], []>} : vector<8x8xbf16>, vector<8x8xbf16>, vector<8x8xf32> -> vector<8x8xf32>
    %114 = tpu.reciprocal %111 {approx = true} : vector<8x1xf32> -> vector<8x1xf32>
    %115 = vector.broadcast %114 : vector<8x1xf32> to vector<8x8xf32>
    %116 = arith.mulf %113, %115 : vector<8x8xf32>
    %117 = arith.truncf %116 : vector<8x8xf32> to vector<8x8xbf16>
    %c2 = arith.constant 2 : index
    %c0_45 = arith.constant 0 : index
    %c0_46 = arith.constant 0 : index
    %118 = vector.load %arg10[%c2, %c0_45, %c0_46] : memref<4x8x128xbf16, #tpu.memory_space<vmem>>, vector<1x8x128xbf16>
    %119 = vector.shape_cast %118 : vector<1x8x128xbf16> to vector<8x128xbf16>
    %cst_47 = arith.constant dense<0.000000e+00> : vector<8x128xf32>
    %120 = tpu.matmul %117, %119, %cst_47 {dimension_numbers = #tpu.dot_dimension_numbers<[1], [0], [0], [1], [0, 0, 1, 1], [], []>} : vector<8x8xbf16>, vector<8x128xbf16>, vector<8x128xf32> -> vector<8x128xf32>
    %121 = arith.addf %97, %120 : vector<8x128xf32>
    %122 = vector.extract_strided_slice %38 {offsets = [0, 24], sizes = [8, 8], strides = [1, 1]} : vector<8x32xf32> to vector<8x8xf32>
    %123 = arith.truncf %122 : vector<8x8xf32> to vector<8x8xbf16>
    %124 = vector.extract_strided_slice %43 {offsets = [0, 24], sizes = [8, 8], strides = [1, 1]} : vector<8x32xf32> to vector<8x8xf32>
    %125 = arith.truncf %124 : vector<8x8xf32> to vector<8x8xbf16>
    %126 = vector.extract_strided_slice %48 {offsets = [0, 24], sizes = [8, 8], strides = [1, 1]} : vector<8x32xf32> to vector<8x8xf32>
    %127 = arith.truncf %126 : vector<8x8xf32> to vector<8x8xbf16>
    %cst_48 = arith.constant dense<0.000000e+00> : vector<8x8xf32>
    %128 = tpu.matmul %123, %125, %cst_48 {dimension_numbers = #tpu.dot_dimension_numbers<[1], [1], [0], [0], [0, 0, 1, 0], [], []>} : vector<8x8xbf16>, vector<8x8xbf16>, vector<8x8xf32> -> vector<8x8xf32>
    %cst_49 = arith.constant dense<0xFF800000> : vector<8xf32>
    %129 = vector.multi_reduction <maximumf>, %128, %cst_49 [1] : vector<8x8xf32> to vector<8xf32>
    %130 = vector.shape_cast %129 : vector<8xf32> to vector<8x1xf32>
    %131 = vector.broadcast %130 : vector<8x1xf32> to vector<8x8xf32>
    %132 = arith.subf %128, %131 : vector<8x8xf32>
    %133 = math.exp %132 : vector<8x8xf32>
    %cst_50 = arith.constant dense<0.000000e+00> : vector<8xf32>
    %134 = vector.multi_reduction <add>, %133, %cst_50 [1] : vector<8x8xf32> to vector<8xf32>
    %135 = vector.shape_cast %134 : vector<8xf32> to vector<8x1xf32>
    %136 = arith.truncf %133 : vector<8x8xf32> to vector<8x8xbf16>
    %cst_51 = arith.constant dense<0.000000e+00> : vector<8x8xf32>
    %137 = tpu.matmul %136, %127, %cst_51 {dimension_numbers = #tpu.dot_dimension_numbers<[1], [0], [0], [1], [0, 0, 1, 1], [], []>} : vector<8x8xbf16>, vector<8x8xbf16>, vector<8x8xf32> -> vector<8x8xf32>
    %138 = tpu.reciprocal %135 {approx = true} : vector<8x1xf32> -> vector<8x1xf32>
    %139 = vector.broadcast %138 : vector<8x1xf32> to vector<8x8xf32>
    %140 = arith.mulf %137, %139 : vector<8x8xf32>
    %141 = arith.truncf %140 : vector<8x8xf32> to vector<8x8xbf16>
    %c3 = arith.constant 3 : index
    %c0_52 = arith.constant 0 : index
    %c0_53 = arith.constant 0 : index
    %142 = vector.load %arg10[%c3, %c0_52, %c0_53] : memref<4x8x128xbf16, #tpu.memory_space<vmem>>, vector<1x8x128xbf16>
    %143 = vector.shape_cast %142 : vector<1x8x128xbf16> to vector<8x128xbf16>
    %cst_54 = arith.constant dense<0.000000e+00> : vector<8x128xf32>
    %144 = tpu.matmul %141, %143, %cst_54 {dimension_numbers = #tpu.dot_dimension_numbers<[1], [0], [0], [1], [0, 0, 1, 1], [], []>} : vector<8x8xbf16>, vector<8x128xbf16>, vector<8x128xf32> -> vector<8x128xf32>
    %145 = arith.addf %121, %144 : vector<8x128xf32>
    %c0_55 = arith.constant 0 : index
    %c0_56 = arith.constant 0 : index
    %146 = vector.load %arg11[%c0_55, %c0_56] : memref<1x128xf32, #tpu.memory_space<vmem>>, vector<1x128xf32>
    %147 = vector.broadcast %146 : vector<1x128xf32> to vector<8x128xf32>
    %148 = arith.addf %145, %147 : vector<8x128xf32>
    %149 = arith.addf %1, %148 : vector<8x128xf32>
    %c0_57 = arith.constant 0 : index
    %c0_58 = arith.constant 0 : index
    %150 = vector.load %arg12[%c0_57, %c0_58] : memref<1x128xf32, #tpu.memory_space<vmem>>, vector<1x128xf32>
    %c0_59 = arith.constant 0 : index
    %c0_60 = arith.constant 0 : index
    %151 = vector.load %arg13[%c0_59, %c0_60] : memref<1x128xf32, #tpu.memory_space<vmem>>, vector<1x128xf32>
    %152 = vector.broadcast %6 : vector<1x128xf32> to vector<8x128xf32>
    %153 = arith.mulf %149, %152 : vector<8x128xf32>
    %cst_61 = arith.constant dense<0.000000e+00> : vector<8xf32>
    %154 = vector.multi_reduction <add>, %153, %cst_61 [1] : vector<8x128xf32> to vector<8xf32>
    %155 = vector.shape_cast %154 : vector<8xf32> to vector<8x1xf32>
    %cst_62 = arith.constant 3.125000e-02 : f32
    %156 = vector.broadcast %cst_62 : f32 to vector<8x1xf32>
    %157 = arith.mulf %155, %156 : vector<8x1xf32>
    %158 = vector.broadcast %157 : vector<8x1xf32> to vector<8x128xf32>
    %159 = arith.subf %149, %158 : vector<8x128xf32>
    %160 = vector.broadcast %6 : vector<1x128xf32> to vector<8x128xf32>
    %161 = arith.mulf %159, %160 : vector<8x128xf32>
    %162 = arith.mulf %161, %161 : vector<8x128xf32>
    %cst_63 = arith.constant dense<0.000000e+00> : vector<8xf32>
    %163 = vector.multi_reduction <add>, %162, %cst_63 [1] : vector<8x128xf32> to vector<8xf32>
    %164 = vector.shape_cast %163 : vector<8xf32> to vector<8x1xf32>
    %cst_64 = arith.constant 3.125000e-02 : f32
    %165 = vector.broadcast %cst_64 : f32 to vector<8x1xf32>
    %166 = arith.mulf %164, %165 : vector<8x1xf32>
    %cst_65 = arith.constant 9.99999974E-6 : f32
    %167 = vector.broadcast %cst_65 : f32 to vector<8x1xf32>
    %168 = arith.addf %166, %167 : vector<8x1xf32>
    %169 = math.rsqrt %168 : vector<8x1xf32>
    %170 = vector.broadcast %169 : vector<8x1xf32> to vector<8x128xf32>
    %171 = arith.mulf %161, %170 : vector<8x128xf32>
    %172 = vector.broadcast %150 : vector<1x128xf32> to vector<8x128xf32>
    %173 = arith.mulf %171, %172 : vector<8x128xf32>
    %174 = vector.broadcast %151 : vector<1x128xf32> to vector<8x128xf32>
    %175 = arith.addf %173, %174 : vector<8x128xf32>
    %176 = arith.truncf %175 : vector<8x128xf32> to vector<8x128xbf16>
    %c0_66 = arith.constant 0 : index
    %c0_67 = arith.constant 0 : index
    %177 = vector.load %arg14[%c0_66, %c0_67] : memref<128x128xbf16, #tpu.memory_space<vmem>>, vector<128x128xbf16>
    %cst_68 = arith.constant dense<0.000000e+00> : vector<8x128xf32>
    %178 = tpu.matmul %176, %177, %cst_68 {dimension_numbers = #tpu.dot_dimension_numbers<[1], [0], [0], [1], [0, 0, 1, 1], [], []>} : vector<8x128xbf16>, vector<128x128xbf16>, vector<8x128xf32> -> vector<8x128xf32>
    %c0_69 = arith.constant 0 : index
    %c0_70 = arith.constant 0 : index
    %179 = vector.load %arg15[%c0_69, %c0_70] : memref<1x128xf32, #tpu.memory_space<vmem>>, vector<1x128xf32>
    %180 = vector.broadcast %179 : vector<1x128xf32> to vector<8x128xf32>
    %181 = arith.addf %178, %180 : vector<8x128xf32>
    %cst_71 = arith.constant 5.000000e-01 : f32
    %182 = vector.broadcast %cst_71 : f32 to vector<8x128xf32>
    %183 = arith.mulf %182, %181 : vector<8x128xf32>
    %cst_72 = arith.constant 0.707106769 : f32
    %184 = vector.broadcast %cst_72 : f32 to vector<8x128xf32>
    %185 = arith.mulf %181, %184 : vector<8x128xf32>
    %186 = math.erf %185 : vector<8x128xf32>
    %cst_73 = arith.constant 1.000000e+00 : f32
    %187 = vector.broadcast %cst_73 : f32 to vector<8x128xf32>
    %188 = arith.addf %187, %186 : vector<8x128xf32>
    %189 = arith.mulf %183, %188 : vector<8x128xf32>
    %190 = arith.truncf %189 : vector<8x128xf32> to vector<8x128xbf16>
    %c0_74 = arith.constant 0 : index
    %c0_75 = arith.constant 0 : index
    %191 = vector.load %arg16[%c0_74, %c0_75] : memref<128x128xbf16, #tpu.memory_space<vmem>>, vector<128x128xbf16>
    %cst_76 = arith.constant dense<0.000000e+00> : vector<8x128xf32>
    %192 = tpu.matmul %190, %191, %cst_76 {dimension_numbers = #tpu.dot_dimension_numbers<[1], [0], [0], [1], [0, 0, 1, 1], [], []>} : vector<8x128xbf16>, vector<128x128xbf16>, vector<8x128xf32> -> vector<8x128xf32>
    %c0_77 = arith.constant 0 : index
    %c0_78 = arith.constant 0 : index
    %193 = vector.load %arg17[%c0_77, %c0_78] : memref<1x128xf32, #tpu.memory_space<vmem>>, vector<1x128xf32>
    %194 = vector.broadcast %193 : vector<1x128xf32> to vector<8x128xf32>
    %195 = arith.addf %192, %194 : vector<8x128xf32>
    %196 = arith.addf %149, %195 : vector<8x128xf32>
    %c0_79 = arith.constant 0 : index
    %c0_80 = arith.constant 0 : index
    %c0_81 = arith.constant 0 : index
    %197 = vector.load %arg18[%c0_79, %c0_80, %c0_81] : memref<1x8x128xf32, #tpu.memory_space<vmem>>, vector<1x8x128xf32>
    %198 = vector.shape_cast %197 : vector<1x8x128xf32> to vector<8x128xf32>
    %199 = vector.shape_cast %196 : vector<8x128xf32> to vector<1x8x128xf32>
    tpu.vector_store %arg18[%c0_79, %c0_80, %c0_81], %199 {strides = array<i32>} : memref<1x8x128xf32, #tpu.memory_space<vmem>>, vector<1x8x128xf32>,
    return
  }
  func.func @transform_0(%arg0: i32) -> (i32, i32, i32) {
    %c0_i32 = arith.constant 0 : i32
    %c0_i32_0 = arith.constant 0 : i32
    %c0_i32_1 = arith.constant 0 : i32
    return %arg0, %c0_i32, %c0_i32_0 : i32, i32, i32
  }
  func.func @transform_1(%arg0: i32) -> (i32, i32) {
    %c0_i32 = arith.constant 0 : i32
    %c0_i32_0 = arith.constant 0 : i32
    %c0_i32_1 = arith.constant 0 : i32
    return %c0_i32, %c0_i32_0 : i32, i32
  }
  func.func @transform_2(%arg0: i32) -> (i32, i32) {
    %c0_i32 = arith.constant 0 : i32
    %c0_i32_0 = arith.constant 0 : i32
    %c0_i32_1 = arith.constant 0 : i32
    return %c0_i32, %c0_i32_0 : i32, i32
  }
  func.func @transform_3(%arg0: i32) -> (i32, i32) {
    %c0_i32 = arith.constant 0 : i32
    %c0_i32_0 = arith.constant 0 : i32
    %c0_i32_1 = arith.constant 0 : i32
    return %c0_i32, %c0_i32_0 : i32, i32
  }
  func.func @transform_4(%arg0: i32) -> (i32, i32) {
    %c0_i32 = arith.constant 0 : i32
    %c0_i32_0 = arith.constant 0 : i32
    %c0_i32_1 = arith.constant 0 : i32
    return %c0_i32, %c0_i32_0 : i32, i32
  }
  func.func @transform_5(%arg0: i32) -> (i32, i32) {
    %c0_i32 = arith.constant 0 : i32
    %c0_i32_0 = arith.constant 0 : i32
    %c0_i32_1 = arith.constant 0 : i32
    return %c0_i32, %c0_i32_0 : i32, i32
  }
  func.func @transform_6(%arg0: i32) -> (i32, i32) {
    %c0_i32 = arith.constant 0 : i32
    %c0_i32_0 = arith.constant 0 : i32
    %c0_i32_1 = arith.constant 0 : i32
    return %c0_i32, %c0_i32_0 : i32, i32
  }
  func.func @transform_7(%arg0: i32) -> (i32, i32) {
    %c0_i32 = arith.constant 0 : i32
    %c0_i32_0 = arith.constant 0 : i32
    %c0_i32_1 = arith.constant 0 : i32
    return %c0_i32, %c0_i32_0 : i32, i32
  }
  func.func @transform_8(%arg0: i32) -> (i32, i32) {
    %c0_i32 = arith.constant 0 : i32
    %c0_i32_0 = arith.constant 0 : i32
    %c0_i32_1 = arith.constant 0 : i32
    return %c0_i32, %c0_i32_0 : i32, i32
  }
  func.func @transform_9(%arg0: i32) -> (i32, i32, i32) {
    %c0_i32 = arith.constant 0 : i32
    %c0_i32_0 = arith.constant 0 : i32
    %c0_i32_1 = arith.constant 0 : i32
    %c0_i32_2 = arith.constant 0 : i32
    return %c0_i32, %c0_i32_0, %c0_i32_1 : i32, i32, i32
  }
  func.func @transform_10(%arg0: i32) -> (i32, i32) {
    %c0_i32 = arith.constant 0 : i32
    %c0_i32_0 = arith.constant 0 : i32
    %c0_i32_1 = arith.constant 0 : i32
    return %c0_i32, %c0_i32_0 : i32, i32
  }
  func.func @transform_11(%arg0: i32) -> (i32, i32) {
    %c0_i32 = arith.constant 0 : i32
    %c0_i32_0 = arith.constant 0 : i32
    %c0_i32_1 = arith.constant 0 : i32
    return %c0_i32, %c0_i32_0 : i32, i32
  }
  func.func @transform_12(%arg0: i32) -> (i32, i32) {
    %c0_i32 = arith.constant 0 : i32
    %c0_i32_0 = arith.constant 0 : i32
    %c0_i32_1 = arith.constant 0 : i32
    return %c0_i32, %c0_i32_0 : i32, i32
  }
  func.func @transform_13(%arg0: i32) -> (i32, i32) {
    %c0_i32 = arith.constant 0 : i32
    %c0_i32_0 = arith.constant 0 : i32
    %c0_i32_1 = arith.constant 0 : i32
    return %c0_i32, %c0_i32_0 : i32, i32
  }
  func.func @transform_14(%arg0: i32) -> (i32, i32) {
    %c0_i32 = arith.constant 0 : i32
    %c0_i32_0 = arith.constant 0 : i32
    %c0_i32_1 = arith.constant 0 : i32
    return %c0_i32, %c0_i32_0 : i32, i32
  }
  func.func @transform_15(%arg0: i32) -> (i32, i32) {
    %c0_i32 = arith.constant 0 : i32
    %c0_i32_0 = arith.constant 0 : i32
    %c0_i32_1 = arith.constant 0 : i32
    return %c0_i32, %c0_i32_0 : i32, i32
  }
  func.func @transform_16(%arg0: i32) -> (i32, i32) {
    %c0_i32 = arith.constant 0 : i32
    %c0_i32_0 = arith.constant 0 : i32
    %c0_i32_1 = arith.constant 0 : i32
    return %c0_i32, %c0_i32_0 : i32, i32
  }
  func.func @transform_17(%arg0: i32) -> (i32, i32, i32) {
    %c0_i32 = arith.constant 0 : i32
    %c0_i32_0 = arith.constant 0 : i32
    %c0_i32_1 = arith.constant 0 : i32
    return %arg0, %c0_i32, %c0_i32_0 : i32, i32, i32
  }
}

</mosaic_0001>

<llo_original>
// kernel: tpu_custom_call.1
$region0: #{tpu_custom_call.1}
  #allocation0 [shape = 'u32[]', space=smem, size = 0x4, offset = 0x4, fixed_abs, tag = 'smem constant byte address 0x4 - core index']
  #allocation1 [shape = 'u32[144,128]{1,0:T(1,128)}', space=vmem, size = 0x12000, scoped, tag = 'internal scratch']
  %s0 = inlined_call_operand.vmem [shape: f32[2,8,128], index: 0, kind: input, shape index: {}]
  %s1 = inlined_call_operand.vmem [shape: f32[1,128], index: 1, kind: input, shape index: {}]
  %s2 = inlined_call_operand.vmem [shape: f32[1,128], index: 2, kind: input, shape index: {}]
  %s3 = inlined_call_operand.vmem [shape: bf16[128,32], index: 3, kind: input, shape index: {}]
  %s4 = inlined_call_operand.vmem [shape: f32[1,32], index: 4, kind: input, shape index: {}]
  %s5 = inlined_call_operand.vmem [shape: bf16[128,32], index: 5, kind: input, shape index: {}]
  %s6 = inlined_call_operand.vmem [shape: f32[1,32], index: 6, kind: input, shape index: {}]
  %s7 = inlined_call_operand.vmem [shape: bf16[128,32], index: 7, kind: input, shape index: {}]
  %s8 = inlined_call_operand.vmem [shape: f32[1,32], index: 8, kind: input, shape index: {}]
  %s9 = inlined_call_operand.vmem [shape: bf16[4,8,128], index: 9, kind: input, shape index: {}]
  %s10 = inlined_call_operand.vmem [shape: f32[1,128], index: 10, kind: input, shape index: {}]
  %s11 = inlined_call_operand.vmem [shape: f32[1,128], index: 11, kind: input, shape index: {}]
  %s12 = inlined_call_operand.vmem [shape: f32[1,128], index: 12, kind: input, shape index: {}]
  %s13 = inlined_call_operand.vmem [shape: bf16[128,128], index: 13, kind: input, shape index: {}]
  %s14 = inlined_call_operand.vmem [shape: f32[1,128], index: 14, kind: input, shape index: {}]
  %s15 = inlined_call_operand.vmem [shape: bf16[128,128], index: 15, kind: input, shape index: {}]
  %s16 = inlined_call_operand.vmem [shape: f32[1,128], index: 16, kind: input, shape index: {}]
  %s17 = inlined_call_operand.hbm [shape: f32[2,8,128], index: 17, kind: output, shape index: {}]
  %s18 = sld [smem:[#allocation0]]
  $region101: #{tpu_custom_call.1} parent=0
    _
  %s20 = ssub.s32 1, %s18
  %s21 = scalar_select 0, %s20, %s18
  $region1: #{tpu_custom_call.1} parent=0
    #allocation2 [shape = 'u8[8192]{0}', space=vmem, size = 0x2000, scoped, tag = 'output window, operand 0']
    #allocation3 [shape = 's32[2]{0}', space=sflag, size = 0x8, scoped, tag = 'scoped memory for tpu_custom_call.1']
    %22 = vsyncpa [#allocation3], 0
    %s23 = scalar_lea.sflag [#allocation3], 1
    %24 = vsyncpa %s23, 0
    loop: start=0, step=1, limit=4
    $region2: #{tpu_custom_call.1} parent=1 // loop_pre_header
      _
    $region3: #{tpu_custom_call.1} parent=1 // loop_header
      %s26 = sphi 0, %s30
      %p27 = scmp.ge.s32.totalorder %s26, 4
      %s36 = sphi 0, %s38
      %s39 = sphi 0, %s36
      %s40 = sphi 0, %s39
      %s56 = sphi 0, %s40
      %s60 = sphi 0, %s60
      %s62 = sphi 0, %s60
      %s63 = sphi 0, %s62
      %s77 = sphi 0, %s63
      %s81 = sphi 0, %s81
      %s83 = sphi 0, %s81
      %s84 = sphi 0, %s83
      %s98 = sphi 0, %s84
      %s102 = sphi 0, %s102
      %s104 = sphi 0, %s102
      %s105 = sphi 0, %s104
      %s119 = sphi 0, %s105
      %s123 = sphi 0, %s123
      %s125 = sphi 0, %s123
      %s126 = sphi 0, %s125
      %s140 = sphi 0, %s126
      %s144 = sphi 0, %s144
      %s146 = sphi 0, %s144
      %s147 = sphi 0, %s146
      %s161 = sphi 0, %s147
      %s165 = sphi 0, %s165
      %s167 = sphi 0, %s165
      %s168 = sphi 0, %s167
      %s182 = sphi 0, %s168
      %s186 = sphi 0, %s186
      %s188 = sphi 0, %s186
      %s189 = sphi 0, %s188
      %s203 = sphi 0, %s189
      %s207 = sphi 0, %s207
      %s209 = sphi 0, %s207
      %s210 = sphi 0, %s209
      %s224 = sphi 0, %s210
      %s228 = sphi 0, %s228
      %s230 = sphi 0, %s228
      %s231 = sphi 0, %s230
      %s245 = sphi 0, %s231
      %s249 = sphi 0, %s249
      %s251 = sphi 0, %s249
      %s252 = sphi 0, %s251
      %s266 = sphi 0, %s252
      %s270 = sphi 0, %s270
      %s272 = sphi 0, %s270
      %s273 = sphi 0, %s272
      %s287 = sphi 0, %s273
      %s291 = sphi 0, %s291
      %s293 = sphi 0, %s291
      %s294 = sphi 0, %s293
      %s308 = sphi 0, %s294
      %s312 = sphi 0, %s312
      %s314 = sphi 0, %s312
      %s315 = sphi 0, %s314
      %s329 = sphi 0, %s315
      %s333 = sphi 0, %s333
      %s335 = sphi 0, %s333
      %s336 = sphi 0, %s335
      %s350 = sphi 0, %s336
      %s354 = sphi 0, %s354
      %s356 = sphi 0, %s354
      %s357 = sphi 0, %s356
      %s371 = sphi 0, %s357
      %s375 = sphi 0, %s375
      %s377 = sphi 0, %s375
      %s378 = sphi 0, %s377
      %s392 = sphi 0, %s378
      %s398 = sphi 0, %s400
      %s401 = sphi 0, %s398
      %s402 = sphi 0, %s401
      %s418 = sphi 0, %s402
    $region4: #{tpu_custom_call.1} parent=1 // loop_header_branch
      %29 = sbr.rel (%p27) target = $region8
    $region5: #{tpu_custom_call.1} parent=1 // loop_body
      %s31 = ssub.s32 %s26, 1
      %s32 = ssub.s32 %s26, 2
      %s33 = sadd.s32 %s26, 1
      %s34 = ssub.s32 %s26, %s33
      %p35 = scmp.eq.s32.totalorder %s34, 0
      %s37 = sadd.s32 %s36, 1
      %s38 = scalar_select %p35, %s36, %s37
      %p41 = pneg %p35
      %p42 = scmp.eq.s32.totalorder %s26, 1
      %p43 = por %p41, %p42
      %p44 = scmp.ne.s32.totalorder %s36, %s39
      %p45 = scmp.eq.s32.totalorder %s26, 0
      %p46 = por %p44, %p45
      %p47 = scmp.ne.s32.totalorder %s36, %s39
      %p48 = scmp.eq.s32.totalorder %s31, 1
      %p49 = por %p47, %p48
      %p50 = scmp.ne.s32.totalorder %s39, %s40
      %p51 = scmp.eq.s32.totalorder %s31, 0
      %p52 = por %p50, %p51
      %p53 = scmp.ne.s32.totalorder %s39, %s40
      %p54 = scmp.eq.s32.totalorder %s32, 1
      %p55 = por %p53, %p54
      %p57 = scmp.ne.s32.totalorder %s40, %s56
      %p58 = scmp.eq.s32.totalorder %s32, 0
      %p59 = por %p57, %p58
      %s61 = sadd.s32 %s60, 1
      %p64 = scmp.eq.s32.totalorder %s26, 1
      %p65 = scmp.ne.s32.totalorder %s60, %s62
      %p66 = scmp.eq.s32.totalorder %s26, 0
      %p67 = por %p65, %p66
      %p68 = scmp.ne.s32.totalorder %s60, %s62
      %p69 = scmp.eq.s32.totalorder %s31, 1
      %p70 = por %p68, %p69
      %p71 = scmp.ne.s32.totalorder %s62, %s63
      %p72 = scmp.eq.s32.totalorder %s31, 0
      %p73 = por %p71, %p72
      %p74 = scmp.ne.s32.totalorder %s62, %s63
      %p75 = scmp.eq.s32.totalorder %s32, 1
      %p76 = por %p74, %p75
      %p78 = scmp.ne.s32.totalorder %s63, %s77
      %p79 = scmp.eq.s32.totalorder %s32, 0
      %p80 = por %p78, %p79
      %s82 = sadd.s32 %s81, 1
      %p85 = scmp.eq.s32.totalorder %s26, 1
      %p86 = scmp.ne.s32.totalorder %s81, %s83
      %p87 = scmp.eq.s32.totalorder %s26, 0
      %p88 = por %p86, %p87
      %p89 = scmp.ne.s32.totalorder %s81, %s83
      %p90 = scmp.eq.s32.totalorder %s31, 1
      %p91 = por %p89, %p90
      %p92 = scmp.ne.s32.totalorder %s83, %s84
      %p93 = scmp.eq.s32.totalorder %s31, 0
      %p94 = por %p92, %p93
      %p95 = scmp.ne.s32.totalorder %s83, %s84
      %p96 = scmp.eq.s32.totalorder %s32, 1
      %p97 = por %p95, %p96
      %p99 = scmp.ne.s32.totalorder %s84, %s98
      %p100 = scmp.eq.s32.totalorder %s32, 0
      %p101 = por %p99, %p100
      %s103 = sadd.s32 %s102, 1
      %p106 = scmp.eq.s32.totalorder %s26, 1
      %p107 = scmp.ne.s32.totalorder %s102, %s104
      %p108 = scmp.eq.s32.totalorder %s26, 0
      %p109 = por %p107, %p108
      %p110 = scmp.ne.s32.totalorder %s102, %s104
      %p111 = scmp.eq.s32.totalorder %s31, 1
      %p112 = por %p110, %p111
      %p113 = scmp.ne.s32.totalorder %s104, %s105
      %p114 = scmp.eq.s32.totalorder %s31, 0
      %p115 = por %p113, %p114
      %p116 = scmp.ne.s32.totalorder %s104, %s105
      %p117 = scmp.eq.s32.totalorder %s32, 1
      %p118 = por %p116, %p117
      %p120 = scmp.ne.s32.totalorder %s105, %s119
      %p121 = scmp.eq.s32.totalorder %s32, 0
      %p122 = por %p120, %p121
      %s124 = sadd.s32 %s123, 1
      %p127 = scmp.eq.s32.totalorder %s26, 1
      %p128 = scmp.ne.s32.totalorder %s123, %s125
      %p129 = scmp.eq.s32.totalorder %s26, 0
      %p130 = por %p128, %p129
      %p131 = scmp.ne.s32.totalorder %s123, %s125
      %p132 = scmp.eq.s32.totalorder %s31, 1
      %p133 = por %p131, %p132
      %p134 = scmp.ne.s32.totalorder %s125, %s126
      %p135 = scmp.eq.s32.totalorder %s31, 0
      %p136 = por %p134, %p135
      %p137 = scmp.ne.s32.totalorder %s125, %s126
      %p138 = scmp.eq.s32.totalorder %s32, 1
      %p139 = por %p137, %p138
      %p141 = scmp.ne.s32.totalorder %s126, %s140
      %p142 = scmp.eq.s32.totalorder %s32, 0
      %p143 = por %p141, %p142
      %s145 = sadd.s32 %s144, 1
      %p148 = scmp.eq.s32.totalorder %s26, 1
      %p149 = scmp.ne.s32.totalorder %s144, %s146
      %p150 = scmp.eq.s32.totalorder %s26, 0
      %p151 = por %p149, %p150
      %p152 = scmp.ne.s32.totalorder %s144, %s146
      %p153 = scmp.eq.s32.totalorder %s31, 1
      %p154 = por %p152, %p153
      %p155 = scmp.ne.s32.totalorder %s146, %s147
      %p156 = scmp.eq.s32.totalorder %s31, 0
      %p157 = por %p155, %p156
      %p158 = scmp.ne.s32.totalorder %s146, %s147
      %p159 = scmp.eq.s32.totalorder %s32, 1
      %p160 = por %p158, %p159
      %p162 = scmp.ne.s32.totalorder %s147, %s161
      %p163 = scmp.eq.s32.totalorder %s32, 0
      %p164 = por %p162, %p163
      %s166 = sadd.s32 %s165, 1
      %p169 = scmp.eq.s32.totalorder %s26, 1
      %p170 = scmp.ne.s32.totalorder %s165, %s167
      %p171 = scmp.eq.s32.totalorder %s26, 0
      %p172 = por %p170, %p171
      %p173 = scmp.ne.s32.totalorder %s165, %s167
      %p174 = scmp.eq.s32.totalorder %s31, 1
      %p175 = por %p173, %p174
      %p176 = scmp.ne.s32.totalorder %s167, %s168
      %p177 = scmp.eq.s32.totalorder %s31, 0
      %p178 = por %p176, %p177
      %p179 = scmp.ne.s32.totalorder %s167, %s168
      %p180 = scmp.eq.s32.totalorder %s32, 1
      %p181 = por %p179, %p180
      %p183 = scmp.ne.s32.totalorder %s168, %s182
      %p184 = scmp.eq.s32.totalorder %s32, 0
      %p185 = por %p183, %p184
      %s187 = sadd.s32 %s186, 1
      %p190 = scmp.eq.s32.totalorder %s26, 1
      %p191 = scmp.ne.s32.totalorder %s186, %s188
      %p192 = scmp.eq.s32.totalorder %s26, 0
      %p193 = por %p191, %p192
      %p194 = scmp.ne.s32.totalorder %s186, %s188
      %p195 = scmp.eq.s32.totalorder %s31, 1
      %p196 = por %p194, %p195
      %p197 = scmp.ne.s32.totalorder %s188, %s189
      %p198 = scmp.eq.s32.totalorder %s31, 0
      %p199 = por %p197, %p198
      %p200 = scmp.ne.s32.totalorder %s188, %s189
      %p201 = scmp.eq.s32.totalorder %s32, 1
      %p202 = por %p200, %p201
      %p204 = scmp.ne.s32.totalorder %s189, %s203
      %p205 = scmp.eq.s32.totalorder %s32, 0
      %p206 = por %p204, %p205
      %s208 = sadd.s32 %s207, 1
      %p211 = scmp.eq.s32.totalorder %s26, 1
      %p212 = scmp.ne.s32.totalorder %s207, %s209
      %p213 = scmp.eq.s32.totalorder %s26, 0
      %p214 = por %p212, %p213
      %p215 = scmp.ne.s32.totalorder %s207, %s209
      %p216 = scmp.eq.s32.totalorder %s31, 1
      %p217 = por %p215, %p216
      %p218 = scmp.ne.s32.totalorder %s209, %s210
      %p219 = scmp.eq.s32.totalorder %s31, 0
      %p220 = por %p218, %p219
      %p221 = scmp.ne.s32.totalorder %s209, %s210
      %p222 = scmp.eq.s32.totalorder %s32, 1
      %p223 = por %p221, %p222
      %p225 = scmp.ne.s32.totalorder %s210, %s224
      %p226 = scmp.eq.s32.totalorder %s32, 0
      %p227 = por %p225, %p226
      %s229 = sadd.s32 %s228, 1
      %p232 = scmp.eq.s32.totalorder %s26, 1
      %p233 = scmp.ne.s32.totalorder %s228, %s230
      %p234 = scmp.eq.s32.totalorder %s26, 0
      %p235 = por %p233, %p234
      %p236 = scmp.ne.s32.totalorder %s228, %s230
      %p237 = scmp.eq.s32.totalorder %s31, 1
      %p238 = por %p236, %p237
      %p239 = scmp.ne.s32.totalorder %s230, %s231
      %p240 = scmp.eq.s32.totalorder %s31, 0
      %p241 = por %p239, %p240
      %p242 = scmp.ne.s32.totalorder %s230, %s231
      %p243 = scmp.eq.s32.totalorder %s32, 1
      %p244 = por %p242, %p243
      %p246 = scmp.ne.s32.totalorder %s231, %s245
      %p247 = scmp.eq.s32.totalorder %s32, 0
      %p248 = por %p246, %p247
      %s250 = sadd.s32 %s249, 1
      %p253 = scmp.eq.s32.totalorder %s26, 1
      %p254 = scmp.ne.s32.totalorder %s249, %s251
      %p255 = scmp.eq.s32.totalorder %s26, 0
      %p256 = por %p254, %p255
      %p257 = scmp.ne.s32.totalorder %s249, %s251
      %p258 = scmp.eq.s32.totalorder %s31, 1
      %p259 = por %p257, %p258
      %p260 = scmp.ne.s32.totalorder %s251, %s252
      %p261 = scmp.eq.s32.totalorder %s31, 0
      %p262 = por %p260, %p261
      %p263 = scmp.ne.s32.totalorder %s251, %s252
      %p264 = scmp.eq.s32.totalorder %s32, 1
      %p265 = por %p263, %p264
      %p267 = scmp.ne.s32.totalorder %s252, %s266
      %p268 = scmp.eq.s32.totalorder %s32, 0
      %p269 = por %p267, %p268
      %s271 = sadd.s32 %s270, 1
      %p274 = scmp.eq.s32.totalorder %s26, 1
      %p275 = scmp.ne.s32.totalorder %s270, %s272
      %p276 = scmp.eq.s32.totalorder %s26, 0
      %p277 = por %p275, %p276
      %p278 = scmp.ne.s32.totalorder %s270, %s272
      %p279 = scmp.eq.s32.totalorder %s31, 1
      %p280 = por %p278, %p279
      %p281 = scmp.ne.s32.totalorder %s272, %s273
      %p282 = scmp.eq.s32.totalorder %s31, 0
      %p283 = por %p281, %p282
      %p284 = scmp.ne.s32.totalorder %s272, %s273
      %p285 = scmp.eq.s32.totalorder %s32, 1
      %p286 = por %p284, %p285
      %p288 = scmp.ne.s32.totalorder %s273, %s287
      %p289 = scmp.eq.s32.totalorder %s32, 0
      %p290 = por %p288, %p289
      %s292 = sadd.s32 %s291, 1
      %p295 = scmp.eq.s32.totalorder %s26, 1
      %p296 = scmp.ne.s32.totalorder %s291, %s293
      %p297 = scmp.eq.s32.totalorder %s26, 0
      %p298 = por %p296, %p297
      %p299 = scmp.ne.s32.totalorder %s291, %s293
      %p300 = scmp.eq.s32.totalorder %s31, 1
      %p301 = por %p299, %p300
      %p302 = scmp.ne.s32.totalorder %s293, %s294
      %p303 = scmp.eq.s32.totalorder %s31, 0
      %p304 = por %p302, %p303
      %p305 = scmp.ne.s32.totalorder %s293, %s294
      %p306 = scmp.eq.s32.totalorder %s32, 1
      %p307 = por %p305, %p306
      %p309 = scmp.ne.s32.totalorder %s294, %s308
      %p310 = scmp.eq.s32.totalorder %s32, 0
      %p311 = por %p309, %p310
      %s313 = sadd.s32 %s312, 1
      %p316 = scmp.eq.s32.totalorder %s26, 1
      %p317 = scmp.ne.s32.totalorder %s312, %s314
      %p318 = scmp.eq.s32.totalorder %s26, 0
      %p319 = por %p317, %p318
      %p320 = scmp.ne.s32.totalorder %s312, %s314
      %p321 = scmp.eq.s32.totalorder %s31, 1
      %p322 = por %p320, %p321
      %p323 = scmp.ne.s32.totalorder %s314, %s315
      %p324 = scmp.eq.s32.totalorder %s31, 0
      %p325 = por %p323, %p324
      %p326 = scmp.ne.s32.totalorder %s314, %s315
      %p327 = scmp.eq.s32.totalorder %s32, 1
      %p328 = por %p326, %p327
      %p330 = scmp.ne.s32.totalorder %s315, %s329
      %p331 = scmp.eq.s32.totalorder %s32, 0
      %p332 = por %p330, %p331
      %s334 = sadd.s32 %s333, 1
      %p337 = scmp.eq.s32.totalorder %s26, 1
      %p338 = scmp.ne.s32.totalorder %s333, %s335
      %p339 = scmp.eq.s32.totalorder %s26, 0
      %p340 = por %p338, %p339
      %p341 = scmp.ne.s32.totalorder %s333, %s335
      %p342 = scmp.eq.s32.totalorder %s31, 1
      %p343 = por %p341, %p342
      %p344 = scmp.ne.s32.totalorder %s335, %s336
      %p345 = scmp.eq.s32.totalorder %s31, 0
      %p346 = por %p344, %p345
      %p347 = scmp.ne.s32.totalorder %s335, %s336
      %p348 = scmp.eq.s32.totalorder %s32, 1
      %p349 = por %p347, %p348
      %p351 = scmp.ne.s32.totalorder %s336, %s350
      %p352 = scmp.eq.s32.totalorder %s32, 0
      %p353 = por %p351, %p352
      %s355 = sadd.s32 %s354, 1
      %p358 = scmp.eq.s32.totalorder %s26, 1
      %p359 = scmp.ne.s32.totalorder %s354, %s356
      %p360 = scmp.eq.s32.totalorder %s26, 0
      %p361 = por %p359, %p360
      %p362 = scmp.ne.s32.totalorder %s354, %s356
      %p363 = scmp.eq.s32.totalorder %s31, 1
      %p364 = por %p362, %p363
      %p365 = scmp.ne.s32.totalorder %s356, %s357
      %p366 = scmp.eq.s32.totalorder %s31, 0
      %p367 = por %p365, %p366
      %p368 = scmp.ne.s32.totalorder %s356, %s357
      %p369 = scmp.eq.s32.totalorder %s32, 1
      %p370 = por %p368, %p369
      %p372 = scmp.ne.s32.totalorder %s357, %s371
      %p373 = scmp.eq.s32.totalorder %s32, 0
      %p374 = por %p372, %p373
      %s376 = sadd.s32 %s375, 1
      %p379 = scmp.eq.s32.totalorder %s26, 1
      %p380 = scmp.ne.s32.totalorder %s375, %s377
      %p381 = scmp.eq.s32.totalorder %s26, 0
      %p382 = por %p380, %p381
      %p383 = scmp.ne.s32.totalorder %s375, %s377
      %p384 = scmp.eq.s32.totalorder %s31, 1
      %p385 = por %p383, %p384
      %p386 = scmp.ne.s32.totalorder %s377, %s378
      %p387 = scmp.eq.s32.totalorder %s31, 0
      %p388 = por %p386, %p387
      %p389 = scmp.ne.s32.totalorder %s377, %s378
      %p390 = scmp.eq.s32.totalorder %s32, 1
      %p391 = por %p389, %p390
      %p393 = scmp.ne.s32.totalorder %s378, %s392
      %p394 = scmp.eq.s32.totalorder %s32, 0
      %p395 = por %p393, %p394
      %s396 = ssub.s32 %s26, %s33
      %p397 = scmp.eq.s32.totalorder %s396, 0
      %s399 = sadd.s32 %s398, 1
      %s400 = scalar_select %p397, %s398, %s399
      %p403 = pneg %p397
      %p404 = scmp.eq.s32.totalorder %s26, 1
      %p405 = por %p403, %p404
      %p406 = scmp.ne.s32.totalorder %s398, %s401
      %p407 = scmp.eq.s32.totalorder %s26, 0
      %p408 = por %p406, %p407
      %p409 = scmp.ne.s32.totalorder %s398, %s401
      %p410 = scmp.eq.s32.totalorder %s31, 1
      %p411 = por %p409, %p410
      %p412 = scmp.ne.s32.totalorder %s401, %s402
      %p413 = scmp.eq.s32.totalorder %s31, 0
      %p414 = por %p412, %p413
      %p415 = scmp.ne.s32.totalorder %s401, %s402
      %p416 = scmp.eq.s32.totalorder %s32, 1
      %p417 = por %p415, %p416
      %p419 = scmp.ne.s32.totalorder %s402, %s418
      %p420 = scmp.eq.s32.totalorder %s32, 0
      %p421 = por %p419, %p420
      %p422 = scmp.le.s32.totalorder 1, %s26
      %p423 = scmp.lt.s32.totalorder %s26, 3
      %p424 = pnand %p422, %p423
      %p425 = pneg %p424
      // Predicated region
      $region9: #{tpu_custom_call.1} parent=5 // pred_check
        _
      $region10: #{tpu_custom_call.1} parent=5 // pred_check_branch
        %427 = sbr.rel (%p424) target = $region12
      $region11: #{tpu_custom_call.1} parent=5 // pred_region
        %s428 = ssub.s32 %s26, 1
        // Predicated region
        $region13: #{tpu_custom_call.1} parent=11 // pred_check
          %p429 = pneg %p73
        $region14: #{tpu_custom_call.1} parent=11 // pred_check_branch
          %431 = sbr.rel (%p429) target = $region16
        $region15: #{tpu_custom_call.1} parent=11 // pred_region
          _
        $region16: #{tpu_custom_call.1} parent=11 // pred_fallthru
          _
        // Predicated region
        $region17: #{tpu_custom_call.1} parent=11 // pred_check
          %p432 = pneg %p94
        $region18: #{tpu_custom_call.1} parent=11 // pred_check_branch
          %434 = sbr.rel (%p432) target = $region20
        $region19: #{tpu_custom_call.1} parent=11 // pred_region
          _
        $region20: #{tpu_custom_call.1} parent=11 // pred_fallthru
          _
        // Predicated region
        $region21: #{tpu_custom_call.1} parent=11 // pred_check
          %p435 = pneg %p115
        $region22: #{tpu_custom_call.1} parent=11 // pred_check_branch
          %437 = sbr.rel (%p435) target = $region24
        $region23: #{tpu_custom_call.1} parent=11 // pred_region
          _
        $region24: #{tpu_custom_call.1} parent=11 // pred_fallthru
          _
        // Predicated region
        $region25: #{tpu_custom_call.1} parent=11 // pred_check
          %p438 = pneg %p136
        $region26: #{tpu_custom_call.1} parent=11 // pred_check_branch
          %440 = sbr.rel (%p438) target = $region28
        $region27: #{tpu_custom_call.1} parent=11 // pred_region
          _
        $region28: #{tpu_custom_call.1} parent=11 // pred_fallthru
          _
        // Predicated region
        $region29: #{tpu_custom_call.1} parent=11 // pred_check
          %p441 = pneg %p157
        $region30: #{tpu_custom_call.1} parent=11 // pred_check_branch
          %443 = sbr.rel (%p441) target = $region32
        $region31: #{tpu_custom_call.1} parent=11 // pred_region
          _
        $region32: #{tpu_custom_call.1} parent=11 // pred_fallthru
          _
        // Predicated region
        $region33: #{tpu_custom_call.1} parent=11 // pred_check
          %p444 = pneg %p178
        $region34: #{tpu_custom_call.1} parent=11 // pred_check_branch
          %446 = sbr.rel (%p444) target = $region36
        $region35: #{tpu_custom_call.1} parent=11 // pred_region
          _
        $region36: #{tpu_custom_call.1} parent=11 // pred_fallthru
          _
        // Predicated region
        $region37: #{tpu_custom_call.1} parent=11 // pred_check
          %p447 = pneg %p199
        $region38: #{tpu_custom_call.1} parent=11 // pred_check_branch
          %449 = sbr.rel (%p447) target = $region40
        $region39: #{tpu_custom_call.1} parent=11 // pred_region
          _
        $region40: #{tpu_custom_call.1} parent=11 // pred_fallthru
          _
        // Predicated region
        $region41: #{tpu_custom_call.1} parent=11 // pred_check
          %p450 = pneg %p220
        $region42: #{tpu_custom_call.1} parent=11 // pred_check_branch
          %452 = sbr.rel (%p450) target = $region44
        $region43: #{tpu_custom_call.1} parent=11 // pred_region
          _
        $region44: #{tpu_custom_call.1} parent=11 // pred_fallthru
          _
        // Predicated region
        $region45: #{tpu_custom_call.1} parent=11 // pred_check
          %p453 = pneg %p241
        $region46: #{tpu_custom_call.1} parent=11 // pred_check_branch
          %455 = sbr.rel (%p453) target = $region48
        $region47: #{tpu_custom_call.1} parent=11 // pred_region
          _
        $region48: #{tpu_custom_call.1} parent=11 // pred_fallthru
          _
        // Predicated region
        $region49: #{tpu_custom_call.1} parent=11 // pred_check
          %p456 = pneg %p262
        $region50: #{tpu_custom_call.1} parent=11 // pred_check_branch
          %458 = sbr.rel (%p456) target = $region52
        $region51: #{tpu_custom_call.1} parent=11 // pred_region
          _
        $region52: #{tpu_custom_call.1} parent=11 // pred_fallthru
          _
        // Predicated region
        $region53: #{tpu_custom_call.1} parent=11 // pred_check
          %p459 = pneg %p283
        $region54: #{tpu_custom_call.1} parent=11 // pred_check_branch
          %461 = sbr.rel (%p459) target = $region56
        $region55: #{tpu_custom_call.1} parent=11 // pred_region
          _
        $region56: #{tpu_custom_call.1} parent=11 // pred_fallthru
          _
        // Predicated region
        $region57: #{tpu_custom_call.1} parent=11 // pred_check
          %p462 = pneg %p304
        $region58: #{tpu_custom_call.1} parent=11 // pred_check_branch
          %464 = sbr.rel (%p462) target = $region60
        $region59: #{tpu_custom_call.1} parent=11 // pred_region
          _
        $region60: #{tpu_custom_call.1} parent=11 // pred_fallthru
          _
        // Predicated region
        $region61: #{tpu_custom_call.1} parent=11 // pred_check
          %p465 = pneg %p325
        $region62: #{tpu_custom_call.1} parent=11 // pred_check_branch
          %467 = sbr.rel (%p465) target = $region64
        $region63: #{tpu_custom_call.1} parent=11 // pred_region
          _
        $region64: #{tpu_custom_call.1} parent=11 // pred_fallthru
          _
        // Predicated region
        $region65: #{tpu_custom_call.1} parent=11 // pred_check
          %p468 = pneg %p346
        $region66: #{tpu_custom_call.1} parent=11 // pred_check_branch
          %470 = sbr.rel (%p468) target = $region68
        $region67: #{tpu_custom_call.1} parent=11 // pred_region
          _
        $region68: #{tpu_custom_call.1} parent=11 // pred_fallthru
          _
        // Predicated region
        $region69: #{tpu_custom_call.1} parent=11 // pred_check
          %p471 = pneg %p367
        $region70: #{tpu_custom_call.1} parent=11 // pred_check_branch
          %473 = sbr.rel (%p471) target = $region72
        $region71: #{tpu_custom_call.1} parent=11 // pred_region
          _
        $region72: #{tpu_custom_call.1} parent=11 // pred_fallthru
          _
        // Predicated region
        $region73: #{tpu_custom_call.1} parent=11 // pred_check
          %p474 = pneg %p388
        $region74: #{tpu_custom_call.1} parent=11 // pred_check_branch
          %476 = sbr.rel (%p474) target = $region76
        $region75: #{tpu_custom_call.1} parent=11 // pred_region
          _
        $region76: #{tpu_custom_call.1} parent=11 // pred_fallthru
          _
      $region12: #{tpu_custom_call.1} parent=5 // pred_fallthru
        _
      %p477 = scmp.lt.s32.totalorder %s26, 2
      // Predicated region
      $region77: #{tpu_custom_call.1} parent=5 // pred_check
        %p478 = pneg %p477
      $region78: #{tpu_custom_call.1} parent=5 // pred_check_branch
        %480 = sbr.rel (%p478) target = $region80
      $region79: #{tpu_custom_call.1} parent=5 // pred_region
        // Predicated region
        $region81: #{tpu_custom_call.1} parent=79 // pred_check
          %p481 = pneg %p46
        $region82: #{tpu_custom_call.1} parent=79 // pred_check_branch
          %483 = sbr.rel (%p481) target = $region84
        $region83: #{tpu_custom_call.1} parent=79 // pred_region
          %p484 = scmp.lt.s32.totalorder %s26, 1
          %s485 = scalar_select %p484, %s26, 1
          %s486 = smul.addr %s485, 8
          %s487 = scalar_lea.vmem %s0, %s486
        $region84: #{tpu_custom_call.1} parent=79 // pred_fallthru
          _
      $region80: #{tpu_custom_call.1} parent=5 // pred_fallthru
        _
      %p488 = scmp.le.s32.totalorder 1, %s26
      %p489 = scmp.lt.s32.totalorder %s26, 3
      %p490 = pnand %p488, %p489
      %p491 = pneg %p490
      // Predicated region
      $region85: #{tpu_custom_call.1} parent=5 // pred_check
        _
      $region86: #{tpu_custom_call.1} parent=5 // pred_check_branch
        %493 = sbr.rel (%p490) target = $region88
      $region87: #{tpu_custom_call.1} parent=5 // pred_region
        %s494 = ssub.s32 %s26, 1
        %p495 = scmp.lt.s32.totalorder %s31, 1
        %s496 = scalar_select %p495, %s31, 1
        %s497 = smul.addr %s496, 8
        %s498 = scalar_lea.vmem %s0, %s497
        %p499 = pneg %p52
        %p500 = pneg %p49
        %p501 = pneg %p73
        %p502 = pneg %p70
        %p503 = pneg %p94
        %p504 = pneg %p91
        %p505 = pneg %p115
        %p506 = pneg %p112
        %p507 = pneg %p136
        %p508 = pneg %p133
        %p509 = pneg %p157
        %p510 = pneg %p154
        %p511 = pneg %p178
        %p512 = pneg %p175
        %p513 = pneg %p199
        %p514 = pneg %p196
        %p515 = pneg %p220
        %p516 = pneg %p217
        %p517 = pneg %p241
        %p518 = pneg %p238
        %p519 = pneg %p262
        %p520 = pneg %p259
        %p521 = pneg %p283
        %p522 = pneg %p280
        %p523 = pneg %p304
        %p524 = pneg %p301
        %p525 = pneg %p325
        %p526 = pneg %p322
        %p527 = pneg %p346
        %p528 = pneg %p343
        %p529 = pneg %p367
        %p530 = pneg %p364
        %p531 = pneg %p388
        %p532 = pneg %p385
        %p533 = pneg %p414
        %p534 = pneg %p411
        %s535 = sand.u32 %s401, 1
        %s536 = scalar_lea.sflag [#allocation3], %s535
        %s537 = sand.u32 %s401, 1
        %s538 = smul.addr %s537, 8
        %s539 = scalar_lea.vmem [#allocation2], %s538
        %p540 = scmp.lt.s32.totalorder %s31, 1
        %s541 = scalar_select %p540, %s31, 1
        %s542 = smul.addr %s541, 8
        %s543 = scalar_lea.vmem %s0, %s542
        %v545 = vld [vmem:[%s543] sm:$0xff]
        %v546 = vlaneseq
        %v547 = vand.u32 %v546, 127
        %vm548 = vcmp.lt.s32.totalorder %v547, 32
        %v549 = vsel %vm548, 1, 0
        %v550 = vcvt.s32.f32 %v549
        %v551 = vld [vmem:[%s1] sm:$0x1]
        %v552 = vld [vmem:[%s2] sm:$0x1]
        %v553 = vmul.f32 %v545, %v550
        %554 = vadd.xlane.f32.xlu0 %v553
        %v555 = vpop.xlane.xlu0 %554
        %v556 = vmul.f32 %v555, 0.03125
        %v557 = vsub.f32 %v545, %v556
        %v558 = vmul.f32 %v557, %v550
        %v559 = vmul.f32 %v558, %v558
        %560 = vadd.xlane.f32.xlu0 %v559
        %v561 = vpop.xlane.xlu0 %560
        %v562 = vmul.f32 %v561, 0.03125
        %v563 = vadd.f32 %v562, 1e-05
        %v564 = vrsqrt.pop %v563
        %v565 = vmul.f32 %v558, %v564
        %v567 = vlaneseq
        %v568 = vshrl.u32 %v567, 7
        %v569 = vsub.s32 0, %v568
        %v570 = vrot.slane %v551, %v569
        %v572 = vmul.f32 %v565, %v570
        %v574 = vlaneseq
        %v575 = vshrl.u32 %v574, 7
        %v576 = vsub.s32 0, %v575
        %v577 = vrot.slane %v552, %v576
        %v579 = vadd.f32 %v572, %v577
        %v580 = vpack.c.bf16 %v579, %v579
        %v581 = vld [vmem:[%s3] sm:$0xf]
        %v582 = vld [vmem:[%s3 + $0x4] sm:$0xf]
        %v583 = vld [vmem:[%s3 + $0x8] sm:$0xf]
        %v584 = vld [vmem:[%s3 + $0xc] sm:$0xf]
        %v585 = vld [vmem:[%s3 + $0x10] sm:$0xf]
        %v586 = vld [vmem:[%s3 + $0x14] sm:$0xf]
        %v587 = vld [vmem:[%s3 + $0x18] sm:$0xf]
        %v588 = vld [vmem:[%s3 + $0x1c] sm:$0xf]
        %v589 = vld [vmem:[%s3 + $0x20] sm:$0xf]
        %v590 = vld [vmem:[%s3 + $0x24] sm:$0xf]
        %v591 = vld [vmem:[%s3 + $0x28] sm:$0xf]
        %v592 = vld [vmem:[%s3 + $0x2c] sm:$0xf]
        %v593 = vld [vmem:[%s3 + $0x30] sm:$0xf]
        %v594 = vld [vmem:[%s3 + $0x34] sm:$0xf]
        %v595 = vld [vmem:[%s3 + $0x38] sm:$0xf]
        %v596 = vld [vmem:[%s3 + $0x3c] sm:$0xf]
        %v597 = vld [vmem:[%s4] sm:$0x1]
        %v599 = vlaneseq
        %v600 = vshrl.u32 %v599, 7
        %v601 = vsub.s32 0, %v600
        %v602 = vrot.slane %v597, %v601
        %v620 = vunpack.c.l.b16 %v581
        %v621 = vunpack.c.l.b16 %v582
        %v622 = vunpack.c.l.b16 %v583
        %v623 = vunpack.c.l.b16 %v584
        %v624 = vunpack.c.l.b16 %v585
        %v625 = vunpack.c.l.b16 %v586
        %v626 = vunpack.c.l.b16 %v587
        %v627 = vunpack.c.l.b16 %v588
        %v628 = vunpack.c.l.b16 %v589
        %v629 = vunpack.c.l.b16 %v590
        %v630 = vunpack.c.l.b16 %v591
        %v631 = vunpack.c.l.b16 %v592
        %v632 = vunpack.c.l.b16 %v593
        %v633 = vunpack.c.l.b16 %v594
        %v634 = vunpack.c.l.b16 %v595
        %v635 = vunpack.c.l.b16 %v596
        %v636 = vpack.c.b16 %v621, %v620
        %v637 = vpack.c.b16 %v623, %v622
        %v638 = vpack.c.b16 %v625, %v624
        %v639 = vpack.c.b16 %v627, %v626
        %v640 = vpack.c.b16 %v629, %v628
        %v641 = vpack.c.b16 %v631, %v630
        %v642 = vpack.c.b16 %v633, %v632
        %v643 = vpack.c.b16 %v635, %v634
        %652 = vmatprep.subr.bf16.mxu0 0
        %653 = vmatpush1.bf16.msra.mxu0 %v643
        %654 = vmatprep.subr.bf16.mxu0 0
        %655 = vmatpush1.bf16.msra.mxu0 %v642
        %656 = vmatprep.subr.bf16.mxu0 0
        %657 = vmatpush1.bf16.msra.mxu0 %v641
        %658 = vmatprep.subr.bf16.mxu0 0
        %659 = vmatpush1.bf16.msra.mxu0 %v640
        %660 = vmatprep.subr.bf16.mxu0 0
        %661 = vmatpush1.bf16.msra.mxu0 %v639
        %662 = vmatprep.subr.bf16.mxu0 0
        %663 = vmatpush1.bf16.msra.mxu0 %v638
        %664 = vmatprep.subr.bf16.mxu0 0
        %665 = vmatpush1.bf16.msra.mxu0 %v637
        %666 = vmatprep.subr.bf16.mxu0 0
        %667 = vmatpush1.bf16.msra.mxu0 %v636
        %668 = vmatprep.subr.bf16.mxu0 0
        %669 = vmatpush2.bf16.msra.mxu0 0
        %670 = vmatprep.subr.bf16.mxu0 0
        %671 = vmatpush2.bf16.msra.mxu0 0
        %672 = vmatprep.subr.bf16.mxu0 0
        %673 = vmatpush2.bf16.msra.mxu0 0
        %674 = vmatprep.subr.bf16.mxu0 0
        %675 = vmatpush2.bf16.msra.mxu0 0
        %676 = vmatprep.subr.bf16.mxu0 0
        %677 = vmatpush2.bf16.msra.mxu0 0
        %678 = vmatprep.subr.bf16.mxu0 0
        %679 = vmatpush2.bf16.msra.mxu0 0
        %680 = vmatprep.subr.bf16.mxu0 0
        %681 = vmatpush2.bf16.msra.mxu0 0
        %682 = vmatprep.subr.bf16.mxu0 0
        %683 = vmatpush2.bf16.msra.mxu0 0
        %684 = vmatprep.mubr.bf16.mxu0 0
        %685 = vmatmul.mubr.bf16.gmra.mxu0 %v580
        %v686 = vpop.f32.mrf.mxu0
        %v687 = vadd.f32 %v602, %v686
        %v688 = vpop.f32.mrf.mxu0
        %v689 = vpop.f32.mrf.mxu0
        %v690 = vpop.f32.mrf.mxu0
        %691 = vdwg.mxu0
        %v692 = vld [vmem:[%s5] sm:$0xf]
        %v693 = vld [vmem:[%s5 + $0x4] sm:$0xf]
        %v694 = vld [vmem:[%s5 + $0x8] sm:$0xf]
        %v695 = vld [vmem:[%s5 + $0xc] sm:$0xf]
        %v696 = vld [vmem:[%s5 + $0x10] sm:$0xf]
        %v697 = vld [vmem:[%s5 + $0x14] sm:$0xf]
        %v698 = vld [vmem:[%s5 + $0x18] sm:$0xf]
        %v699 = vld [vmem:[%s5 + $0x1c] sm:$0xf]
        %v700 = vld [vmem:[%s5 + $0x20] sm:$0xf]
        %v701 = vld [vmem:[%s5 + $0x24] sm:$0xf]
        %v702 = vld [vmem:[%s5 + $0x28] sm:$0xf]
        %v703 = vld [vmem:[%s5 + $0x2c] sm:$0xf]
        %v704 = vld [vmem:[%s5 + $0x30] sm:$0xf]
        %v705 = vld [vmem:[%s5 + $0x34] sm:$0xf]
        %v706 = vld [vmem:[%s5 + $0x38] sm:$0xf]
        %v707 = vld [vmem:[%s5 + $0x3c] sm:$0xf]
        %v708 = vld [vmem:[%s6] sm:$0x1]
        %v710 = vlaneseq
        %v711 = vshrl.u32 %v710, 7
        %v712 = vsub.s32 0, %v711
        %v713 = vrot.slane %v708, %v712
        %v731 = vunpack.c.l.b16 %v692
        %v732 = vunpack.c.l.b16 %v693
        %v733 = vunpack.c.l.b16 %v694
        %v734 = vunpack.c.l.b16 %v695
        %v735 = vunpack.c.l.b16 %v696
        %v736 = vunpack.c.l.b16 %v697
        %v737 = vunpack.c.l.b16 %v698
        %v738 = vunpack.c.l.b16 %v699
        %v739 = vunpack.c.l.b16 %v700
        %v740 = vunpack.c.l.b16 %v701
        %v741 = vunpack.c.l.b16 %v702
        %v742 = vunpack.c.l.b16 %v703
        %v743 = vunpack.c.l.b16 %v704
        %v744 = vunpack.c.l.b16 %v705
        %v745 = vunpack.c.l.b16 %v706
        %v746 = vunpack.c.l.b16 %v707
        %v747 = vpack.c.b16 %v732, %v731
        %v748 = vpack.c.b16 %v734, %v733
        %v749 = vpack.c.b16 %v736, %v735
        %v750 = vpack.c.b16 %v738, %v737
        %v751 = vpack.c.b16 %v740, %v739
        %v752 = vpack.c.b16 %v742, %v741
        %v753 = vpack.c.b16 %v744, %v743
        %v754 = vpack.c.b16 %v746, %v745
        %763 = vmatprep.subr.bf16.mxu0 0
        %764 = vmatpush1.bf16.msra.mxu0 %v754
        %765 = vmatprep.subr.bf16.mxu0 0
        %766 = vmatpush1.bf16.msra.mxu0 %v753
        %767 = vmatprep.subr.bf16.mxu0 0
        %768 = vmatpush1.bf16.msra.mxu0 %v752
        %769 = vmatprep.subr.bf16.mxu0 0
        %770 = vmatpush1.bf16.msra.mxu0 %v751
        %771 = vmatprep.subr.bf16.mxu0 0
        %772 = vmatpush1.bf16.msra.mxu0 %v750
        %773 = vmatprep.subr.bf16.mxu0 0
        %774 = vmatpush1.bf16.msra.mxu0 %v749
        %775 = vmatprep.subr.bf16.mxu0 0
        %776 = vmatpush1.bf16.msra.mxu0 %v748
        %777 = vmatprep.subr.bf16.mxu0 0
        %778 = vmatpush1.bf16.msra.mxu0 %v747
        %779 = vmatprep.subr.bf16.mxu0 0
        %780 = vmatpush2.bf16.msra.mxu0 0
        %781 = vmatprep.subr.bf16.mxu0 0
        %782 = vmatpush2.bf16.msra.mxu0 0
        %783 = vmatprep.subr.bf16.mxu0 0
        %784 = vmatpush2.bf16.msra.mxu0 0
        %785 = vmatprep.subr.bf16.mxu0 0
        %786 = vmatpush2.bf16.msra.mxu0 0
        %787 = vmatprep.subr.bf16.mxu0 0
        %788 = vmatpush2.bf16.msra.mxu0 0
        %789 = vmatprep.subr.bf16.mxu0 0
        %790 = vmatpush2.bf16.msra.mxu0 0
        %791 = vmatprep.subr.bf16.mxu0 0
        %792 = vmatpush2.bf16.msra.mxu0 0
        %793 = vmatprep.subr.bf16.mxu0 0
        %794 = vmatpush2.bf16.msra.mxu0 0
        %795 = vmatprep.mubr.bf16.mxu0 0
        %796 = vmatmul.mubr.bf16.gmra.mxu0 %v580
        %v797 = vpop.f32.mrf.mxu0
        %v798 = vadd.f32 %v713, %v797
        %v799 = vpop.f32.mrf.mxu0
        %v800 = vpop.f32.mrf.mxu0
        %v801 = vpop.f32.mrf.mxu0
        %802 = vdwg.mxu0
        %v803 = vld [vmem:[%s7] sm:$0xf]
        %v804 = vld [vmem:[%s7 + $0x4] sm:$0xf]
        %v805 = vld [vmem:[%s7 + $0x8] sm:$0xf]
        %v806 = vld [vmem:[%s7 + $0xc] sm:$0xf]
        %v807 = vld [vmem:[%s7 + $0x10] sm:$0xf]
        %v808 = vld [vmem:[%s7 + $0x14] sm:$0xf]
        %v809 = vld [vmem:[%s7 + $0x18] sm:$0xf]
        %v810 = vld [vmem:[%s7 + $0x1c] sm:$0xf]
        %v811 = vld [vmem:[%s7 + $0x20] sm:$0xf]
        %v812 = vld [vmem:[%s7 + $0x24] sm:$0xf]
        %v813 = vld [vmem:[%s7 + $0x28] sm:$0xf]
        %v814 = vld [vmem:[%s7 + $0x2c] sm:$0xf]
        %v815 = vld [vmem:[%s7 + $0x30] sm:$0xf]
        %v816 = vld [vmem:[%s7 + $0x34] sm:$0xf]
        %v817 = vld [vmem:[%s7 + $0x38] sm:$0xf]
        %v818 = vld [vmem:[%s7 + $0x3c] sm:$0xf]
        %v819 = vld [vmem:[%s8] sm:$0x1]
        %v821 = vlaneseq
        %v822 = vshrl.u32 %v821, 7
        %v823 = vsub.s32 0, %v822
        %v824 = vrot.slane %v819, %v823
        %v842 = vunpack.c.l.b16 %v803
        %v843 = vunpack.c.l.b16 %v804
        %v844 = vunpack.c.l.b16 %v805
        %v845 = vunpack.c.l.b16 %v806
        %v846 = vunpack.c.l.b16 %v807
        %v847 = vunpack.c.l.b16 %v808
        %v848 = vunpack.c.l.b16 %v809
        %v849 = vunpack.c.l.b16 %v810
        %v850 = vunpack.c.l.b16 %v811
        %v851 = vunpack.c.l.b16 %v812
        %v852 = vunpack.c.l.b16 %v813
        %v853 = vunpack.c.l.b16 %v814
        %v854 = vunpack.c.l.b16 %v815
        %v855 = vunpack.c.l.b16 %v816
        %v856 = vunpack.c.l.b16 %v817
        %v857 = vunpack.c.l.b16 %v818
        %v858 = vpack.c.b16 %v843, %v842
        %v859 = vpack.c.b16 %v845, %v844
        %v860 = vpack.c.b16 %v847, %v846
        %v861 = vpack.c.b16 %v849, %v848
        %v862 = vpack.c.b16 %v851, %v850
        %v863 = vpack.c.b16 %v853, %v852
        %v864 = vpack.c.b16 %v855, %v854
        %v865 = vpack.c.b16 %v857, %v856
        %874 = vmatprep.subr.bf16.mxu0 0
        %875 = vmatpush1.bf16.msra.mxu0 %v865
        %876 = vmatprep.subr.bf16.mxu0 0
        %877 = vmatpush1.bf16.msra.mxu0 %v864
        %878 = vmatprep.subr.bf16.mxu0 0
        %879 = vmatpush1.bf16.msra.mxu0 %v863
        %880 = vmatprep.subr.bf16.mxu0 0
        %881 = vmatpush1.bf16.msra.mxu0 %v862
        %882 = vmatprep.subr.bf16.mxu0 0
        %883 = vmatpush1.bf16.msra.mxu0 %v861
        %884 = vmatprep.subr.bf16.mxu0 0
        %885 = vmatpush1.bf16.msra.mxu0 %v860
        %886 = vmatprep.subr.bf16.mxu0 0
        %887 = vmatpush1.bf16.msra.mxu0 %v859
        %888 = vmatprep.subr.bf16.mxu0 0
        %889 = vmatpush1.bf16.msra.mxu0 %v858
        %890 = vmatprep.subr.bf16.mxu0 0
        %891 = vmatpush2.bf16.msra.mxu0 0
        %892 = vmatprep.subr.bf16.mxu0 0
        %893 = vmatpush2.bf16.msra.mxu0 0
        %894 = vmatprep.subr.bf16.mxu0 0
        %895 = vmatpush2.bf16.msra.mxu0 0
        %896 = vmatprep.subr.bf16.mxu0 0
        %897 = vmatpush2.bf16.msra.mxu0 0
        %898 = vmatprep.subr.bf16.mxu0 0
        %899 = vmatpush2.bf16.msra.mxu0 0
        %900 = vmatprep.subr.bf16.mxu0 0
        %901 = vmatpush2.bf16.msra.mxu0 0
        %902 = vmatprep.subr.bf16.mxu0 0
        %903 = vmatpush2.bf16.msra.mxu0 0
        %904 = vmatprep.subr.bf16.mxu0 0
        %905 = vmatpush2.bf16.msra.mxu0 0
        %906 = vmatprep.mubr.bf16.mxu0 0
        %907 = vmatmul.mubr.bf16.gmra.mxu0 %v580
        %v908 = vpop.f32.mrf.mxu0
        %v909 = vadd.f32 %v824, %v908
        %v910 = vpop.f32.mrf.mxu0
        %v911 = vpop.f32.mrf.mxu0
        %v912 = vpop.f32.mrf.mxu0
        %913 = vdwg.mxu0
        %v914 = vpack.c.bf16 %v687, %v687
        %v915 = vpack.c.bf16 %v798, %v798
        %v916 = vpack.c.bf16 %v909, %v909
        %vm917 = vcmask 64512
        %v919 = vsel %vm917, %v914, 0
        %v922 = vsel %vm917, %v915, 0
        %924 = vmatprep.subr.bf16.mxu0 0
        %925 = vmatpush1.bf16.xpose.msra.mxu0 0
        %926 = vmatprep.subr.bf16.mxu0 0
        %927 = vmatpush1.bf16.xpose.msra.mxu0 0
        %928 = vmatprep.subr.bf16.mxu0 0
        %929 = vmatpush1.bf16.xpose.msra.mxu0 0
        %930 = vmatprep.subr.bf16.mxu0 0
        %931 = vmatpush1.bf16.xpose.msra.mxu0 0
        %932 = vmatprep.subr.bf16.mxu0 0
        %933 = vmatpush1.bf16.xpose.msra.mxu0 0
        %934 = vmatprep.subr.bf16.mxu0 0
        %935 = vmatpush1.bf16.xpose.msra.mxu0 0
        %936 = vmatprep.subr.bf16.mxu0 0
        %937 = vmatpush1.bf16.xpose.msra.mxu0 0
        %938 = vmatprep.subr.bf16.mxu0 0
        %939 = vmatpush1.bf16.xpose.msra.mxu0 %v922
        %940 = vmatprep.subr.bf16.mxu0 0
        %941 = vmatpush2.bf16.xpose.msra.mxu0 0
        %942 = vmatprep.subr.bf16.mxu0 0
        %943 = vmatpush2.bf16.xpose.msra.mxu0 0
        %944 = vmatprep.subr.bf16.mxu0 0
        %945 = vmatpush2.bf16.xpose.msra.mxu0 0
        %946 = vmatprep.subr.bf16.mxu0 0
        %947 = vmatpush2.bf16.xpose.msra.mxu0 0
        %948 = vmatprep.subr.bf16.mxu0 0
        %949 = vmatpush2.bf16.xpose.msra.mxu0 0
        %950 = vmatprep.subr.bf16.mxu0 0
        %951 = vmatpush2.bf16.xpose.msra.mxu0 0
        %952 = vmatprep.subr.bf16.mxu0 0
        %953 = vmatpush2.bf16.xpose.msra.mxu0 0
        %954 = vmatprep.subr.bf16.mxu0 0
        %955 = vmatpush2.bf16.xpose.msra.mxu0 0
        %956 = vmatprep.mubr.bf16.mxu0 0
        %957 = vmatmul.mubr.bf16.gmra.mxu0 %v919
        %v958 = vpop.f32.mrf.mxu0
        %v959 = vadd.f32 0.0, %v958
        %v960 = vpop.f32.mrf.mxu0
        %v961 = vpop.f32.mrf.mxu0
        %v962 = vpop.f32.mrf.mxu0
        %963 = vdwg.mxu0
        %v964 = vsel %vm917, %v959, -inf
        %965 = vmax.xlane.f32.xlu0 %v964
        %v966 = vpop.xlane.xlu0 %965
        %v967 = vsub.f32 %v959, %v966
        %v968 = vmul.f32 %v967, 1.442695
        %v969 = vpow.pop %v968
        %v970 = vsel %vm917, %v969, 0.0
        %971 = vadd.xlane.f32.xlu0 %v970
        %v972 = vpop.xlane.xlu0 %971
        %v973 = vpack.c.bf16 %v969, %v969
        %v975 = vsel %vm917, %v973, 0
        %vm977 = vcmask 1043456
        %v979 = vsel %vm977, %v916, 0
        %981 = vmatprep.subr.bf16.mxu0 0
        %982 = vmatpush1.bf16.msra.mxu0 0
        %983 = vmatprep.subr.bf16.mxu0 0
        %984 = vmatpush1.bf16.msra.mxu0 0
        %985 = vmatprep.subr.bf16.mxu0 0
        %986 = vmatpush1.bf16.msra.mxu0 0
        %987 = vmatprep.subr.bf16.mxu0 0
        %988 = vmatpush1.bf16.msra.mxu0 0
        %989 = vmatprep.subr.bf16.mxu0 0
        %990 = vmatpush1.bf16.msra.mxu0 0
        %991 = vmatprep.subr.bf16.mxu0 0
        %992 = vmatpush1.bf16.msra.mxu0 0
        %993 = vmatprep.subr.bf16.mxu0 0
        %994 = vmatpush1.bf16.msra.mxu0 0
        %995 = vmatprep.subr.bf16.mxu0 0
        %996 = vmatpush1.bf16.msra.mxu0 %v979
        %997 = vmatprep.subr.bf16.mxu0 0
        %998 = vmatpush2.bf16.msra.mxu0 0
        %999 = vmatprep.subr.bf16.mxu0 0
        %1000 = vmatpush2.bf16.msra.mxu0 0
        %1001 = vmatprep.subr.bf16.mxu0 0
        %1002 = vmatpush2.bf16.msra.mxu0 0
        %1003 = vmatprep.subr.bf16.mxu0 0
        %1004 = vmatpush2.bf16.msra.mxu0 0
        %1005 = vmatprep.subr.bf16.mxu0 0
        %1006 = vmatpush2.bf16.msra.mxu0 0
        %1007 = vmatprep.subr.bf16.mxu0 0
        %1008 = vmatpush2.bf16.msra.mxu0 0
        %1009 = vmatprep.subr.bf16.mxu0 0
        %1010 = vmatpush2.bf16.msra.mxu0 0
        %1011 = vmatprep.subr.bf16.mxu0 0
        %1012 = vmatpush2.bf16.msra.mxu0 0
        %1013 = vmatprep.mubr.bf16.mxu0 0
        %1014 = vmatmul.mubr.bf16.gmra.mxu0 %v975
        %v1015 = vpop.f32.mrf.mxu0
        %v1016 = vadd.f32 0.0, %v1015
        %v1017 = vpop.f32.mrf.mxu0
        %v1018 = vpop.f32.mrf.mxu0
        %v1019 = vpop.f32.mrf.mxu0
        %1020 = vdwg.mxu0
        %v1021 = vrcp.pop %v972
        %v1022 = vmul.f32 %v1016, %v1021
        %v1023 = vpack.c.bf16 %v1022, %v1022
        %v1024 = vld [vmem:[%s9] sm:$0xf]
        %1026 = vrot.lane.b32.xlu0 %v914, 120
        %v1027 = vpop.permute.xlu0 %1026
        %1029 = vrot.lane.b32.xlu0 %v915, 120
        %v1030 = vpop.permute.xlu0 %1029
        %v1032 = vsel %vm917, %v1027, 0
        %v1035 = vsel %vm917, %v1030, 0
        %1037 = vmatprep.subr.bf16.mxu0 0
        %1038 = vmatpush1.bf16.xpose.msra.mxu0 0
        %1039 = vmatprep.subr.bf16.mxu0 0
        %1040 = vmatpush1.bf16.xpose.msra.mxu0 0
        %1041 = vmatprep.subr.bf16.mxu0 0
        %1042 = vmatpush1.bf16.xpose.msra.mxu0 0
        %1043 = vmatprep.subr.bf16.mxu0 0
        %1044 = vmatpush1.bf16.xpose.msra.mxu0 0
        %1045 = vmatprep.subr.bf16.mxu0 0
        %1046 = vmatpush1.bf16.xpose.msra.mxu0 0
        %1047 = vmatprep.subr.bf16.mxu0 0
        %1048 = vmatpush1.bf16.xpose.msra.mxu0 0
        %1049 = vmatprep.subr.bf16.mxu0 0
        %1050 = vmatpush1.bf16.xpose.msra.mxu0 0
        %1051 = vmatprep.subr.bf16.mxu0 0
        %1052 = vmatpush1.bf16.xpose.msra.mxu0 %v1035
        %1053 = vmatprep.subr.bf16.mxu0 0
        %1054 = vmatpush2.bf16.xpose.msra.mxu0 0
        %1055 = vmatprep.subr.bf16.mxu0 0
        %1056 = vmatpush2.bf16.xpose.msra.mxu0 0
        %1057 = vmatprep.subr.bf16.mxu0 0
        %1058 = vmatpush2.bf16.xpose.msra.mxu0 0
        %1059 = vmatprep.subr.bf16.mxu0 0
        %1060 = vmatpush2.bf16.xpose.msra.mxu0 0
        %1061 = vmatprep.subr.bf16.mxu0 0
        %1062 = vmatpush2.bf16.xpose.msra.mxu0 0
        %1063 = vmatprep.subr.bf16.mxu0 0
        %1064 = vmatpush2.bf16.xpose.msra.mxu0 0
        %1065 = vmatprep.subr.bf16.mxu0 0
        %1066 = vmatpush2.bf16.xpose.msra.mxu0 0
        %1067 = vmatprep.subr.bf16.mxu0 0
        %1068 = vmatpush2.bf16.xpose.msra.mxu0 0
        %1069 = vmatprep.mubr.bf16.mxu0 0
        %1070 = vmatmul.mubr.bf16.gmra.mxu0 %v1032
        %v1071 = vpop.f32.mrf.mxu0
        %v1072 = vadd.f32 0.0, %v1071
        %v1073 = vpop.f32.mrf.mxu0
        %v1074 = vpop.f32.mrf.mxu0
        %v1075 = vpop.f32.mrf.mxu0
        %1076 = vdwg.mxu0
        %v1077 = vsel %vm917, %v1072, -inf
        %1078 = vmax.xlane.f32.xlu0 %v1077
        %v1079 = vpop.xlane.xlu0 %1078
        %v1080 = vsub.f32 %v1072, %v1079
        %v1081 = vmul.f32 %v1080, 1.442695
        %v1082 = vpow.pop %v1081
        %v1083 = vsel %vm917, %v1082, 0.0
        %1084 = vadd.xlane.f32.xlu0 %v1083
        %v1085 = vpop.xlane.xlu0 %1084
        %v1086 = vpack.c.bf16 %v1082, %v1082
        %1088 = vrot.lane.b32.xlu0 %v916, 120
        %v1089 = vpop.permute.xlu0 %1088
        %v1091 = vsel %vm917, %v1086, 0
        %v1094 = vsel %vm977, %v1089, 0
        %1096 = vmatprep.subr.bf16.mxu0 0
        %1097 = vmatpush1.bf16.msra.mxu0 0
        %1098 = vmatprep.subr.bf16.mxu0 0
        %1099 = vmatpush1.bf16.msra.mxu0 0
        %1100 = vmatprep.subr.bf16.mxu0 0
        %1101 = vmatpush1.bf16.msra.mxu0 0
        %1102 = vmatprep.subr.bf16.mxu0 0
        %1103 = vmatpush1.bf16.msra.mxu0 0
        %1104 = vmatprep.subr.bf16.mxu0 0
        %1105 = vmatpush1.bf16.msra.mxu0 0
        %1106 = vmatprep.subr.bf16.mxu0 0
        %1107 = vmatpush1.bf16.msra.mxu0 0
        %1108 = vmatprep.subr.bf16.mxu0 0
        %1109 = vmatpush1.bf16.msra.mxu0 0
        %1110 = vmatprep.subr.bf16.mxu0 0
        %1111 = vmatpush1.bf16.msra.mxu0 %v1094
        %1112 = vmatprep.subr.bf16.mxu0 0
        %1113 = vmatpush2.bf16.msra.mxu0 0
        %1114 = vmatprep.subr.bf16.mxu0 0
        %1115 = vmatpush2.bf16.msra.mxu0 0
        %1116 = vmatprep.subr.bf16.mxu0 0
        %1117 = vmatpush2.bf16.msra.mxu0 0
        %1118 = vmatprep.subr.bf16.mxu0 0
        %1119 = vmatpush2.bf16.msra.mxu0 0
        %1120 = vmatprep.subr.bf16.mxu0 0
        %1121 = vmatpush2.bf16.msra.mxu0 0
        %1122 = vmatprep.subr.bf16.mxu0 0
        %1123 = vmatpush2.bf16.msra.mxu0 0
        %1124 = vmatprep.subr.bf16.mxu0 0
        %1125 = vmatpush2.bf16.msra.mxu0 0
        %1126 = vmatprep.subr.bf16.mxu0 0
        %1127 = vmatpush2.bf16.msra.mxu0 0
        %1128 = vmatprep.mubr.bf16.mxu0 0
        %1129 = vmatmul.mubr.bf16.gmra.mxu0 %v1091
        %v1130 = vpop.f32.mrf.mxu0
        %v1131 = vadd.f32 0.0, %v1130
        %v1132 = vpop.f32.mrf.mxu0
        %v1133 = vpop.f32.mrf.mxu0
        %v1134 = vpop.f32.mrf.mxu0
        %1135 = vdwg.mxu0
        %v1136 = vrcp.pop %v1085
        %v1137 = vmul.f32 %v1131, %v1136
        %v1138 = vpack.c.bf16 %v1137, %v1137
        %s1139 = scalar_lea.vmem %s9, 4
        %v1140 = vld [vmem:[%s1139] sm:$0xf]
        %v1142 = vsel %vm917, %v1138, 0
        %v1145 = vsel %vm977, %v1140, 0
        %1147 = vmatprep.subr.bf16.mxu0 0
        %1148 = vmatpush1.bf16.msra.mxu0 0
        %1149 = vmatprep.subr.bf16.mxu0 0
        %1150 = vmatpush1.bf16.msra.mxu0 0
        %1151 = vmatprep.subr.bf16.mxu0 0
        %1152 = vmatpush1.bf16.msra.mxu0 0
        %1153 = vmatprep.subr.bf16.mxu0 0
        %1154 = vmatpush1.bf16.msra.mxu0 0
        %1155 = vmatprep.subr.bf16.mxu0 0
        %1156 = vmatpush1.bf16.msra.mxu0 0
        %1157 = vmatprep.subr.bf16.mxu0 0
        %1158 = vmatpush1.bf16.msra.mxu0 0
        %1159 = vmatprep.subr.bf16.mxu0 0
        %1160 = vmatpush1.bf16.msra.mxu0 0
        %1161 = vmatprep.subr.bf16.mxu0 0
        %1162 = vmatpush1.bf16.msra.mxu0 %v1145
        %1163 = vmatprep.subr.bf16.mxu0 0
        %1164 = vmatpush2.bf16.msra.mxu0 0
        %1165 = vmatprep.subr.bf16.mxu0 0
        %1166 = vmatpush2.bf16.msra.mxu0 0
        %1167 = vmatprep.subr.bf16.mxu0 0
        %1168 = vmatpush2.bf16.msra.mxu0 0
        %1169 = vmatprep.subr.bf16.mxu0 0
        %1170 = vmatpush2.bf16.msra.mxu0 0
        %1171 = vmatprep.subr.bf16.mxu0 0
        %1172 = vmatpush2.bf16.msra.mxu0 0
        %1173 = vmatprep.subr.bf16.mxu0 0
        %1174 = vmatpush2.bf16.msra.mxu0 0
        %1175 = vmatprep.subr.bf16.mxu0 0
        %1176 = vmatpush2.bf16.msra.mxu0 0
        %1177 = vmatprep.subr.bf16.mxu0 0
        %1178 = vmatpush2.bf16.msra.mxu0 0
        %1179 = vmatprep.mubr.bf16.mxu0 0
        %1180 = vmatmul.mubr.bf16.gmra.mxu0 %v1142
        %v1181 = vpop.f32.mrf.mxu0
        %v1182 = vadd.f32 0.0, %v1181
        %v1183 = vpop.f32.mrf.mxu0
        %v1184 = vpop.f32.mrf.mxu0
        %v1185 = vpop.f32.mrf.mxu0
        %1186 = vdwg.mxu0
        %v1188 = vsel %vm917, %v1023, 0
        %v1191 = vsel %vm977, %v1024, 0
        %1193 = vmatprep.subr.bf16.mxu0 0
        %1194 = vmatpush1.bf16.msra.mxu0 0
        %1195 = vmatprep.subr.bf16.mxu0 0
        %1196 = vmatpush1.bf16.msra.mxu0 0
        %1197 = vmatprep.subr.bf16.mxu0 0
        %1198 = vmatpush1.bf16.msra.mxu0 0
        %1199 = vmatprep.subr.bf16.mxu0 0
        %1200 = vmatpush1.bf16.msra.mxu0 0
        %1201 = vmatprep.subr.bf16.mxu0 0
        %1202 = vmatpush1.bf16.msra.mxu0 0
        %1203 = vmatprep.subr.bf16.mxu0 0
        %1204 = vmatpush1.bf16.msra.mxu0 0
        %1205 = vmatprep.subr.bf16.mxu0 0
        %1206 = vmatpush1.bf16.msra.mxu0 0
        %1207 = vmatprep.subr.bf16.mxu0 0
        %1208 = vmatpush1.bf16.msra.mxu0 %v1191
        %1209 = vmatprep.subr.bf16.mxu0 0
        %1210 = vmatpush2.bf16.msra.mxu0 0
        %1211 = vmatprep.subr.bf16.mxu0 0
        %1212 = vmatpush2.bf16.msra.mxu0 0
        %1213 = vmatprep.subr.bf16.mxu0 0
        %1214 = vmatpush2.bf16.msra.mxu0 0
        %1215 = vmatprep.subr.bf16.mxu0 0
        %1216 = vmatpush2.bf16.msra.mxu0 0
        %1217 = vmatprep.subr.bf16.mxu0 0
        %1218 = vmatpush2.bf16.msra.mxu0 0
        %1219 = vmatprep.subr.bf16.mxu0 0
        %1220 = vmatpush2.bf16.msra.mxu0 0
        %1221 = vmatprep.subr.bf16.mxu0 0
        %1222 = vmatpush2.bf16.msra.mxu0 0
        %1223 = vmatprep.subr.bf16.mxu0 0
        %1224 = vmatpush2.bf16.msra.mxu0 0
        %1225 = vmatprep.mubr.bf16.mxu0 0
        %1226 = vmatmul.mubr.bf16.gmra.mxu0 %v1188
        %v1227 = vpop.f32.mrf.mxu0
        %v1228 = vadd.f32 %v1182, %v1227
        %v1229 = vpop.f32.mrf.mxu0
        %v1230 = vpop.f32.mrf.mxu0
        %v1231 = vpop.f32.mrf.mxu0
        %1232 = vdwg.mxu0
        %1233 = vrot.lane.b32.xlu0 %v914, 112
        %v1234 = vpop.permute.xlu0 %1233
        %1235 = vrot.lane.b32.xlu0 %v915, 112
        %v1236 = vpop.permute.xlu0 %1235
        %v1238 = vsel %vm917, %v1234, 0
        %v1241 = vsel %vm917, %v1236, 0
        %1243 = vmatprep.subr.bf16.mxu0 0
        %1244 = vmatpush1.bf16.xpose.msra.mxu0 0
        %1245 = vmatprep.subr.bf16.mxu0 0
        %1246 = vmatpush1.bf16.xpose.msra.mxu0 0
        %1247 = vmatprep.subr.bf16.mxu0 0
        %1248 = vmatpush1.bf16.xpose.msra.mxu0 0
        %1249 = vmatprep.subr.bf16.mxu0 0
        %1250 = vmatpush1.bf16.xpose.msra.mxu0 0
        %1251 = vmatprep.subr.bf16.mxu0 0
        %1252 = vmatpush1.bf16.xpose.msra.mxu0 0
        %1253 = vmatprep.subr.bf16.mxu0 0
        %1254 = vmatpush1.bf16.xpose.msra.mxu0 0
        %1255 = vmatprep.subr.bf16.mxu0 0
        %1256 = vmatpush1.bf16.xpose.msra.mxu0 0
        %1257 = vmatprep.subr.bf16.mxu0 0
        %1258 = vmatpush1.bf16.xpose.msra.mxu0 %v1241
        %1259 = vmatprep.subr.bf16.mxu0 0
        %1260 = vmatpush2.bf16.xpose.msra.mxu0 0
        %1261 = vmatprep.subr.bf16.mxu0 0
        %1262 = vmatpush2.bf16.xpose.msra.mxu0 0
        %1263 = vmatprep.subr.bf16.mxu0 0
        %1264 = vmatpush2.bf16.xpose.msra.mxu0 0
        %1265 = vmatprep.subr.bf16.mxu0 0
        %1266 = vmatpush2.bf16.xpose.msra.mxu0 0
        %1267 = vmatprep.subr.bf16.mxu0 0
        %1268 = vmatpush2.bf16.xpose.msra.mxu0 0
        %1269 = vmatprep.subr.bf16.mxu0 0
        %1270 = vmatpush2.bf16.xpose.msra.mxu0 0
        %1271 = vmatprep.subr.bf16.mxu0 0
        %1272 = vmatpush2.bf16.xpose.msra.mxu0 0
        %1273 = vmatprep.subr.bf16.mxu0 0
        %1274 = vmatpush2.bf16.xpose.msra.mxu0 0
        %1275 = vmatprep.mubr.bf16.mxu0 0
        %1276 = vmatmul.mubr.bf16.gmra.mxu0 %v1238
        %v1277 = vpop.f32.mrf.mxu0
        %v1278 = vadd.f32 0.0, %v1277
        %v1279 = vpop.f32.mrf.mxu0
        %v1280 = vpop.f32.mrf.mxu0
        %v1281 = vpop.f32.mrf.mxu0
        %1282 = vdwg.mxu0
        %v1283 = vsel %vm917, %v1278, -inf
        %1284 = vmax.xlane.f32.xlu0 %v1283
        %v1285 = vpop.xlane.xlu0 %1284
        %v1286 = vsub.f32 %v1278, %v1285
        %v1287 = vmul.f32 %v1286, 1.442695
        %v1288 = vpow.pop %v1287
        %v1289 = vsel %vm917, %v1288, 0.0
        %1290 = vadd.xlane.f32.xlu0 %v1289
        %v1291 = vpop.xlane.xlu0 %1290
        %v1292 = vpack.c.bf16 %v1288, %v1288
        %1293 = vrot.lane.b32.xlu0 %v916, 112
        %v1294 = vpop.permute.xlu0 %1293
        %v1296 = vsel %vm917, %v1292, 0
        %v1299 = vsel %vm977, %v1294, 0
        %1301 = vmatprep.subr.bf16.mxu0 0
        %1302 = vmatpush1.bf16.msra.mxu0 0
        %1303 = vmatprep.subr.bf16.mxu0 0
        %1304 = vmatpush1.bf16.msra.mxu0 0
        %1305 = vmatprep.subr.bf16.mxu0 0
        %1306 = vmatpush1.bf16.msra.mxu0 0
        %1307 = vmatprep.subr.bf16.mxu0 0
        %1308 = vmatpush1.bf16.msra.mxu0 0
        %1309 = vmatprep.subr.bf16.mxu0 0
        %1310 = vmatpush1.bf16.msra.mxu0 0
        %1311 = vmatprep.subr.bf16.mxu0 0
        %1312 = vmatpush1.bf16.msra.mxu0 0
        %1313 = vmatprep.subr.bf16.mxu0 0
        %1314 = vmatpush1.bf16.msra.mxu0 0
        %1315 = vmatprep.subr.bf16.mxu0 0
        %1316 = vmatpush1.bf16.msra.mxu0 %v1299
        %1317 = vmatprep.subr.bf16.mxu0 0
        %1318 = vmatpush2.bf16.msra.mxu0 0
        %1319 = vmatprep.subr.bf16.mxu0 0
        %1320 = vmatpush2.bf16.msra.mxu0 0
        %1321 = vmatprep.subr.bf16.mxu0 0
        %1322 = vmatpush2.bf16.msra.mxu0 0
        %1323 = vmatprep.subr.bf16.mxu0 0
        %1324 = vmatpush2.bf16.msra.mxu0 0
        %1325 = vmatprep.subr.bf16.mxu0 0
        %1326 = vmatpush2.bf16.msra.mxu0 0
        %1327 = vmatprep.subr.bf16.mxu0 0
        %1328 = vmatpush2.bf16.msra.mxu0 0
        %1329 = vmatprep.subr.bf16.mxu0 0
        %1330 = vmatpush2.bf16.msra.mxu0 0
        %1331 = vmatprep.subr.bf16.mxu0 0
        %1332 = vmatpush2.bf16.msra.mxu0 0
        %1333 = vmatprep.mubr.bf16.mxu0 0
        %1334 = vmatmul.mubr.bf16.gmra.mxu0 %v1296
        %v1335 = vpop.f32.mrf.mxu0
        %v1336 = vadd.f32 0.0, %v1335
        %v1337 = vpop.f32.mrf.mxu0
        %v1338 = vpop.f32.mrf.mxu0
        %v1339 = vpop.f32.mrf.mxu0
        %1340 = vdwg.mxu0
        %v1341 = vrcp.pop %v1291
        %v1342 = vmul.f32 %v1336, %v1341
        %v1343 = vpack.c.bf16 %v1342, %v1342
        %s1344 = scalar_lea.vmem %s9, 8
        %v1345 = vld [vmem:[%s1344] sm:$0xf]
        %v1347 = vsel %vm917, %v1343, 0
        %v1350 = vsel %vm977, %v1345, 0
        %1352 = vmatprep.subr.bf16.mxu0 0
        %1353 = vmatpush1.bf16.msra.mxu0 0
        %1354 = vmatprep.subr.bf16.mxu0 0
        %1355 = vmatpush1.bf16.msra.mxu0 0
        %1356 = vmatprep.subr.bf16.mxu0 0
        %1357 = vmatpush1.bf16.msra.mxu0 0
        %1358 = vmatprep.subr.bf16.mxu0 0
        %1359 = vmatpush1.bf16.msra.mxu0 0
        %1360 = vmatprep.subr.bf16.mxu0 0
        %1361 = vmatpush1.bf16.msra.mxu0 0
        %1362 = vmatprep.subr.bf16.mxu0 0
        %1363 = vmatpush1.bf16.msra.mxu0 0
        %1364 = vmatprep.subr.bf16.mxu0 0
        %1365 = vmatpush1.bf16.msra.mxu0 0
        %1366 = vmatprep.subr.bf16.mxu0 0
        %1367 = vmatpush1.bf16.msra.mxu0 %v1350
        %1368 = vmatprep.subr.bf16.mxu0 0
        %1369 = vmatpush2.bf16.msra.mxu0 0
        %1370 = vmatprep.subr.bf16.mxu0 0
        %1371 = vmatpush2.bf16.msra.mxu0 0
        %1372 = vmatprep.subr.bf16.mxu0 0
        %1373 = vmatpush2.bf16.msra.mxu0 0
        %1374 = vmatprep.subr.bf16.mxu0 0
        %1375 = vmatpush2.bf16.msra.mxu0 0
        %1376 = vmatprep.subr.bf16.mxu0 0
        %1377 = vmatpush2.bf16.msra.mxu0 0
        %1378 = vmatprep.subr.bf16.mxu0 0
        %1379 = vmatpush2.bf16.msra.mxu0 0
        %1380 = vmatprep.subr.bf16.mxu0 0
        %1381 = vmatpush2.bf16.msra.mxu0 0
        %1382 = vmatprep.subr.bf16.mxu0 0
        %1383 = vmatpush2.bf16.msra.mxu0 0
        %1384 = vmatprep.mubr.bf16.mxu0 0
        %1385 = vmatmul.mubr.bf16.gmra.mxu0 %v1347
        %v1386 = vpop.f32.mrf.mxu0
        %v1387 = vadd.f32 0.0, %v1386
        %v1388 = vpop.f32.mrf.mxu0
        %v1389 = vpop.f32.mrf.mxu0
        %v1390 = vpop.f32.mrf.mxu0
        %1391 = vdwg.mxu0
        %v1392 = vadd.f32 %v1228, %v1387
        %1393 = vrot.lane.b32.xlu0 %v914, 104
        %v1394 = vpop.permute.xlu0 %1393
        %1395 = vrot.lane.b32.xlu0 %v915, 104
        %v1396 = vpop.permute.xlu0 %1395
        %v1398 = vsel %vm917, %v1394, 0
        %v1401 = vsel %vm917, %v1396, 0
        %1403 = vmatprep.subr.bf16.mxu0 0
        %1404 = vmatpush1.bf16.xpose.msra.mxu0 0
        %1405 = vmatprep.subr.bf16.mxu0 0
        %1406 = vmatpush1.bf16.xpose.msra.mxu0 0
        %1407 = vmatprep.subr.bf16.mxu0 0
        %1408 = vmatpush1.bf16.xpose.msra.mxu0 0
        %1409 = vmatprep.subr.bf16.mxu0 0
        %1410 = vmatpush1.bf16.xpose.msra.mxu0 0
        %1411 = vmatprep.subr.bf16.mxu0 0
        %1412 = vmatpush1.bf16.xpose.msra.mxu0 0
        %1413 = vmatprep.subr.bf16.mxu0 0
        %1414 = vmatpush1.bf16.xpose.msra.mxu0 0
        %1415 = vmatprep.subr.bf16.mxu0 0
        %1416 = vmatpush1.bf16.xpose.msra.mxu0 0
        %1417 = vmatprep.subr.bf16.mxu0 0
        %1418 = vmatpush1.bf16.xpose.msra.mxu0 %v1401
        %1419 = vmatprep.subr.bf16.mxu0 0
        %1420 = vmatpush2.bf16.xpose.msra.mxu0 0
        %1421 = vmatprep.subr.bf16.mxu0 0
        %1422 = vmatpush2.bf16.xpose.msra.mxu0 0
        %1423 = vmatprep.subr.bf16.mxu0 0
        %1424 = vmatpush2.bf16.xpose.msra.mxu0 0
        %1425 = vmatprep.subr.bf16.mxu0 0
        %1426 = vmatpush2.bf16.xpose.msra.mxu0 0
        %1427 = vmatprep.subr.bf16.mxu0 0
        %1428 = vmatpush2.bf16.xpose.msra.mxu0 0
        %1429 = vmatprep.subr.bf16.mxu0 0
        %1430 = vmatpush2.bf16.xpose.msra.mxu0 0
        %1431 = vmatprep.subr.bf16.mxu0 0
        %1432 = vmatpush2.bf16.xpose.msra.mxu0 0
        %1433 = vmatprep.subr.bf16.mxu0 0
        %1434 = vmatpush2.bf16.xpose.msra.mxu0 0
        %1435 = vmatprep.mubr.bf16.mxu0 0
        %1436 = vmatmul.mubr.bf16.gmra.mxu0 %v1398
        %v1437 = vpop.f32.mrf.mxu0
        %v1438 = vadd.f32 0.0, %v1437
        %v1439 = vpop.f32.mrf.mxu0
        %v1440 = vpop.f32.mrf.mxu0
        %v1441 = vpop.f32.mrf.mxu0
        %1442 = vdwg.mxu0
        %v1443 = vsel %vm917, %v1438, -inf
        %1444 = vmax.xlane.f32.xlu0 %v1443
        %v1445 = vpop.xlane.xlu0 %1444
        %v1446 = vsub.f32 %v1438, %v1445
        %v1447 = vmul.f32 %v1446, 1.442695
        %v1448 = vpow.pop %v1447
        %v1449 = vsel %vm917, %v1448, 0.0
        %1450 = vadd.xlane.f32.xlu0 %v1449
        %v1451 = vpop.xlane.xlu0 %1450
        %v1452 = vpack.c.bf16 %v1448, %v1448
        %1453 = vrot.lane.b32.xlu0 %v916, 104
        %v1454 = vpop.permute.xlu0 %1453
        %v1456 = vsel %vm917, %v1452, 0
        %v1459 = vsel %vm977, %v1454, 0
        %1461 = vmatprep.subr.bf16.mxu0 0
        %1462 = vmatpush1.bf16.msra.mxu0 0
        %1463 = vmatprep.subr.bf16.mxu0 0
        %1464 = vmatpush1.bf16.msra.mxu0 0
        %1465 = vmatprep.subr.bf16.mxu0 0
        %1466 = vmatpush1.bf16.msra.mxu0 0
        %1467 = vmatprep.subr.bf16.mxu0 0
        %1468 = vmatpush1.bf16.msra.mxu0 0
        %1469 = vmatprep.subr.bf16.mxu0 0
        %1470 = vmatpush1.bf16.msra.mxu0 0
        %1471 = vmatprep.subr.bf16.mxu0 0
        %1472 = vmatpush1.bf16.msra.mxu0 0
        %1473 = vmatprep.subr.bf16.mxu0 0
        %1474 = vmatpush1.bf16.msra.mxu0 0
        %1475 = vmatprep.subr.bf16.mxu0 0
        %1476 = vmatpush1.bf16.msra.mxu0 %v1459
        %1477 = vmatprep.subr.bf16.mxu0 0
        %1478 = vmatpush2.bf16.msra.mxu0 0
        %1479 = vmatprep.subr.bf16.mxu0 0
        %1480 = vmatpush2.bf16.msra.mxu0 0
        %1481 = vmatprep.subr.bf16.mxu0 0
        %1482 = vmatpush2.bf16.msra.mxu0 0
        %1483 = vmatprep.subr.bf16.mxu0 0
        %1484 = vmatpush2.bf16.msra.mxu0 0
        %1485 = vmatprep.subr.bf16.mxu0 0
        %1486 = vmatpush2.bf16.msra.mxu0 0
        %1487 = vmatprep.subr.bf16.mxu0 0
        %1488 = vmatpush2.bf16.msra.mxu0 0
        %1489 = vmatprep.subr.bf16.mxu0 0
        %1490 = vmatpush2.bf16.msra.mxu0 0
        %1491 = vmatprep.subr.bf16.mxu0 0
        %1492 = vmatpush2.bf16.msra.mxu0 0
        %1493 = vmatprep.mubr.bf16.mxu0 0
        %1494 = vmatmul.mubr.bf16.gmra.mxu0 %v1456
        %v1495 = vpop.f32.mrf.mxu0
        %v1496 = vadd.f32 0.0, %v1495
        %v1497 = vpop.f32.mrf.mxu0
        %v1498 = vpop.f32.mrf.mxu0
        %v1499 = vpop.f32.mrf.mxu0
        %1500 = vdwg.mxu0
        %v1501 = vrcp.pop %v1451
        %v1502 = vmul.f32 %v1496, %v1501
        %v1503 = vpack.c.bf16 %v1502, %v1502
        %s1504 = scalar_lea.vmem %s9, 12
        %v1505 = vld [vmem:[%s1504] sm:$0xf]
        %v1507 = vsel %vm917, %v1503, 0
        %v1510 = vsel %vm977, %v1505, 0
        %1512 = vmatprep.subr.bf16.mxu0 0
        %1513 = vmatpush1.bf16.msra.mxu0 0
        %1514 = vmatprep.subr.bf16.mxu0 0
        %1515 = vmatpush1.bf16.msra.mxu0 0
        %1516 = vmatprep.subr.bf16.mxu0 0
        %1517 = vmatpush1.bf16.msra.mxu0 0
        %1518 = vmatprep.subr.bf16.mxu0 0
        %1519 = vmatpush1.bf16.msra.mxu0 0
        %1520 = vmatprep.subr.bf16.mxu0 0
        %1521 = vmatpush1.bf16.msra.mxu0 0
        %1522 = vmatprep.subr.bf16.mxu0 0
        %1523 = vmatpush1.bf16.msra.mxu0 0
        %1524 = vmatprep.subr.bf16.mxu0 0
        %1525 = vmatpush1.bf16.msra.mxu0 0
        %1526 = vmatprep.subr.bf16.mxu0 0
        %1527 = vmatpush1.bf16.msra.mxu0 %v1510
        %1528 = vmatprep.subr.bf16.mxu0 0
        %1529 = vmatpush2.bf16.msra.mxu0 0
        %1530 = vmatprep.subr.bf16.mxu0 0
        %1531 = vmatpush2.bf16.msra.mxu0 0
        %1532 = vmatprep.subr.bf16.mxu0 0
        %1533 = vmatpush2.bf16.msra.mxu0 0
        %1534 = vmatprep.subr.bf16.mxu0 0
        %1535 = vmatpush2.bf16.msra.mxu0 0
        %1536 = vmatprep.subr.bf16.mxu0 0
        %1537 = vmatpush2.bf16.msra.mxu0 0
        %1538 = vmatprep.subr.bf16.mxu0 0
        %1539 = vmatpush2.bf16.msra.mxu0 0
        %1540 = vmatprep.subr.bf16.mxu0 0
        %1541 = vmatpush2.bf16.msra.mxu0 0
        %1542 = vmatprep.subr.bf16.mxu0 0
        %1543 = vmatpush2.bf16.msra.mxu0 0
        %1544 = vmatprep.mubr.bf16.mxu0 0
        %1545 = vmatmul.mubr.bf16.gmra.mxu0 %v1507
        %v1546 = vpop.f32.mrf.mxu0
        %v1547 = vadd.f32 0.0, %v1546
        %v1548 = vpop.f32.mrf.mxu0
        %v1549 = vpop.f32.mrf.mxu0
        %v1550 = vpop.f32.mrf.mxu0
        %1551 = vdwg.mxu0
        %v1552 = vadd.f32 %v1392, %v1547
        %v1553 = vld [vmem:[%s10] sm:$0x1]
        %v1555 = vlaneseq
        %v1556 = vshrl.u32 %v1555, 7
        %v1557 = vsub.s32 0, %v1556
        %v1558 = vrot.slane %v1553, %v1557
        %v1560 = vadd.f32 %v1552, %v1558
        %v1561 = vadd.f32 %v545, %v1560
        %v1562 = vld [vmem:[%s11] sm:$0x1]
        %v1563 = vld [vmem:[%s12] sm:$0x1]
        %v1564 = vmul.f32 %v1561, %v550
        %1565 = vadd.xlane.f32.xlu0 %v1564
        %v1566 = vpop.xlane.xlu0 %1565
        %v1567 = vmul.f32 %v1566, 0.03125
        %v1568 = vsub.f32 %v1561, %v1567
        %v1569 = vmul.f32 %v1568, %v550
        %v1570 = vmul.f32 %v1569, %v1569
        %1571 = vadd.xlane.f32.xlu0 %v1570
        %v1572 = vpop.xlane.xlu0 %1571
        %v1573 = vmul.f32 %v1572, 0.03125
        %v1574 = vadd.f32 %v1573, 1e-05
        %v1575 = vrsqrt.pop %v1574
        %v1576 = vmul.f32 %v1569, %v1575
        %v1578 = vlaneseq
        %v1579 = vshrl.u32 %v1578, 7
        %v1580 = vsub.s32 0, %v1579
        %v1581 = vrot.slane %v1562, %v1580
        %v1583 = vmul.f32 %v1576, %v1581
        %v1585 = vlaneseq
        %v1586 = vshrl.u32 %v1585, 7
        %v1587 = vsub.s32 0, %v1586
        %v1588 = vrot.slane %v1563, %v1587
        %v1590 = vadd.f32 %v1583, %v1588
        %v1591 = vpack.c.bf16 %v1590, %v1590
        %v1592 = vld [vmem:[%s13] sm:$0xf]
        %v1593 = vld [vmem:[%s13 + $0x4] sm:$0xf]
        %v1594 = vld [vmem:[%s13 + $0x8] sm:$0xf]
        %v1595 = vld [vmem:[%s13 + $0xc] sm:$0xf]
        %v1596 = vld [vmem:[%s13 + $0x10] sm:$0xf]
        %v1597 = vld [vmem:[%s13 + $0x14] sm:$0xf]
        %v1598 = vld [vmem:[%s13 + $0x18] sm:$0xf]
        %v1599 = vld [vmem:[%s13 + $0x1c] sm:$0xf]
        %v1600 = vld [vmem:[%s13 + $0x20] sm:$0xf]
        %v1601 = vld [vmem:[%s13 + $0x24] sm:$0xf]
        %v1602 = vld [vmem:[%s13 + $0x28] sm:$0xf]
        %v1603 = vld [vmem:[%s13 + $0x2c] sm:$0xf]
        %v1604 = vld [vmem:[%s13 + $0x30] sm:$0xf]
        %v1605 = vld [vmem:[%s13 + $0x34] sm:$0xf]
        %v1606 = vld [vmem:[%s13 + $0x38] sm:$0xf]
        %v1607 = vld [vmem:[%s13 + $0x3c] sm:$0xf]
        %v1608 = vld [vmem:[%s14] sm:$0x1]
        %v1610 = vlaneseq
        %v1611 = vshrl.u32 %v1610, 7
        %v1612 = vsub.s32 0, %v1611
        %v1613 = vrot.slane %v1608, %v1612
        %v1631 = vunpack.c.l.b16 %v1592
        %v1632 = vunpack.c.l.b16 %v1593
        %v1633 = vunpack.c.l.b16 %v1594
        %v1634 = vunpack.c.l.b16 %v1595
        %v1635 = vunpack.c.l.b16 %v1596
        %v1636 = vunpack.c.l.b16 %v1597
        %v1637 = vunpack.c.l.b16 %v1598
        %v1638 = vunpack.c.l.b16 %v1599
        %v1639 = vunpack.c.l.b16 %v1600
        %v1640 = vunpack.c.l.b16 %v1601
        %v1641 = vunpack.c.l.b16 %v1602
        %v1642 = vunpack.c.l.b16 %v1603
        %v1643 = vunpack.c.l.b16 %v1604
        %v1644 = vunpack.c.l.b16 %v1605
        %v1645 = vunpack.c.l.b16 %v1606
        %v1646 = vunpack.c.l.b16 %v1607
        %v1647 = vpack.c.b16 %v1632, %v1631
        %v1648 = vpack.c.b16 %v1634, %v1633
        %v1649 = vpack.c.b16 %v1636, %v1635
        %v1650 = vpack.c.b16 %v1638, %v1637
        %v1651 = vpack.c.b16 %v1640, %v1639
        %v1652 = vpack.c.b16 %v1642, %v1641
        %v1653 = vpack.c.b16 %v1644, %v1643
        %v1654 = vpack.c.b16 %v1646, %v1645
        %1663 = vmatprep.subr.bf16.mxu0 0
        %1664 = vmatpush1.bf16.msra.mxu0 %v1654
        %1665 = vmatprep.subr.bf16.mxu0 0
        %1666 = vmatpush1.bf16.msra.mxu0 %v1653
        %1667 = vmatprep.subr.bf16.mxu0 0
        %1668 = vmatpush1.bf16.msra.mxu0 %v1652
        %1669 = vmatprep.subr.bf16.mxu0 0
        %1670 = vmatpush1.bf16.msra.mxu0 %v1651
        %1671 = vmatprep.subr.bf16.mxu0 0
        %1672 = vmatpush1.bf16.msra.mxu0 %v1650
        %1673 = vmatprep.subr.bf16.mxu0 0
        %1674 = vmatpush1.bf16.msra.mxu0 %v1649
        %1675 = vmatprep.subr.bf16.mxu0 0
        %1676 = vmatpush1.bf16.msra.mxu0 %v1648
        %1677 = vmatprep.subr.bf16.mxu0 0
        %1678 = vmatpush1.bf16.msra.mxu0 %v1647
        %1679 = vmatprep.subr.bf16.mxu0 0
        %1680 = vmatpush2.bf16.msra.mxu0 0
        %1681 = vmatprep.subr.bf16.mxu0 0
        %1682 = vmatpush2.bf16.msra.mxu0 0
        %1683 = vmatprep.subr.bf16.mxu0 0
        %1684 = vmatpush2.bf16.msra.mxu0 0
        %1685 = vmatprep.subr.bf16.mxu0 0
        %1686 = vmatpush2.bf16.msra.mxu0 0
        %1687 = vmatprep.subr.bf16.mxu0 0
        %1688 = vmatpush2.bf16.msra.mxu0 0
        %1689 = vmatprep.subr.bf16.mxu0 0
        %1690 = vmatpush2.bf16.msra.mxu0 0
        %1691 = vmatprep.subr.bf16.mxu0 0
        %1692 = vmatpush2.bf16.msra.mxu0 0
        %1693 = vmatprep.subr.bf16.mxu0 0
        %1694 = vmatpush2.bf16.msra.mxu0 0
        %1695 = vmatprep.mubr.bf16.mxu0 0
        %1696 = vmatmul.mubr.bf16.gmra.mxu0 %v1591
        %v1697 = vpop.f32.mrf.mxu0
        %v1698 = vadd.f32 %v1613, %v1697
        %v1699 = vpop.f32.mrf.mxu0
        %v1700 = vpop.f32.mrf.mxu0
        %v1701 = vpop.f32.mrf.mxu0
        %1702 = vdwg.mxu0
        %v1703 = vmul.f32 %v1698, 0.5
        %v1704 = vmul.f32 %v1698, 0.70710677
        %v1705 = verf.f32.pop %v1704
        %v1706 = vadd.f32 %v1705, 1.0
        %v1707 = vmul.f32 %v1703, %v1706
        %v1708 = vpack.c.bf16 %v1707, %v1707
        %v1709 = vld [vmem:[%s15] sm:$0xf]
        %v1710 = vld [vmem:[%s15 + $0x4] sm:$0xf]
        %v1711 = vld [vmem:[%s15 + $0x8] sm:$0xf]
        %v1712 = vld [vmem:[%s15 + $0xc] sm:$0xf]
        %v1713 = vld [vmem:[%s15 + $0x10] sm:$0xf]
        %v1714 = vld [vmem:[%s15 + $0x14] sm:$0xf]
        %v1715 = vld [vmem:[%s15 + $0x18] sm:$0xf]
        %v1716 = vld [vmem:[%s15 + $0x1c] sm:$0xf]
        %v1717 = vld [vmem:[%s15 + $0x20] sm:$0xf]
        %v1718 = vld [vmem:[%s15 + $0x24] sm:$0xf]
        %v1719 = vld [vmem:[%s15 + $0x28] sm:$0xf]
        %v1720 = vld [vmem:[%s15 + $0x2c] sm:$0xf]
        %v1721 = vld [vmem:[%s15 + $0x30] sm:$0xf]
        %v1722 = vld [vmem:[%s15 + $0x34] sm:$0xf]
        %v1723 = vld [vmem:[%s15 + $0x38] sm:$0xf]
        %v1724 = vld [vmem:[%s15 + $0x3c] sm:$0xf]
        %v1725 = vld [vmem:[%s16] sm:$0x1]
        %v1727 = vlaneseq
        %v1728 = vshrl.u32 %v1727, 7
        %v1729 = vsub.s32 0, %v1728
        %v1730 = vrot.slane %v1725, %v1729
        %v1748 = vunpack.c.l.b16 %v1709
        %v1749 = vunpack.c.l.b16 %v1710
        %v1750 = vunpack.c.l.b16 %v1711
        %v1751 = vunpack.c.l.b16 %v1712
        %v1752 = vunpack.c.l.b16 %v1713
        %v1753 = vunpack.c.l.b16 %v1714
        %v1754 = vunpack.c.l.b16 %v1715
        %v1755 = vunpack.c.l.b16 %v1716
        %v1756 = vunpack.c.l.b16 %v1717
        %v1757 = vunpack.c.l.b16 %v1718
        %v1758 = vunpack.c.l.b16 %v1719
        %v1759 = vunpack.c.l.b16 %v1720
        %v1760 = vunpack.c.l.b16 %v1721
        %v1761 = vunpack.c.l.b16 %v1722
        %v1762 = vunpack.c.l.b16 %v1723
        %v1763 = vunpack.c.l.b16 %v1724
        %v1764 = vpack.c.b16 %v1749, %v1748
        %v1765 = vpack.c.b16 %v1751, %v1750
        %v1766 = vpack.c.b16 %v1753, %v1752
        %v1767 = vpack.c.b16 %v1755, %v1754
        %v1768 = vpack.c.b16 %v1757, %v1756
        %v1769 = vpack.c.b16 %v1759, %v1758
        %v1770 = vpack.c.b16 %v1761, %v1760
        %v1771 = vpack.c.b16 %v1763, %v1762
        %1780 = vmatprep.subr.bf16.mxu0 0
        %1781 = vmatpush1.bf16.msra.mxu0 %v1771
        %1782 = vmatprep.subr.bf16.mxu0 0
        %1783 = vmatpush1.bf16.msra.mxu0 %v1770
        %1784 = vmatprep.subr.bf16.mxu0 0
        %1785 = vmatpush1.bf16.msra.mxu0 %v1769
        %1786 = vmatprep.subr.bf16.mxu0 0
        %1787 = vmatpush1.bf16.msra.mxu0 %v1768
        %1788 = vmatprep.subr.bf16.mxu0 0
        %1789 = vmatpush1.bf16.msra.mxu0 %v1767
        %1790 = vmatprep.subr.bf16.mxu0 0
        %1791 = vmatpush1.bf16.msra.mxu0 %v1766
        %1792 = vmatprep.subr.bf16.mxu0 0
        %1793 = vmatpush1.bf16.msra.mxu0 %v1765
        %1794 = vmatprep.subr.bf16.mxu0 0
        %1795 = vmatpush1.bf16.msra.mxu0 %v1764
        %1796 = vmatprep.subr.bf16.mxu0 0
        %1797 = vmatpush2.bf16.msra.mxu0 0
        %1798 = vmatprep.subr.bf16.mxu0 0
        %1799 = vmatpush2.bf16.msra.mxu0 0
        %1800 = vmatprep.subr.bf16.mxu0 0
        %1801 = vmatpush2.bf16.msra.mxu0 0
        %1802 = vmatprep.subr.bf16.mxu0 0
        %1803 = vmatpush2.bf16.msra.mxu0 0
        %1804 = vmatprep.subr.bf16.mxu0 0
        %1805 = vmatpush2.bf16.msra.mxu0 0
        %1806 = vmatprep.subr.bf16.mxu0 0
        %1807 = vmatpush2.bf16.msra.mxu0 0
        %1808 = vmatprep.subr.bf16.mxu0 0
        %1809 = vmatpush2.bf16.msra.mxu0 0
        %1810 = vmatprep.subr.bf16.mxu0 0
        %1811 = vmatpush2.bf16.msra.mxu0 0
        %1812 = vmatprep.mubr.bf16.mxu0 0
        %1813 = vmatmul.mubr.bf16.gmra.mxu0 %v1708
        %v1814 = vpop.f32.mrf.mxu0
        %v1815 = vadd.f32 %v1730, %v1814
        %v1816 = vpop.f32.mrf.mxu0
        %v1817 = vpop.f32.mrf.mxu0
        %v1818 = vpop.f32.mrf.mxu0
        %1819 = vdwg.mxu0
        %v1820 = vadd.f32 %v1561, %v1815
        %1821 = vst [vmem:[%s539] sm:$0xff] %v1820
        %s1822 = sand.u32 %s401, 1
        %s1823 = scalar_lea.sflag [#allocation3], %s1822
        %s1824 = sand.u32 %s401, 1
        %s1825 = smul.addr %s1824, 8
        %s1826 = scalar_lea.vmem [#allocation2], %s1825
        // Predicated region
        $region89: #{tpu_custom_call.1} parent=87 // pred_check
          %p1827 = pneg %p411
        $region90: #{tpu_custom_call.1} parent=87 // pred_check_branch
          %1829 = sbr.rel (%p1827) target = $region92
        $region91: #{tpu_custom_call.1} parent=87 // pred_region
          %s1831 = ssub.s32 128, 128
          %1832 = vsyncadd %s1823, %s1831
          %s1833 = smul.addr %s31, 128
          %s1834 = scalar_lea.hbm %s17, %s1833
          %s1836 = sshll.u32 %s1826, 4
          %s1837 = int_to_ptr.vmem [resolvable:$true] %s1836
          %1839 = dma.vmem_to_hbm [thread:$0]  %s1837, 128, %s1834, %s1823
        $region92: #{tpu_custom_call.1} parent=87 // pred_fallthru
          _
      $region88: #{tpu_custom_call.1} parent=5 // pred_fallthru
        _
      %p1840 = scmp.le.s32.totalorder 2, %s26
      // Predicated region
      $region93: #{tpu_custom_call.1} parent=5 // pred_check
        %p1841 = pneg %p1840
      $region94: #{tpu_custom_call.1} parent=5 // pred_check_branch
        %1843 = sbr.rel (%p1841) target = $region96
      $region95: #{tpu_custom_call.1} parent=5 // pred_region
        %s1844 = ssub.s32 %s26, 2
        // Predicated region
        $region97: #{tpu_custom_call.1} parent=95 // pred_check
          %p1845 = pneg %p417
        $region98: #{tpu_custom_call.1} parent=95 // pred_check_branch
          %1847 = sbr.rel (%p1845) target = $region100
        $region99: #{tpu_custom_call.1} parent=95 // pred_region
          %s1848 = sand.u32 %s402, 1
          %s1849 = scalar_lea.sflag [#allocation3], %s1848
          %s1850 = sand.u32 %s402, 1
          %s1851 = smul.addr %s1850, 8
          %s1852 = scalar_lea.vmem [#allocation2], %s1851
          %1853 = dma.done %s1849, 128
        $region100: #{tpu_custom_call.1} parent=95 // pred_fallthru
          _
      $region96: #{tpu_custom_call.1} parent=5 // pred_fallthru
        _
    $region6: #{tpu_custom_call.1} parent=1 // loop_footer
      %s30 = sadd.s32 1, %s26
    $region7: #{tpu_custom_call.1} parent=1 // loop_footer_branch
      %25 = sbr.rel target = $region3
    $region8: #{tpu_custom_call.1} parent=1 // loop_exit
      _
    %1854 = vsyncpa [#allocation3], 1
    %s1855 = scalar_lea.sflag [#allocation3], 1
    %1856 = vsyncpa %s1855, 1

// kernel: tpu_custom_call.1
$region0: #{tpu_custom_call.1}
  #allocation0 [shape = 'u32[]', space=smem, size = 0x4, offset = 0x4, fixed_abs, tag = 'smem constant byte address 0x4 - core index']
  #allocation1 [shape = 'u32[144,128]{1,0:T(1,128)}', space=vmem, size = 0x12000, scoped, tag = 'internal scratch']
  %s0 = inlined_call_operand.vmem [shape: f32[2,8,128], index: 0, kind: input, shape index: {}]
  %s1 = inlined_call_operand.vmem [shape: f32[1,128], index: 1, kind: input, shape index: {}]
  %s2 = inlined_call_operand.vmem [shape: f32[1,128], index: 2, kind: input, shape index: {}]
  %s3 = inlined_call_operand.vmem [shape: bf16[128,32], index: 3, kind: input, shape index: {}]
  %s4 = inlined_call_operand.vmem [shape: f32[1,32], index: 4, kind: input, shape index: {}]
  %s5 = inlined_call_operand.vmem [shape: bf16[128,32], index: 5, kind: input, shape index: {}]
  %s6 = inlined_call_operand.vmem [shape: f32[1,32], index: 6, kind: input, shape index: {}]
  %s7 = inlined_call_operand.vmem [shape: bf16[128,32], index: 7, kind: input, shape index: {}]
  %s8 = inlined_call_operand.vmem [shape: f32[1,32], index: 8, kind: input, shape index: {}]
  %s9 = inlined_call_operand.vmem [shape: bf16[4,8,128], index: 9, kind: input, shape index: {}]
  %s10 = inlined_call_operand.vmem [shape: f32[1,128], index: 10, kind: input, shape index: {}]
  %s11 = inlined_call_operand.vmem [shape: f32[1,128], index: 11, kind: input, shape index: {}]
  %s12 = inlined_call_operand.vmem [shape: f32[1,128], index: 12, kind: input, shape index: {}]
  %s13 = inlined_call_operand.vmem [shape: bf16[128,128], index: 13, kind: input, shape index: {}]
  %s14 = inlined_call_operand.vmem [shape: f32[1,128], index: 14, kind: input, shape index: {}]
  %s15 = inlined_call_operand.vmem [shape: bf16[128,128], index: 15, kind: input, shape index: {}]
  %s16 = inlined_call_operand.vmem [shape: f32[1,128], index: 16, kind: input, shape index: {}]
  %s17 = inlined_call_operand.hbm [shape: f32[2,8,128], index: 17, kind: output, shape index: {}]
  %s18 = sld [smem:[#allocation0]]
  $region101: #{tpu_custom_call.1} parent=0
    _
  %s20 = ssub.s32 1, %s18
  %s21 = scalar_select 0, %s20, %s18
  $region1: #{tpu_custom_call.1} parent=0
    #allocation2 [shape = 'u8[8192]{0}', space=vmem, size = 0x2000, scoped, tag = 'output window, operand 0']
    #allocation3 [shape = 's32[2]{0}', space=sflag, size = 0x8, scoped, tag = 'scoped memory for tpu_custom_call.1']
    %22 = vsyncpa [#allocation3], 0
    %s23 = scalar_lea.sflag [#allocation3], 1
    %24 = vsyncpa %s23, 0
    loop: start=0, step=1, limit=4
    $region2: #{tpu_custom_call.1} parent=1 // loop_pre_header
      _
    $region3: #{tpu_custom_call.1} parent=1 // loop_header
      %s26 = sphi 0, %s30
      %p27 = scmp.ge.s32.totalorder %s26, 4
      %s36 = sphi 0, %s38
      %s39 = sphi 0, %s36
      %s40 = sphi 0, %s39
      %s56 = sphi 0, %s40
      %s60 = sphi 0, %s60
      %s62 = sphi 0, %s60
      %s63 = sphi 0, %s62
      %s77 = sphi 0, %s63
      %s81 = sphi 0, %s81
      %s83 = sphi 0, %s81
      %s84 = sphi 0, %s83
      %s98 = sphi 0, %s84
      %s102 = sphi 0, %s102
      %s104 = sphi 0, %s102
      %s105 = sphi 0, %s104
      %s119 = sphi 0, %s105
      %s123 = sphi 0, %s123
      %s125 = sphi 0, %s123
      %s126 = sphi 0, %s125
      %s140 = sphi 0, %s126
      %s144 = sphi 0, %s144
      %s146 = sphi 0, %s144
      %s147 = sphi 0, %s146
      %s161 = sphi 0, %s147
      %s165 = sphi 0, %s165
      %s167 = sphi 0, %s165
      %s168 = sphi 0, %s167
      %s182 = sphi 0, %s168
      %s186 = sphi 0, %s186
      %s188 = sphi 0, %s186
      %s189 = sphi 0, %s188
      %s203 = sphi 0, %s189
      %s207 = sphi 0, %s207
      %s209 = sphi 0, %s207
      %s210 = sphi 0, %s209
      %s224 = sphi 0, %s210
      %s228 = sphi 0, %s228
      %s230 = sphi 0, %s228
      %s231 = sphi 0, %s230
      %s245 = sphi 0, %s231
      %s249 = sphi 0, %s249
      %s251 = sphi 0, %s249
      %s252 = sphi 0, %s251
      %s266 = sphi 0, %s252
      %s270 = sphi 0, %s270
      %s272 = sphi 0, %s270
      %s273 = sphi 0, %s272
      %s287 = sphi 0, %s273
      %s291 = sphi 0, %s291
      %s293 = sphi 0, %s291
      %s294 = sphi 0, %s293
      %s308 = sphi 0, %s294
      %s312 = sphi 0, %s312
      %s314 = sphi 0, %s312
      %s315 = sphi 0, %s314
      %s329 = sphi 0, %s315
      %s333 = sphi 0, %s333
      %s335 = sphi 0, %s333
      %s336 = sphi 0, %s335
      %s350 = sphi 0, %s336
      %s354 = sphi 0, %s354
      %s356 = sphi 0, %s354
      %s357 = sphi 0, %s356
      %s371 = sphi 0, %s357
      %s375 = sphi 0, %s375
      %s377 = sphi 0, %s375
      %s378 = sphi 0, %s377
      %s392 = sphi 0, %s378
      %s398 = sphi 0, %s400
      %s401 = sphi 0, %s398
      %s402 = sphi 0, %s401
      %s418 = sphi 0, %s402
    $region4: #{tpu_custom_call.1} parent=1 // loop_header_branch
      %29 = sbr.rel (%p27) target = $region8
    $region5: #{tpu_custom_call.1} parent=1 // loop_body
      %s31 = ssub.s32 %s26, 1
      %s32 = ssub.s32 %s26, 2
      %s33 = sadd.s32 %s26, 1
      %s34 = ssub.s32 %s26, %s33
      %p35 = scmp.eq.s32.totalorder %s34, 0
      %s37 = sadd.s32 %s36, 1
      %s38 = scalar_select %p35, %s36, %s37
      %p41 = pneg %p35
      %p42 = scmp.eq.s32.totalorder %s26, 1
      %p43 = por %p41, %p42
      %p44 = scmp.ne.s32.totalorder %s36, %s39
      %p45 = scmp.eq.s32.totalorder %s26, 0
      %p46 = por %p44, %p45
      %p47 = scmp.ne.s32.totalorder %s36, %s39
      %p48 = scmp.eq.s32.totalorder %s31, 1
      %p49 = por %p47, %p48
      %p50 = scmp.ne.s32.totalorder %s39, %s40
      %p51 = scmp.eq.s32.totalorder %s31, 0
      %p52 = por %p50, %p51
      %p53 = scmp.ne.s32.totalorder %s39, %s40
      %p54 = scmp.eq.s32.totalorder %s32, 1
      %p55 = por %p53, %p54
      %p57 = scmp.ne.s32.totalorder %s40, %s56
      %p58 = scmp.eq.s32.totalorder %s32, 0
      %p59 = por %p57, %p58
      %s61 = sadd.s32 %s60, 1
      %p64 = scmp.eq.s32.totalorder %s26, 1
      %p65 = scmp.ne.s32.totalorder %s60, %s62
      %p66 = scmp.eq.s32.totalorder %s26, 0
      %p67 = por %p65, %p66
      %p68 = scmp.ne.s32.totalorder %s60, %s62
      %p69 = scmp.eq.s32.totalorder %s31, 1
      %p70 = por %p68, %p69
      %p71 = scmp.ne.s32.totalorder %s62, %s63
      %p72 = scmp.eq.s32.totalorder %s31, 0
      %p73 = por %p71, %p72
      %p74 = scmp.ne.s32.totalorder %s62, %s63
      %p75 = scmp.eq.s32.totalorder %s32, 1
      %p76 = por %p74, %p75
      %p78 = scmp.ne.s32.totalorder %s63, %s77
      %p79 = scmp.eq.s32.totalorder %s32, 0
      %p80 = por %p78, %p79
      %s82 = sadd.s32 %s81, 1
      %p85 = scmp.eq.s32.totalorder %s26, 1
      %p86 = scmp.ne.s32.totalorder %s81, %s83
      %p87 = scmp.eq.s32.totalorder %s26, 0
      %p88 = por %p86, %p87
      %p89 = scmp.ne.s32.totalorder %s81, %s83
      %p90 = scmp.eq.s32.totalorder %s31, 1
      %p91 = por %p89, %p90
      %p92 = scmp.ne.s32.totalorder %s83, %s84
      %p93 = scmp.eq.s32.totalorder %s31, 0
      %p94 = por %p92, %p93
      %p95 = scmp.ne.s32.totalorder %s83, %s84
      %p96 = scmp.eq.s32.totalorder %s32, 1
      %p97 = por %p95, %p96
      %p99 = scmp.ne.s32.totalorder %s84, %s98
      %p100 = scmp.eq.s32.totalorder %s32, 0
      %p101 = por %p99, %p100
      %s103 = sadd.s32 %s102, 1
      %p106 = scmp.eq.s32.totalorder %s26, 1
      %p107 = scmp.ne.s32.totalorder %s102, %s104
      %p108 = scmp.eq.s32.totalorder %s26, 0
      %p109 = por %p107, %p108
      %p110 = scmp.ne.s32.totalorder %s102, %s104
      %p111 = scmp.eq.s32.totalorder %s31, 1
      %p112 = por %p110, %p111
      %p113 = scmp.ne.s32.totalorder %s104, %s105
      %p114 = scmp.eq.s32.totalorder %s31, 0
      %p115 = por %p113, %p114
      %p116 = scmp.ne.s32.totalorder %s104, %s105
      %p117 = scmp.eq.s32.totalorder %s32, 1
      %p118 = por %p116, %p117
      %p120 = scmp.ne.s32.totalorder %s105, %s119
      %p121 = scmp.eq.s32.totalorder %s32, 0
      %p122 = por %p120, %p121
      %s124 = sadd.s32 %s123, 1
      %p127 = scmp.eq.s32.totalorder %s26, 1
      %p128 = scmp.ne.s32.totalorder %s123, %s125
      %p129 = scmp.eq.s32.totalorder %s26, 0
      %p130 = por %p128, %p129
      %p131 = scmp.ne.s32.totalorder %s123, %s125
      %p132 = scmp.eq.s32.totalorder %s31, 1
      %p133 = por %p131, %p132
      %p134 = scmp.ne.s32.totalorder %s125, %s126
      %p135 = scmp.eq.s32.totalorder %s31, 0
      %p136 = por %p134, %p135
      %p137 = scmp.ne.s32.totalorder %s125, %s126
      %p138 = scmp.eq.s32.totalorder %s32, 1
      %p139 = por %p137, %p138
      %p141 = scmp.ne.s32.totalorder %s126, %s140
      %p142 = scmp.eq.s32.totalorder %s32, 0
      %p143 = por %p141, %p142
      %s145 = sadd.s32 %s144, 1
      %p148 = scmp.eq.s32.totalorder %s26, 1
      %p149 = scmp.ne.s32.totalorder %s144, %s146
      %p150 = scmp.eq.s32.totalorder %s26, 0
      %p151 = por %p149, %p150
      %p152 = scmp.ne.s32.totalorder %s144, %s146
      %p153 = scmp.eq.s32.totalorder %s31, 1
      %p154 = por %p152, %p153
      %p155 = scmp.ne.s32.totalorder %s146, %s147
      %p156 = scmp.eq.s32.totalorder %s31, 0
      %p157 = por %p155, %p156
      %p158 = scmp.ne.s32.totalorder %s146, %s147
      %p159 = scmp.eq.s32.totalorder %s32, 1
      %p160 = por %p158, %p159
      %p162 = scmp.ne.s32.totalorder %s147, %s161
      %p163 = scmp.eq.s32.totalorder %s32, 0
      %p164 = por %p162, %p163
      %s166 = sadd.s32 %s165, 1
      %p169 = scmp.eq.s32.totalorder %s26, 1
      %p170 = scmp.ne.s32.totalorder %s165, %s167
      %p171 = scmp.eq.s32.totalorder %s26, 0
      %p172 = por %p170, %p171
      %p173 = scmp.ne.s32.totalorder %s165, %s167
      %p174 = scmp.eq.s32.totalorder %s31, 1
      %p175 = por %p173, %p174
      %p176 = scmp.ne.s32.totalorder %s167, %s168
      %p177 = scmp.eq.s32.totalorder %s31, 0
      %p178 = por %p176, %p177
      %p179 = scmp.ne.s32.totalorder %s167, %s168
      %p180 = scmp.eq.s32.totalorder %s32, 1
      %p181 = por %p179, %p180
      %p183 = scmp.ne.s32.totalorder %s168, %s182
      %p184 = scmp.eq.s32.totalorder %s32, 0
      %p185 = por %p183, %p184
      %s187 = sadd.s32 %s186, 1
      %p190 = scmp.eq.s32.totalorder %s26, 1
      %p191 = scmp.ne.s32.totalorder %s186, %s188
      %p192 = scmp.eq.s32.totalorder %s26, 0
      %p193 = por %p191, %p192
      %p194 = scmp.ne.s32.totalorder %s186, %s188
      %p195 = scmp.eq.s32.totalorder %s31, 1
      %p196 = por %p194, %p195
      %p197 = scmp.ne.s32.totalorder %s188, %s189
      %p198 = scmp.eq.s32.totalorder %s31, 0
      %p199 = por %p197, %p198
      %p200 = scmp.ne.s32.totalorder %s188, %s189
      %p201 = scmp.eq.s32.totalorder %s32, 1
      %p202 = por %p200, %p201
      %p204 = scmp.ne.s32.totalorder %s189, %s203
      %p205 = scmp.eq.s32.totalorder %s32, 0
      %p206 = por %p204, %p205
      %s208 = sadd.s32 %s207, 1
      %p211 = scmp.eq.s32.totalorder %s26, 1
      %p212 = scmp.ne.s32.totalorder %s207, %s209
      %p213 = scmp.eq.s32.totalorder %s26, 0
      %p214 = por %p212, %p213
      %p215 = scmp.ne.s32.totalorder %s207, %s209
      %p216 = scmp.eq.s32.totalorder %s31, 1
      %p217 = por %p215, %p216
      %p218 = scmp.ne.s32.totalorder %s209, %s210
      %p219 = scmp.eq.s32.totalorder %s31, 0
      %p220 = por %p218, %p219
      %p221 = scmp.ne.s32.totalorder %s209, %s210
      %p222 = scmp.eq.s32.totalorder %s32, 1
      %p223 = por %p221, %p222
      %p225 = scmp.ne.s32.totalorder %s210, %s224
      %p226 = scmp.eq.s32.totalorder %s32, 0
      %p227 = por %p225, %p226
      %s229 = sadd.s32 %s228, 1
      %p232 = scmp.eq.s32.totalorder %s26, 1
      %p233 = scmp.ne.s32.totalorder %s228, %s230
      %p234 = scmp.eq.s32.totalorder %s26, 0
      %p235 = por %p233, %p234
      %p236 = scmp.ne.s32.totalorder %s228, %s230
      %p237 = scmp.eq.s32.totalorder %s31, 1
      %p238 = por %p236, %p237
      %p239 = scmp.ne.s32.totalorder %s230, %s231
      %p240 = scmp.eq.s32.totalorder %s31, 0
      %p241 = por %p239, %p240
      %p242 = scmp.ne.s32.totalorder %s230, %s231
      %p243 = scmp.eq.s32.totalorder %s32, 1
      %p244 = por %p242, %p243
      %p246 = scmp.ne.s32.totalorder %s231, %s245
      %p247 = scmp.eq.s32.totalorder %s32, 0
      %p248 = por %p246, %p247
      %s250 = sadd.s32 %s249, 1
      %p253 = scmp.eq.s32.totalorder %s26, 1
      %p254 = scmp.ne.s32.totalorder %s249, %s251
      %p255 = scmp.eq.s32.totalorder %s26, 0
      %p256 = por %p254, %p255
      %p257 = scmp.ne.s32.totalorder %s249, %s251
      %p258 = scmp.eq.s32.totalorder %s31, 1
      %p259 = por %p257, %p258
      %p260 = scmp.ne.s32.totalorder %s251, %s252
      %p261 = scmp.eq.s32.totalorder %s31, 0
      %p262 = por %p260, %p261
      %p263 = scmp.ne.s32.totalorder %s251, %s252
      %p264 = scmp.eq.s32.totalorder %s32, 1
      %p265 = por %p263, %p264
      %p267 = scmp.ne.s32.totalorder %s252, %s266
      %p268 = scmp.eq.s32.totalorder %s32, 0
      %p269 = por %p267, %p268
      %s271 = sadd.s32 %s270, 1
      %p274 = scmp.eq.s32.totalorder %s26, 1
      %p275 = scmp.ne.s32.totalorder %s270, %s272
      %p276 = scmp.eq.s32.totalorder %s26, 0
      %p277 = por %p275, %p276
      %p278 = scmp.ne.s32.totalorder %s270, %s272
      %p279 = scmp.eq.s32.totalorder %s31, 1
      %p280 = por %p278, %p279
      %p281 = scmp.ne.s32.totalorder %s272, %s273
      %p282 = scmp.eq.s32.totalorder %s31, 0
      %p283 = por %p281, %p282
      %p284 = scmp.ne.s32.totalorder %s272, %s273
      %p285 = scmp.eq.s32.totalorder %s32, 1
      %p286 = por %p284, %p285
      %p288 = scmp.ne.s32.totalorder %s273, %s287
      %p289 = scmp.eq.s32.totalorder %s32, 0
      %p290 = por %p288, %p289
      %s292 = sadd.s32 %s291, 1
      %p295 = scmp.eq.s32.totalorder %s26, 1
      %p296 = scmp.ne.s32.totalorder %s291, %s293
      %p297 = scmp.eq.s32.totalorder %s26, 0
      %p298 = por %p296, %p297
      %p299 = scmp.ne.s32.totalorder %s291, %s293
      %p300 = scmp.eq.s32.totalorder %s31, 1
      %p301 = por %p299, %p300
      %p302 = scmp.ne.s32.totalorder %s293, %s294
      %p303 = scmp.eq.s32.totalorder %s31, 0
      %p304 = por %p302, %p303
      %p305 = scmp.ne.s32.totalorder %s293, %s294
      %p306 = scmp.eq.s32.totalorder %s32, 1
      %p307 = por %p305, %p306
      %p309 = scmp.ne.s32.totalorder %s294, %s308
      %p310 = scmp.eq.s32.totalorder %s32, 0
      %p311 = por %p309, %p310
      %s313 = sadd.s32 %s312, 1
      %p316 = scmp.eq.s32.totalorder %s26, 1
      %p317 = scmp.ne.s32.totalorder %s312, %s314
      %p318 = scmp.eq.s32.totalorder %s26, 0
      %p319 = por %p317, %p318
      %p320 = scmp.ne.s32.totalorder %s312, %s314
      %p321 = scmp.eq.s32.totalorder %s31, 1
      %p322 = por %p320, %p321
      %p323 = scmp.ne.s32.totalorder %s314, %s315
      %p324 = scmp.eq.s32.totalorder %s31, 0
      %p325 = por %p323, %p324
      %p326 = scmp.ne.s32.totalorder %s314, %s315
      %p327 = scmp.eq.s32.totalorder %s32, 1
      %p328 = por %p326, %p327
      %p330 = scmp.ne.s32.totalorder %s315, %s329
      %p331 = scmp.eq.s32.totalorder %s32, 0
      %p332 = por %p330, %p331
      %s334 = sadd.s32 %s333, 1
      %p337 = scmp.eq.s32.totalorder %s26, 1
      %p338 = scmp.ne.s32.totalorder %s333, %s335
      %p339 = scmp.eq.s32.totalorder %s26, 0
      %p340 = por %p338, %p339
      %p341 = scmp.ne.s32.totalorder %s333, %s335
      %p342 = scmp.eq.s32.totalorder %s31, 1
      %p343 = por %p341, %p342
      %p344 = scmp.ne.s32.totalorder %s335, %s336
      %p345 = scmp.eq.s32.totalorder %s31, 0
      %p346 = por %p344, %p345
      %p347 = scmp.ne.s32.totalorder %s335, %s336
      %p348 = scmp.eq.s32.totalorder %s32, 1
      %p349 = por %p347, %p348
      %p351 = scmp.ne.s32.totalorder %s336, %s350
      %p352 = scmp.eq.s32.totalorder %s32, 0
      %p353 = por %p351, %p352
      %s355 = sadd.s32 %s354, 1
      %p358 = scmp.eq.s32.totalorder %s26, 1
      %p359 = scmp.ne.s32.totalorder %s354, %s356
      %p360 = scmp.eq.s32.totalorder %s26, 0
      %p361 = por %p359, %p360
      %p362 = scmp.ne.s32.totalorder %s354, %s356
      %p363 = scmp.eq.s32.totalorder %s31, 1
      %p364 = por %p362, %p363
      %p365 = scmp.ne.s32.totalorder %s356, %s357
      %p366 = scmp.eq.s32.totalorder %s31, 0
      %p367 = por %p365, %p366
      %p368 = scmp.ne.s32.totalorder %s356, %s357
      %p369 = scmp.eq.s32.totalorder %s32, 1
      %p370 = por %p368, %p369
      %p372 = scmp.ne.s32.totalorder %s357, %s371
      %p373 = scmp.eq.s32.totalorder %s32, 0
      %p374 = por %p372, %p373
      %s376 = sadd.s32 %s375, 1
      %p379 = scmp.eq.s32.totalorder %s26, 1
      %p380 = scmp.ne.s32.totalorder %s375, %s377
      %p381 = scmp.eq.s32.totalorder %s26, 0
      %p382 = por %p380, %p381
      %p383 = scmp.ne.s32.totalorder %s375, %s377
      %p384 = scmp.eq.s32.totalorder %s31, 1
      %p385 = por %p383, %p384
      %p386 = scmp.ne.s32.totalorder %s377, %s378
      %p387 = scmp.eq.s32.totalorder %s31, 0
      %p388 = por %p386, %p387
      %p389 = scmp.ne.s32.totalorder %s377, %s378
      %p390 = scmp.eq.s32.totalorder %s32, 1
      %p391 = por %p389, %p390
      %p393 = scmp.ne.s32.totalorder %s378, %s392
      %p394 = scmp.eq.s32.totalorder %s32, 0
      %p395 = por %p393, %p394
      %s396 = ssub.s32 %s26, %s33
      %p397 = scmp.eq.s32.totalorder %s396, 0
      %s399 = sadd.s32 %s398, 1
      %s400 = scalar_select %p397, %s398, %s399
      %p403 = pneg %p397
      %p404 = scmp.eq.s32.totalorder %s26, 1
      %p405 = por %p403, %p404
      %p406 = scmp.ne.s32.totalorder %s398, %s401
      %p407 = scmp.eq.s32.totalorder %s26, 0
      %p408 = por %p406, %p407
      %p409 = scmp.ne.s32.totalorder %s398, %s401
      %p410 = scmp.eq.s32.totalorder %s31, 1
      %p411 = por %p409, %p410
      %p412 = scmp.ne.s32.totalorder %s401, %s402
      %p413 = scmp.eq.s32.totalorder %s31, 0
      %p414 = por %p412, %p413
      %p415 = scmp.ne.s32.totalorder %s401, %s402
      %p416 = scmp.eq.s32.totalorder %s32, 1
      %p417 = por %p415, %p416
      %p419 = scmp.ne.s32.totalorder %s402, %s418
      %p420 = scmp.eq.s32.totalorder %s32, 0
      %p421 = por %p419, %p420
      %p422 = scmp.le.s32.totalorder 1, %s26
      %p423 = scmp.lt.s32.totalorder %s26, 3
      %p424 = pnand %p422, %p423
      %p425 = pneg %p424
      // Predicated region
      $region9: #{tpu_custom_call.1} parent=5 // pred_check
        _
      $region10: #{tpu_custom_call.1} parent=5 // pred_check_branch
        %427 = sbr.rel (%p424) target = $region12
      $region11: #{tpu_custom_call.1} parent=5 // pred_region
        %s428 = ssub.s32 %s26, 1
        // Predicated region
        $region13: #{tpu_custom_call.1} parent=11 // pred_check
          %p429 = pneg %p73
        $region14: #{tpu_custom_call.1} parent=11 // pred_check_branch
          %431 = sbr.rel (%p429) target = $region16
        $region15: #{tpu_custom_call.1} parent=11 // pred_region
          _
        $region16: #{tpu_custom_call.1} parent=11 // pred_fallthru
          _
        // Predicated region
        $region17: #{tpu_custom_call.1} parent=11 // pred_check
          %p432 = pneg %p94
        $region18: #{tpu_custom_call.1} parent=11 // pred_check_branch
          %434 = sbr.rel (%p432) target = $region20
        $region19: #{tpu_custom_call.1} parent=11 // pred_region
          _
        $region20: #{tpu_custom_call.1} parent=11 // pred_fallthru
          _
        // Predicated region
        $region21: #{tpu_custom_call.1} parent=11 // pred_check
          %p435 = pneg %p115
        $region22: #{tpu_custom_call.1} parent=11 // pred_check_branch
          %437 = sbr.rel (%p435) target = $region24
        $region23: #{tpu_custom_call.1} parent=11 // pred_region
          _
        $region24: #{tpu_custom_call.1} parent=11 // pred_fallthru
          _
        // Predicated region
        $region25: #{tpu_custom_call.1} parent=11 // pred_check
          %p438 = pneg %p136
        $region26: #{tpu_custom_call.1} parent=11 // pred_check_branch
          %440 = sbr.rel (%p438) target = $region28
        $region27: #{tpu_custom_call.1} parent=11 // pred_region
          _
        $region28: #{tpu_custom_call.1} parent=11 // pred_fallthru
          _
        // Predicated region
        $region29: #{tpu_custom_call.1} parent=11 // pred_check
          %p441 = pneg %p157
        $region30: #{tpu_custom_call.1} parent=11 // pred_check_branch
          %443 = sbr.rel (%p441) target = $region32
        $region31: #{tpu_custom_call.1} parent=11 // pred_region
          _
        $region32: #{tpu_custom_call.1} parent=11 // pred_fallthru
          _
        // Predicated region
        $region33: #{tpu_custom_call.1} parent=11 // pred_check
          %p444 = pneg %p178
        $region34: #{tpu_custom_call.1} parent=11 // pred_check_branch
          %446 = sbr.rel (%p444) target = $region36
        $region35: #{tpu_custom_call.1} parent=11 // pred_region
          _
        $region36: #{tpu_custom_call.1} parent=11 // pred_fallthru
          _
        // Predicated region
        $region37: #{tpu_custom_call.1} parent=11 // pred_check
          %p447 = pneg %p199
        $region38: #{tpu_custom_call.1} parent=11 // pred_check_branch
          %449 = sbr.rel (%p447) target = $region40
        $region39: #{tpu_custom_call.1} parent=11 // pred_region
          _
        $region40: #{tpu_custom_call.1} parent=11 // pred_fallthru
          _
        // Predicated region
        $region41: #{tpu_custom_call.1} parent=11 // pred_check
          %p450 = pneg %p220
        $region42: #{tpu_custom_call.1} parent=11 // pred_check_branch
          %452 = sbr.rel (%p450) target = $region44
        $region43: #{tpu_custom_call.1} parent=11 // pred_region
          _
        $region44: #{tpu_custom_call.1} parent=11 // pred_fallthru
          _
        // Predicated region
        $region45: #{tpu_custom_call.1} parent=11 // pred_check
          %p453 = pneg %p241
        $region46: #{tpu_custom_call.1} parent=11 // pred_check_branch
          %455 = sbr.rel (%p453) target = $region48
        $region47: #{tpu_custom_call.1} parent=11 // pred_region
          _
        $region48: #{tpu_custom_call.1} parent=11 // pred_fallthru
          _
        // Predicated region
        $region49: #{tpu_custom_call.1} parent=11 // pred_check
          %p456 = pneg %p262
        $region50: #{tpu_custom_call.1} parent=11 // pred_check_branch
          %458 = sbr.rel (%p456) target = $region52
        $region51: #{tpu_custom_call.1} parent=11 // pred_region
          _
        $region52: #{tpu_custom_call.1} parent=11 // pred_fallthru
          _
        // Predicated region
        $region53: #{tpu_custom_call.1} parent=11 // pred_check
          %p459 = pneg %p283
        $region54: #{tpu_custom_call.1} parent=11 // pred_check_branch
          %461 = sbr.rel (%p459) target = $region56
        $region55: #{tpu_custom_call.1} parent=11 // pred_region
          _
        $region56: #{tpu_custom_call.1} parent=11 // pred_fallthru
          _
        // Predicated region
        $region57: #{tpu_custom_call.1} parent=11 // pred_check
          %p462 = pneg %p304
        $region58: #{tpu_custom_call.1} parent=11 // pred_check_branch
          %464 = sbr.rel (%p462) target = $region60
        $region59: #{tpu_custom_call.1} parent=11 // pred_region
          _
        $region60: #{tpu_custom_call.1} parent=11 // pred_fallthru
          _
        // Predicated region
        $region61: #{tpu_custom_call.1} parent=11 // pred_check
          %p465 = pneg %p325
        $region62: #{tpu_custom_call.1} parent=11 // pred_check_branch
          %467 = sbr.rel (%p465) target = $region64
        $region63: #{tpu_custom_call.1} parent=11 // pred_region
          _
        $region64: #{tpu_custom_call.1} parent=11 // pred_fallthru
          _
        // Predicated region
        $region65: #{tpu_custom_call.1} parent=11 // pred_check
          %p468 = pneg %p346
        $region66: #{tpu_custom_call.1} parent=11 // pred_check_branch
          %470 = sbr.rel (%p468) target = $region68
        $region67: #{tpu_custom_call.1} parent=11 // pred_region
          _
        $region68: #{tpu_custom_call.1} parent=11 // pred_fallthru
          _
        // Predicated region
        $region69: #{tpu_custom_call.1} parent=11 // pred_check
          %p471 = pneg %p367
        $region70: #{tpu_custom_call.1} parent=11 // pred_check_branch
          %473 = sbr.rel (%p471) target = $region72
        $region71: #{tpu_custom_call.1} parent=11 // pred_region
          _
        $region72: #{tpu_custom_call.1} parent=11 // pred_fallthru
          _
        // Predicated region
        $region73: #{tpu_custom_call.1} parent=11 // pred_check
          %p474 = pneg %p388
        $region74: #{tpu_custom_call.1} parent=11 // pred_check_branch
          %476 = sbr.rel (%p474) target = $region76
        $region75: #{tpu_custom_call.1} parent=11 // pred_region
          _
        $region76: #{tpu_custom_call.1} parent=11 // pred_fallthru
          _
      $region12: #{tpu_custom_call.1} parent=5 // pred_fallthru
        _
      %p477 = scmp.lt.s32.totalorder %s26, 2
      // Predicated region
      $region77: #{tpu_custom_call.1} parent=5 // pred_check
        %p478 = pneg %p477
      $region78: #{tpu_custom_call.1} parent=5 // pred_check_branch
        %480 = sbr.rel (%p478) target = $region80
      $region79: #{tpu_custom_call.1} parent=5 // pred_region
        // Predicated region
        $region81: #{tpu_custom_call.1} parent=79 // pred_check
          %p481 = pneg %p46
        $region82: #{tpu_custom_call.1} parent=79 // pred_check_branch
          %483 = sbr.rel (%p481) target = $region84
        $region83: #{tpu_custom_call.1} parent=79 // pred_region
          %p484 = scmp.lt.s32.totalorder %s26, 1
          %s485 = scalar_select %p484, %s26, 1
          %s486 = smul.addr %s485, 8
          %s487 = scalar_lea.vmem %s0, %s486
        $region84: #{tpu_custom_call.1} parent=79 // pred_fallthru
          _
      $region80: #{tpu_custom_call.1} parent=5 // pred_fallthru
        _
      %p488 = scmp.le.s32.totalorder 1, %s26
      %p489 = scmp.lt.s32.totalorder %s26, 3
      %p490 = pnand %p488, %p489
      %p491 = pneg %p490
      // Predicated region
      $region85: #{tpu_custom_call.1} parent=5 // pred_check
        _
      $region86: #{tpu_custom_call.1} parent=5 // pred_check_branch
        %493 = sbr.rel (%p490) target = $region88
      $region87: #{tpu_custom_call.1} parent=5 // pred_region
        %s494 = ssub.s32 %s26, 1
        %p495 = scmp.lt.s32.totalorder %s31, 1
        %s496 = scalar_select %p495, %s31, 1
        %s497 = smul.addr %s496, 8
        %s498 = scalar_lea.vmem %s0, %s497
        %p499 = pneg %p52
        %p500 = pneg %p49
        %p501 = pneg %p73
        %p502 = pneg %p70
        %p503 = pneg %p94
        %p504 = pneg %p91
        %p505 = pneg %p115
        %p506 = pneg %p112
        %p507 = pneg %p136
        %p508 = pneg %p133
        %p509 = pneg %p157
        %p510 = pneg %p154
        %p511 = pneg %p178
        %p512 = pneg %p175
        %p513 = pneg %p199
        %p514 = pneg %p196
        %p515 = pneg %p220
        %p516 = pneg %p217
        %p517 = pneg %p241
        %p518 = pneg %p238
        %p519 = pneg %p262
        %p520 = pneg %p259
        %p521 = pneg %p283
        %p522 = pneg %p280
        %p523 = pneg %p304
        %p524 = pneg %p301
        %p525 = pneg %p325
        %p526 = pneg %p322
        %p527 = pneg %p346
        %p528 = pneg %p343
        %p529 = pneg %p367
        %p530 = pneg %p364
        %p531 = pneg %p388
        %p532 = pneg %p385
        %p533 = pneg %p414
        %p534 = pneg %p411
        %s535 = sand.u32 %s401, 1
        %s536 = scalar_lea.sflag [#allocation3], %s535
        %s537 = sand.u32 %s401, 1
        %s538 = smul.addr %s537, 8
        %s539 = scalar_lea.vmem [#allocation2], %s538
        %p540 = scmp.lt.s32.totalorder %s31, 1
        %s541 = scalar_select %p540, %s31, 1
        %s542 = smul.addr %s541, 8
        %s543 = scalar_lea.vmem %s0, %s542
        %v545 = vld [vmem:[%s543] sm:$0xff]
        %v546 = vlaneseq
        %v547 = vand.u32 %v546, 127
        %vm548 = vcmp.lt.s32.totalorder %v547, 32
        %v549 = vsel %vm548, 1, 0
        %v550 = vcvt.s32.f32 %v549
        %v551 = vld [vmem:[%s1] sm:$0x1]
        %v552 = vld [vmem:[%s2] sm:$0x1]
        %v553 = vmul.f32 %v545, %v550
        %554 = vadd.xlane.f32.xlu0 %v553
        %v555 = vpop.xlane.xlu0 %554
        %v556 = vmul.f32 %v555, 0.03125
        %v557 = vsub.f32 %v545, %v556
        %v558 = vmul.f32 %v557, %v550
        %v559 = vmul.f32 %v558, %v558
        %560 = vadd.xlane.f32.xlu0 %v559
        %v561 = vpop.xlane.xlu0 %560
        %v562 = vmul.f32 %v561, 0.03125
        %v563 = vadd.f32 %v562, 1e-05
        %v564 = vrsqrt.pop %v563
        %v565 = vmul.f32 %v558, %v564
        %v567 = vlaneseq
        %v568 = vshrl.u32 %v567, 7
        %v569 = vsub.s32 0, %v568
        %v570 = vrot.slane %v551, %v569
        %v572 = vmul.f32 %v565, %v570
        %v574 = vlaneseq
        %v575 = vshrl.u32 %v574, 7
        %v576 = vsub.s32 0, %v575
        %v577 = vrot.slane %v552, %v576
        %v579 = vadd.f32 %v572, %v577
        %v580 = vpack.c.bf16 %v579, %v579
        %v581 = vld [vmem:[%s3] sm:$0xf]
        %v582 = vld [vmem:[%s3 + $0x4] sm:$0xf]
        %v583 = vld [vmem:[%s3 + $0x8] sm:$0xf]
        %v584 = vld [vmem:[%s3 + $0xc] sm:$0xf]
        %v585 = vld [vmem:[%s3 + $0x10] sm:$0xf]
        %v586 = vld [vmem:[%s3 + $0x14] sm:$0xf]
        %v587 = vld [vmem:[%s3 + $0x18] sm:$0xf]
        %v588 = vld [vmem:[%s3 + $0x1c] sm:$0xf]
        %v589 = vld [vmem:[%s3 + $0x20] sm:$0xf]
        %v590 = vld [vmem:[%s3 + $0x24] sm:$0xf]
        %v591 = vld [vmem:[%s3 + $0x28] sm:$0xf]
        %v592 = vld [vmem:[%s3 + $0x2c] sm:$0xf]
        %v593 = vld [vmem:[%s3 + $0x30] sm:$0xf]
        %v594 = vld [vmem:[%s3 + $0x34] sm:$0xf]
        %v595 = vld [vmem:[%s3 + $0x38] sm:$0xf]
        %v596 = vld [vmem:[%s3 + $0x3c] sm:$0xf]
        %v597 = vld [vmem:[%s4] sm:$0x1]
        %v599 = vlaneseq
        %v600 = vshrl.u32 %v599, 7
        %v601 = vsub.s32 0, %v600
        %v602 = vrot.slane %v597, %v601
        %v620 = vunpack.c.l.b16 %v581
        %v621 = vunpack.c.l.b16 %v582
        %v622 = vunpack.c.l.b16 %v583
        %v623 = vunpack.c.l.b16 %v584
        %v624 = vunpack.c.l.b16 %v585
        %v625 = vunpack.c.l.b16 %v586
        %v626 = vunpack.c.l.b16 %v587
        %v627 = vunpack.c.l.b16 %v588
        %v628 = vunpack.c.l.b16 %v589
        %v629 = vunpack.c.l.b16 %v590
        %v630 = vunpack.c.l.b16 %v591
        %v631 = vunpack.c.l.b16 %v592
        %v632 = vunpack.c.l.b16 %v593
        %v633 = vunpack.c.l.b16 %v594
        %v634 = vunpack.c.l.b16 %v595
        %v635 = vunpack.c.l.b16 %v596
        %v636 = vpack.c.b16 %v621, %v620
        %v637 = vpack.c.b16 %v623, %v622
        %v638 = vpack.c.b16 %v625, %v624
        %v639 = vpack.c.b16 %v627, %v626
        %v640 = vpack.c.b16 %v629, %v628
        %v641 = vpack.c.b16 %v631, %v630
        %v642 = vpack.c.b16 %v633, %v632
        %v643 = vpack.c.b16 %v635, %v634
        %652 = vmatprep.subr.bf16.mxu0 0
        %653 = vmatpush1.bf16.msra.mxu0 %v643
        %654 = vmatprep.subr.bf16.mxu0 0
        %655 = vmatpush1.bf16.msra.mxu0 %v642
        %656 = vmatprep.subr.bf16.mxu0 0
        %657 = vmatpush1.bf16.msra.mxu0 %v641
        %658 = vmatprep.subr.bf16.mxu0 0
        %659 = vmatpush1.bf16.msra.mxu0 %v640
        %660 = vmatprep.subr.bf16.mxu0 0
        %661 = vmatpush1.bf16.msra.mxu0 %v639
        %662 = vmatprep.subr.bf16.mxu0 0
        %663 = vmatpush1.bf16.msra.mxu0 %v638
        %664 = vmatprep.subr.bf16.mxu0 0
        %665 = vmatpush1.bf16.msra.mxu0 %v637
        %666 = vmatprep.subr.bf16.mxu0 0
        %667 = vmatpush1.bf16.msra.mxu0 %v636
        %668 = vmatprep.subr.bf16.mxu0 0
        %669 = vmatpush2.bf16.msra.mxu0 0
        %670 = vmatprep.subr.bf16.mxu0 0
        %671 = vmatpush2.bf16.msra.mxu0 0
        %672 = vmatprep.subr.bf16.mxu0 0
        %673 = vmatpush2.bf16.msra.mxu0 0
        %674 = vmatprep.subr.bf16.mxu0 0
        %675 = vmatpush2.bf16.msra.mxu0 0
        %676 = vmatprep.subr.bf16.mxu0 0
        %677 = vmatpush2.bf16.msra.mxu0 0
        %678 = vmatprep.subr.bf16.mxu0 0
        %679 = vmatpush2.bf16.msra.mxu0 0
        %680 = vmatprep.subr.bf16.mxu0 0
        %681 = vmatpush2.bf16.msra.mxu0 0
        %682 = vmatprep.subr.bf16.mxu0 0
        %683 = vmatpush2.bf16.msra.mxu0 0
        %684 = vmatprep.mubr.bf16.mxu0 0
        %685 = vmatmul.mubr.bf16.gmra.mxu0 %v580
        %v686 = vpop.f32.mrf.mxu0
        %v687 = vadd.f32 %v602, %v686
        %v688 = vpop.f32.mrf.mxu0
        %v689 = vpop.f32.mrf.mxu0
        %v690 = vpop.f32.mrf.mxu0
        %691 = vdwg.mxu0
        %v692 = vld [vmem:[%s5] sm:$0xf]
        %v693 = vld [vmem:[%s5 + $0x4] sm:$0xf]
        %v694 = vld [vmem:[%s5 + $0x8] sm:$0xf]
        %v695 = vld [vmem:[%s5 + $0xc] sm:$0xf]
        %v696 = vld [vmem:[%s5 + $0x10] sm:$0xf]
        %v697 = vld [vmem:[%s5 + $0x14] sm:$0xf]
        %v698 = vld [vmem:[%s5 + $0x18] sm:$0xf]
        %v699 = vld [vmem:[%s5 + $0x1c] sm:$0xf]
        %v700 = vld [vmem:[%s5 + $0x20] sm:$0xf]
        %v701 = vld [vmem:[%s5 + $0x24] sm:$0xf]
        %v702 = vld [vmem:[%s5 + $0x28] sm:$0xf]
        %v703 = vld [vmem:[%s5 + $0x2c] sm:$0xf]
        %v704 = vld [vmem:[%s5 + $0x30] sm:$0xf]
        %v705 = vld [vmem:[%s5 + $0x34] sm:$0xf]
        %v706 = vld [vmem:[%s5 + $0x38] sm:$0xf]
        %v707 = vld [vmem:[%s5 + $0x3c] sm:$0xf]
        %v708 = vld [vmem:[%s6] sm:$0x1]
        %v710 = vlaneseq
        %v711 = vshrl.u32 %v710, 7
        %v712 = vsub.s32 0, %v711
        %v713 = vrot.slane %v708, %v712
        %v731 = vunpack.c.l.b16 %v692
        %v732 = vunpack.c.l.b16 %v693
        %v733 = vunpack.c.l.b16 %v694
        %v734 = vunpack.c.l.b16 %v695
        %v735 = vunpack.c.l.b16 %v696
        %v736 = vunpack.c.l.b16 %v697
        %v737 = vunpack.c.l.b16 %v698
        %v738 = vunpack.c.l.b16 %v699
        %v739 = vunpack.c.l.b16 %v700
        %v740 = vunpack.c.l.b16 %v701
        %v741 = vunpack.c.l.b16 %v702
        %v742 = vunpack.c.l.b16 %v703
        %v743 = vunpack.c.l.b16 %v704
        %v744 = vunpack.c.l.b16 %v705
        %v745 = vunpack.c.l.b16 %v706
        %v746 = vunpack.c.l.b16 %v707
        %v747 = vpack.c.b16 %v732, %v731
        %v748 = vpack.c.b16 %v734, %v733
        %v749 = vpack.c.b16 %v736, %v735
        %v750 = vpack.c.b16 %v738, %v737
        %v751 = vpack.c.b16 %v740, %v739
        %v752 = vpack.c.b16 %v742, %v741
        %v753 = vpack.c.b16 %v744, %v743
        %v754 = vpack.c.b16 %v746, %v745
        %763 = vmatprep.subr.bf16.mxu0 0
        %764 = vmatpush1.bf16.msra.mxu0 %v754
        %765 = vmatprep.subr.bf16.mxu0 0
        %766 = vmatpush1.bf16.msra.mxu0 %v753
        %767 = vmatprep.subr.bf16.mxu0 0
        %768 = vmatpush1.bf16.msra.mxu0 %v752
        %769 = vmatprep.subr.bf16.mxu0 0
        %770 = vmatpush1.bf16.msra.mxu0 %v751
        %771 = vmatprep.subr.bf16.mxu0 0
        %772 = vmatpush1.bf16.msra.mxu0 %v750
        %773 = vmatprep.subr.bf16.mxu0 0
        %774 = vmatpush1.bf16.msra.mxu0 %v749
        %775 = vmatprep.subr.bf16.mxu0 0
        %776 = vmatpush1.bf16.msra.mxu0 %v748
        %777 = vmatprep.subr.bf16.mxu0 0
        %778 = vmatpush1.bf16.msra.mxu0 %v747
        %779 = vmatprep.subr.bf16.mxu0 0
        %780 = vmatpush2.bf16.msra.mxu0 0
        %781 = vmatprep.subr.bf16.mxu0 0
        %782 = vmatpush2.bf16.msra.mxu0 0
        %783 = vmatprep.subr.bf16.mxu0 0
        %784 = vmatpush2.bf16.msra.mxu0 0
        %785 = vmatprep.subr.bf16.mxu0 0
        %786 = vmatpush2.bf16.msra.mxu0 0
        %787 = vmatprep.subr.bf16.mxu0 0
        %788 = vmatpush2.bf16.msra.mxu0 0
        %789 = vmatprep.subr.bf16.mxu0 0
        %790 = vmatpush2.bf16.msra.mxu0 0
        %791 = vmatprep.subr.bf16.mxu0 0
        %792 = vmatpush2.bf16.msra.mxu0 0
        %793 = vmatprep.subr.bf16.mxu0 0
        %794 = vmatpush2.bf16.msra.mxu0 0
        %795 = vmatprep.mubr.bf16.mxu0 0
        %796 = vmatmul.mubr.bf16.gmra.mxu0 %v580
        %v797 = vpop.f32.mrf.mxu0
        %v798 = vadd.f32 %v713, %v797
        %v799 = vpop.f32.mrf.mxu0
        %v800 = vpop.f32.mrf.mxu0
        %v801 = vpop.f32.mrf.mxu0
        %802 = vdwg.mxu0
        %v803 = vld [vmem:[%s7] sm:$0xf]
        %v804 = vld [vmem:[%s7 + $0x4] sm:$0xf]
        %v805 = vld [vmem:[%s7 + $0x8] sm:$0xf]
        %v806 = vld [vmem:[%s7 + $0xc] sm:$0xf]
        %v807 = vld [vmem:[%s7 + $0x10] sm:$0xf]
        %v808 = vld [vmem:[%s7 + $0x14] sm:$0xf]
        %v809 = vld [vmem:[%s7 + $0x18] sm:$0xf]
        %v810 = vld [vmem:[%s7 + $0x1c] sm:$0xf]
        %v811 = vld [vmem:[%s7 + $0x20] sm:$0xf]
        %v812 = vld [vmem:[%s7 + $0x24] sm:$0xf]
        %v813 = vld [vmem:[%s7 + $0x28] sm:$0xf]
        %v814 = vld [vmem:[%s7 + $0x2c] sm:$0xf]
        %v815 = vld [vmem:[%s7 + $0x30] sm:$0xf]
        %v816 = vld [vmem:[%s7 + $0x34] sm:$0xf]
        %v817 = vld [vmem:[%s7 + $0x38] sm:$0xf]
        %v818 = vld [vmem:[%s7 + $0x3c] sm:$0xf]
        %v819 = vld [vmem:[%s8] sm:$0x1]
        %v821 = vlaneseq
        %v822 = vshrl.u32 %v821, 7
        %v823 = vsub.s32 0, %v822
        %v824 = vrot.slane %v819, %v823
        %v842 = vunpack.c.l.b16 %v803
        %v843 = vunpack.c.l.b16 %v804
        %v844 = vunpack.c.l.b16 %v805
        %v845 = vunpack.c.l.b16 %v806
        %v846 = vunpack.c.l.b16 %v807
        %v847 = vunpack.c.l.b16 %v808
        %v848 = vunpack.c.l.b16 %v809
        %v849 = vunpack.c.l.b16 %v810
        %v850 = vunpack.c.l.b16 %v811
        %v851 = vunpack.c.l.b16 %v812
        %v852 = vunpack.c.l.b16 %v813
        %v853 = vunpack.c.l.b16 %v814
        %v854 = vunpack.c.l.b16 %v815
        %v855 = vunpack.c.l.b16 %v816
        %v856 = vunpack.c.l.b16 %v817
        %v857 = vunpack.c.l.b16 %v818
        %v858 = vpack.c.b16 %v843, %v842
        %v859 = vpack.c.b16 %v845, %v844
        %v860 = vpack.c.b16 %v847, %v846
        %v861 = vpack.c.b16 %v849, %v848
        %v862 = vpack.c.b16 %v851, %v850
        %v863 = vpack.c.b16 %v853, %v852
        %v864 = vpack.c.b16 %v855, %v854
        %v865 = vpack.c.b16 %v857, %v856
        %874 = vmatprep.subr.bf16.mxu0 0
        %875 = vmatpush1.bf16.msra.mxu0 %v865
        %876 = vmatprep.subr.bf16.mxu0 0
        %877 = vmatpush1.bf16.msra.mxu0 %v864
        %878 = vmatprep.subr.bf16.mxu0 0
        %879 = vmatpush1.bf16.msra.mxu0 %v863
        %880 = vmatprep.subr.bf16.mxu0 0
        %881 = vmatpush1.bf16.msra.mxu0 %v862
        %882 = vmatprep.subr.bf16.mxu0 0
        %883 = vmatpush1.bf16.msra.mxu0 %v861
        %884 = vmatprep.subr.bf16.mxu0 0
        %885 = vmatpush1.bf16.msra.mxu0 %v860
        %886 = vmatprep.subr.bf16.mxu0 0
        %887 = vmatpush1.bf16.msra.mxu0 %v859
        %888 = vmatprep.subr.bf16.mxu0 0
        %889 = vmatpush1.bf16.msra.mxu0 %v858
        %890 = vmatprep.subr.bf16.mxu0 0
        %891 = vmatpush2.bf16.msra.mxu0 0
        %892 = vmatprep.subr.bf16.mxu0 0
        %893 = vmatpush2.bf16.msra.mxu0 0
        %894 = vmatprep.subr.bf16.mxu0 0
        %895 = vmatpush2.bf16.msra.mxu0 0
        %896 = vmatprep.subr.bf16.mxu0 0
        %897 = vmatpush2.bf16.msra.mxu0 0
        %898 = vmatprep.subr.bf16.mxu0 0
        %899 = vmatpush2.bf16.msra.mxu0 0
        %900 = vmatprep.subr.bf16.mxu0 0
        %901 = vmatpush2.bf16.msra.mxu0 0
        %902 = vmatprep.subr.bf16.mxu0 0
        %903 = vmatpush2.bf16.msra.mxu0 0
        %904 = vmatprep.subr.bf16.mxu0 0
        %905 = vmatpush2.bf16.msra.mxu0 0
        %906 = vmatprep.mubr.bf16.mxu0 0
        %907 = vmatmul.mubr.bf16.gmra.mxu0 %v580
        %v908 = vpop.f32.mrf.mxu0
        %v909 = vadd.f32 %v824, %v908
        %v910 = vpop.f32.mrf.mxu0
        %v911 = vpop.f32.mrf.mxu0
        %v912 = vpop.f32.mrf.mxu0
        %913 = vdwg.mxu0
        %v914 = vpack.c.bf16 %v687, %v687
        %v915 = vpack.c.bf16 %v798, %v798
        %v916 = vpack.c.bf16 %v909, %v909
        %vm917 = vcmask 64512
        %v919 = vsel %vm917, %v914, 0
        %v922 = vsel %vm917, %v915, 0
        %924 = vmatprep.subr.bf16.mxu0 0
        %925 = vmatpush1.bf16.xpose.msra.mxu0 0
        %926 = vmatprep.subr.bf16.mxu0 0
        %927 = vmatpush1.bf16.xpose.msra.mxu0 0
        %928 = vmatprep.subr.bf16.mxu0 0
        %929 = vmatpush1.bf16.xpose.msra.mxu0 0
        %930 = vmatprep.subr.bf16.mxu0 0
        %931 = vmatpush1.bf16.xpose.msra.mxu0 0
        %932 = vmatprep.subr.bf16.mxu0 0
        %933 = vmatpush1.bf16.xpose.msra.mxu0 0
        %934 = vmatprep.subr.bf16.mxu0 0
        %935 = vmatpush1.bf16.xpose.msra.mxu0 0
        %936 = vmatprep.subr.bf16.mxu0 0
        %937 = vmatpush1.bf16.xpose.msra.mxu0 0
        %938 = vmatprep.subr.bf16.mxu0 0
        %939 = vmatpush1.bf16.xpose.msra.mxu0 %v922
        %940 = vmatprep.subr.bf16.mxu0 0
        %941 = vmatpush2.bf16.xpose.msra.mxu0 0
        %942 = vmatprep.subr.bf16.mxu0 0
        %943 = vmatpush2.bf16.xpose.msra.mxu0 0
        %944 = vmatprep.subr.bf16.mxu0 0
        %945 = vmatpush2.bf16.xpose.msra.mxu0 0
        %946 = vmatprep.subr.bf16.mxu0 0
        %947 = vmatpush2.bf16.xpose.msra.mxu0 0
        %948 = vmatprep.subr.bf16.mxu0 0
        %949 = vmatpush2.bf16.xpose.msra.mxu0 0
        %950 = vmatprep.subr.bf16.mxu0 0
        %951 = vmatpush2.bf16.xpose.msra.mxu0 0
        %952 = vmatprep.subr.bf16.mxu0 0
        %953 = vmatpush2.bf16.xpose.msra.mxu0 0
        %954 = vmatprep.subr.bf16.mxu0 0
        %955 = vmatpush2.bf16.xpose.msra.mxu0 0
        %956 = vmatprep.mubr.bf16.mxu0 0
        %957 = vmatmul.mubr.bf16.gmra.mxu0 %v919
        %v958 = vpop.f32.mrf.mxu0
        %v959 = vadd.f32 0.0, %v958
        %v960 = vpop.f32.mrf.mxu0
        %v961 = vpop.f32.mrf.mxu0
        %v962 = vpop.f32.mrf.mxu0
        %963 = vdwg.mxu0
        %v964 = vsel %vm917, %v959, -inf
        %965 = vmax.xlane.f32.xlu0 %v964
        %v966 = vpop.xlane.xlu0 %965
        %v967 = vsub.f32 %v959, %v966
        %v968 = vmul.f32 %v967, 1.442695
        %v969 = vpow.pop %v968
        %v970 = vsel %vm917, %v969, 0.0
        %971 = vadd.xlane.f32.xlu0 %v970
        %v972 = vpop.xlane.xlu0 %971
        %v973 = vpack.c.bf16 %v969, %v969
        %v975 = vsel %vm917, %v973, 0
        %vm977 = vcmask 1043456
        %v979 = vsel %vm977, %v916, 0
        %981 = vmatprep.subr.bf16.mxu0 0
        %982 = vmatpush1.bf16.msra.mxu0 0
        %983 = vmatprep.subr.bf16.mxu0 0
        %984 = vmatpush1.bf16.msra.mxu0 0
        %985 = vmatprep.subr.bf16.mxu0 0
        %986 = vmatpush1.bf16.msra.mxu0 0
        %987 = vmatprep.subr.bf16.mxu0 0
        %988 = vmatpush1.bf16.msra.mxu0 0
        %989 = vmatprep.subr.bf16.mxu0 0
        %990 = vmatpush1.bf16.msra.mxu0 0
        %991 = vmatprep.subr.bf16.mxu0 0
        %992 = vmatpush1.bf16.msra.mxu0 0
        %993 = vmatprep.subr.bf16.mxu0 0
        %994 = vmatpush1.bf16.msra.mxu0 0
        %995 = vmatprep.subr.bf16.mxu0 0
        %996 = vmatpush1.bf16.msra.mxu0 %v979
        %997 = vmatprep.subr.bf16.mxu0 0
        %998 = vmatpush2.bf16.msra.mxu0 0
        %999 = vmatprep.subr.bf16.mxu0 0
        %1000 = vmatpush2.bf16.msra.mxu0 0
        %1001 = vmatprep.subr.bf16.mxu0 0
        %1002 = vmatpush2.bf16.msra.mxu0 0
        %1003 = vmatprep.subr.bf16.mxu0 0
        %1004 = vmatpush2.bf16.msra.mxu0 0
        %1005 = vmatprep.subr.bf16.mxu0 0
        %1006 = vmatpush2.bf16.msra.mxu0 0
        %1007 = vmatprep.subr.bf16.mxu0 0
        %1008 = vmatpush2.bf16.msra.mxu0 0
        %1009 = vmatprep.subr.bf16.mxu0 0
        %1010 = vmatpush2.bf16.msra.mxu0 0
        %1011 = vmatprep.subr.bf16.mxu0 0
        %1012 = vmatpush2.bf16.msra.mxu0 0
        %1013 = vmatprep.mubr.bf16.mxu0 0
        %1014 = vmatmul.mubr.bf16.gmra.mxu0 %v975
        %v1015 = vpop.f32.mrf.mxu0
        %v1016 = vadd.f32 0.0, %v1015
        %v1017 = vpop.f32.mrf.mxu0
        %v1018 = vpop.f32.mrf.mxu0
        %v1019 = vpop.f32.mrf.mxu0
        %1020 = vdwg.mxu0
        %v1021 = vrcp.pop %v972
        %v1022 = vmul.f32 %v1016, %v1021
        %v1023 = vpack.c.bf16 %v1022, %v1022
        %v1024 = vld [vmem:[%s9] sm:$0xf]
        %1026 = vrot.lane.b32.xlu0 %v914, 120
        %v1027 = vpop.permute.xlu0 %1026
        %1029 = vrot.lane.b32.xlu0 %v915, 120
        %v1030 = vpop.permute.xlu0 %1029
        %v1032 = vsel %vm917, %v1027, 0
        %v1035 = vsel %vm917, %v1030, 0
        %1037 = vmatprep.subr.bf16.mxu0 0
        %1038 = vmatpush1.bf16.xpose.msra.mxu0 0
        %1039 = vmatprep.subr.bf16.mxu0 0
        %1040 = vmatpush1.bf16.xpose.msra.mxu0 0
        %1041 = vmatprep.subr.bf16.mxu0 0
        %1042 = vmatpush1.bf16.xpose.msra.mxu0 0
        %1043 = vmatprep.subr.bf16.mxu0 0
        %1044 = vmatpush1.bf16.xpose.msra.mxu0 0
        %1045 = vmatprep.subr.bf16.mxu0 0
        %1046 = vmatpush1.bf16.xpose.msra.mxu0 0
        %1047 = vmatprep.subr.bf16.mxu0 0
        %1048 = vmatpush1.bf16.xpose.msra.mxu0 0
        %1049 = vmatprep.subr.bf16.mxu0 0
        %1050 = vmatpush1.bf16.xpose.msra.mxu0 0
        %1051 = vmatprep.subr.bf16.mxu0 0
        %1052 = vmatpush1.bf16.xpose.msra.mxu0 %v1035
        %1053 = vmatprep.subr.bf16.mxu0 0
        %1054 = vmatpush2.bf16.xpose.msra.mxu0 0
        %1055 = vmatprep.subr.bf16.mxu0 0
        %1056 = vmatpush2.bf16.xpose.msra.mxu0 0
        %1057 = vmatprep.subr.bf16.mxu0 0
        %1058 = vmatpush2.bf16.xpose.msra.mxu0 0
        %1059 = vmatprep.subr.bf16.mxu0 0
        %1060 = vmatpush2.bf16.xpose.msra.mxu0 0
        %1061 = vmatprep.subr.bf16.mxu0 0
        %1062 = vmatpush2.bf16.xpose.msra.mxu0 0
        %1063 = vmatprep.subr.bf16.mxu0 0
        %1064 = vmatpush2.bf16.xpose.msra.mxu0 0
        %1065 = vmatprep.subr.bf16.mxu0 0
        %1066 = vmatpush2.bf16.xpose.msra.mxu0 0
        %1067 = vmatprep.subr.bf16.mxu0 0
        %1068 = vmatpush2.bf16.xpose.msra.mxu0 0
        %1069 = vmatprep.mubr.bf16.mxu0 0
        %1070 = vmatmul.mubr.bf16.gmra.mxu0 %v1032
        %v1071 = vpop.f32.mrf.mxu0
        %v1072 = vadd.f32 0.0, %v1071
        %v1073 = vpop.f32.mrf.mxu0
        %v1074 = vpop.f32.mrf.mxu0
        %v1075 = vpop.f32.mrf.mxu0
        %1076 = vdwg.mxu0
        %v1077 = vsel %vm917, %v1072, -inf
        %1078 = vmax.xlane.f32.xlu0 %v1077
        %v1079 = vpop.xlane.xlu0 %1078
        %v1080 = vsub.f32 %v1072, %v1079
        %v1081 = vmul.f32 %v1080, 1.442695
        %v1082 = vpow.pop %v1081
        %v1083 = vsel %vm917, %v1082, 0.0
        %1084 = vadd.xlane.f32.xlu0 %v1083
        %v1085 = vpop.xlane.xlu0 %1084
        %v1086 = vpack.c.bf16 %v1082, %v1082
        %1088 = vrot.lane.b32.xlu0 %v916, 120
        %v1089 = vpop.permute.xlu0 %1088
        %v1091 = vsel %vm917, %v1086, 0
        %v1094 = vsel %vm977, %v1089, 0
        %1096 = vmatprep.subr.bf16.mxu0 0
        %1097 = vmatpush1.bf16.msra.mxu0 0
        %1098 = vmatprep.subr.bf16.mxu0 0
        %1099 = vmatpush1.bf16.msra.mxu0 0
        %1100 = vmatprep.subr.bf16.mxu0 0
        %1101 = vmatpush1.bf16.msra.mxu0 0
        %1102 = vmatprep.subr.bf16.mxu0 0
        %1103 = vmatpush1.bf16.msra.mxu0 0
        %1104 = vmatprep.subr.bf16.mxu0 0
        %1105 = vmatpush1.bf16.msra.mxu0 0
        %1106 = vmatprep.subr.bf16.mxu0 0
        %1107 = vmatpush1.bf16.msra.mxu0 0
        %1108 = vmatprep.subr.bf16.mxu0 0
        %1109 = vmatpush1.bf16.msra.mxu0 0
        %1110 = vmatprep.subr.bf16.mxu0 0
        %1111 = vmatpush1.bf16.msra.mxu0 %v1094
        %1112 = vmatprep.subr.bf16.mxu0 0
        %1113 = vmatpush2.bf16.msra.mxu0 0
        %1114 = vmatprep.subr.bf16.mxu0 0
        %1115 = vmatpush2.bf16.msra.mxu0 0
        %1116 = vmatprep.subr.bf16.mxu0 0
        %1117 = vmatpush2.bf16.msra.mxu0 0
        %1118 = vmatprep.subr.bf16.mxu0 0
        %1119 = vmatpush2.bf16.msra.mxu0 0
        %1120 = vmatprep.subr.bf16.mxu0 0
        %1121 = vmatpush2.bf16.msra.mxu0 0
        %1122 = vmatprep.subr.bf16.mxu0 0
        %1123 = vmatpush2.bf16.msra.mxu0 0
        %1124 = vmatprep.subr.bf16.mxu0 0
        %1125 = vmatpush2.bf16.msra.mxu0 0
        %1126 = vmatprep.subr.bf16.mxu0 0
        %1127 = vmatpush2.bf16.msra.mxu0 0
        %1128 = vmatprep.mubr.bf16.mxu0 0
        %1129 = vmatmul.mubr.bf16.gmra.mxu0 %v1091
        %v1130 = vpop.f32.mrf.mxu0
        %v1131 = vadd.f32 0.0, %v1130
        %v1132 = vpop.f32.mrf.mxu0
        %v1133 = vpop.f32.mrf.mxu0
        %v1134 = vpop.f32.mrf.mxu0
        %1135 = vdwg.mxu0
        %v1136 = vrcp.pop %v1085
        %v1137 = vmul.f32 %v1131, %v1136
        %v1138 = vpack.c.bf16 %v1137, %v1137
        %s1139 = scalar_lea.vmem %s9, 4
        %v1140 = vld [vmem:[%s1139] sm:$0xf]
        %v1142 = vsel %vm917, %v1138, 0
        %v1145 = vsel %vm977, %v1140, 0
        %1147 = vmatprep.subr.bf16.mxu0 0
        %1148 = vmatpush1.bf16.msra.mxu0 0
        %1149 = vmatprep.subr.bf16.mxu0 0
        %1150 = vmatpush1.bf16.msra.mxu0 0
        %1151 = vmatprep.subr.bf16.mxu0 0
        %1152 = vmatpush1.bf16.msra.mxu0 0
        %1153 = vmatprep.subr.bf16.mxu0 0
        %1154 = vmatpush1.bf16.msra.mxu0 0
        %1155 = vmatprep.subr.bf16.mxu0 0
        %1156 = vmatpush1.bf16.msra.mxu0 0
        %1157 = vmatprep.subr.bf16.mxu0 0
        %1158 = vmatpush1.bf16.msra.mxu0 0
        %1159 = vmatprep.subr.bf16.mxu0 0
        %1160 = vmatpush1.bf16.msra.mxu0 0
        %1161 = vmatprep.subr.bf16.mxu0 0
        %1162 = vmatpush1.bf16.msra.mxu0 %v1145
        %1163 = vmatprep.subr.bf16.mxu0 0
        %1164 = vmatpush2.bf16.msra.mxu0 0
        %1165 = vmatprep.subr.bf16.mxu0 0
        %1166 = vmatpush2.bf16.msra.mxu0 0
        %1167 = vmatprep.subr.bf16.mxu0 0
        %1168 = vmatpush2.bf16.msra.mxu0 0
        %1169 = vmatprep.subr.bf16.mxu0 0
        %1170 = vmatpush2.bf16.msra.mxu0 0
        %1171 = vmatprep.subr.bf16.mxu0 0
        %1172 = vmatpush2.bf16.msra.mxu0 0
        %1173 = vmatprep.subr.bf16.mxu0 0
        %1174 = vmatpush2.bf16.msra.mxu0 0
        %1175 = vmatprep.subr.bf16.mxu0 0
        %1176 = vmatpush2.bf16.msra.mxu0 0
        %1177 = vmatprep.subr.bf16.mxu0 0
        %1178 = vmatpush2.bf16.msra.mxu0 0
        %1179 = vmatprep.mubr.bf16.mxu0 0
        %1180 = vmatmul.mubr.bf16.gmra.mxu0 %v1142
        %v1181 = vpop.f32.mrf.mxu0
        %v1182 = vadd.f32 0.0, %v1181
        %v1183 = vpop.f32.mrf.mxu0
        %v1184 = vpop.f32.mrf.mxu0
        %v1185 = vpop.f32.mrf.mxu0
        %1186 = vdwg.mxu0
        %v1188 = vsel %vm917, %v1023, 0
        %v1191 = vsel %vm977, %v1024, 0
        %1193 = vmatprep.subr.bf16.mxu0 0
        %1194 = vmatpush1.bf16.msra.mxu0 0
        %1195 = vmatprep.subr.bf16.mxu0 0
        %1196 = vmatpush1.bf16.msra.mxu0 0
        %1197 = vmatprep.subr.bf16.mxu0 0
        %1198 = vmatpush1.bf16.msra.mxu0 0
        %1199 = vmatprep.subr.bf16.mxu0 0
        %1200 = vmatpush1.bf16.msra.mxu0 0
        %1201 = vmatprep.subr.bf16.mxu0 0
        %1202 = vmatpush1.bf16.msra.mxu0 0
        %1203 = vmatprep.subr.bf16.mxu0 0
        %1204 = vmatpush1.bf16.msra.mxu0 0
        %1205 = vmatprep.subr.bf16.mxu0 0
        %1206 = vmatpush1.bf16.msra.mxu0 0
        %1207 = vmatprep.subr.bf16.mxu0 0
        %1208 = vmatpush1.bf16.msra.mxu0 %v1191
        %1209 = vmatprep.subr.bf16.mxu0 0
        %1210 = vmatpush2.bf16.msra.mxu0 0
        %1211 = vmatprep.subr.bf16.mxu0 0
        %1212 = vmatpush2.bf16.msra.mxu0 0
        %1213 = vmatprep.subr.bf16.mxu0 0
        %1214 = vmatpush2.bf16.msra.mxu0 0
        %1215 = vmatprep.subr.bf16.mxu0 0
        %1216 = vmatpush2.bf16.msra.mxu0 0
        %1217 = vmatprep.subr.bf16.mxu0 0
        %1218 = vmatpush2.bf16.msra.mxu0 0
        %1219 = vmatprep.subr.bf16.mxu0 0
        %1220 = vmatpush2.bf16.msra.mxu0 0
        %1221 = vmatprep.subr.bf16.mxu0 0
        %1222 = vmatpush2.bf16.msra.mxu0 0
        %1223 = vmatprep.subr.bf16.mxu0 0
        %1224 = vmatpush2.bf16.msra.mxu0 0
        %1225 = vmatprep.mubr.bf16.mxu0 0
        %1226 = vmatmul.mubr.bf16.gmra.mxu0 %v1188
        %v1227 = vpop.f32.mrf.mxu0
        %v1228 = vadd.f32 %v1182, %v1227
        %v1229 = vpop.f32.mrf.mxu0
        %v1230 = vpop.f32.mrf.mxu0
        %v1231 = vpop.f32.mrf.mxu0
        %1232 = vdwg.mxu0
        %1233 = vrot.lane.b32.xlu0 %v914, 112
        %v1234 = vpop.permute.xlu0 %1233
        %1235 = vrot.lane.b32.xlu0 %v915, 112
        %v1236 = vpop.permute.xlu0 %1235
        %v1238 = vsel %vm917, %v1234, 0
        %v1241 = vsel %vm917, %v1236, 0
        %1243 = vmatprep.subr.bf16.mxu0 0
        %1244 = vmatpush1.bf16.xpose.msra.mxu0 0
        %1245 = vmatprep.subr.bf16.mxu0 0
        %1246 = vmatpush1.bf16.xpose.msra.mxu0 0
        %1247 = vmatprep.subr.bf16.mxu0 0
        %1248 = vmatpush1.bf16.xpose.msra.mxu0 0
        %1249 = vmatprep.subr.bf16.mxu0 0
        %1250 = vmatpush1.bf16.xpose.msra.mxu0 0
        %1251 = vmatprep.subr.bf16.mxu0 0
        %1252 = vmatpush1.bf16.xpose.msra.mxu0 0
        %1253 = vmatprep.subr.bf16.mxu0 0
        %1254 = vmatpush1.bf16.xpose.msra.mxu0 0
        %1255 = vmatprep.subr.bf16.mxu0 0
        %1256 = vmatpush1.bf16.xpose.msra.mxu0 0
        %1257 = vmatprep.subr.bf16.mxu0 0
        %1258 = vmatpush1.bf16.xpose.msra.mxu0 %v1241
        %1259 = vmatprep.subr.bf16.mxu0 0
        %1260 = vmatpush2.bf16.xpose.msra.mxu0 0
        %1261 = vmatprep.subr.bf16.mxu0 0
        %1262 = vmatpush2.bf16.xpose.msra.mxu0 0
        %1263 = vmatprep.subr.bf16.mxu0 0
        %1264 = vmatpush2.bf16.xpose.msra.mxu0 0
        %1265 = vmatprep.subr.bf16.mxu0 0
        %1266 = vmatpush2.bf16.xpose.msra.mxu0 0
        %1267 = vmatprep.subr.bf16.mxu0 0
        %1268 = vmatpush2.bf16.xpose.msra.mxu0 0
        %1269 = vmatprep.subr.bf16.mxu0 0
        %1270 = vmatpush2.bf16.xpose.msra.mxu0 0
        %1271 = vmatprep.subr.bf16.mxu0 0
        %1272 = vmatpush2.bf16.xpose.msra.mxu0 0
        %1273 = vmatprep.subr.bf16.mxu0 0
        %1274 = vmatpush2.bf16.xpose.msra.mxu0 0
        %1275 = vmatprep.mubr.bf16.mxu0 0
        %1276 = vmatmul.mubr.bf16.gmra.mxu0 %v1238
        %v1277 = vpop.f32.mrf.mxu0
        %v1278 = vadd.f32 0.0, %v1277
        %v1279 = vpop.f32.mrf.mxu0
        %v1280 = vpop.f32.mrf.mxu0
        %v1281 = vpop.f32.mrf.mxu0
        %1282 = vdwg.mxu0
        %v1283 = vsel %vm917, %v1278, -inf
        %1284 = vmax.xlane.f32.xlu0 %v1283
        %v1285 = vpop.xlane.xlu0 %1284
        %v1286 = vsub.f32 %v1278, %v1285
        %v1287 = vmul.f32 %v1286, 1.442695
        %v1288 = vpow.pop %v1287
        %v1289 = vsel %vm917, %v1288, 0.0
        %1290 = vadd.xlane.f32.xlu0 %v1289
        %v1291 = vpop.xlane.xlu0 %1290
        %v1292 = vpack.c.bf16 %v1288, %v1288
        %1293 = vrot.lane.b32.xlu0 %v916, 112
        %v1294 = vpop.permute.xlu0 %1293
        %v1296 = vsel %vm917, %v1292, 0
        %v1299 = vsel %vm977, %v1294, 0
        %1301 = vmatprep.subr.bf16.mxu0 0
        %1302 = vmatpush1.bf16.msra.mxu0 0
        %1303 = vmatprep.subr.bf16.mxu0 0
        %1304 = vmatpush1.bf16.msra.mxu0 0
        %1305 = vmatprep.subr.bf16.mxu0 0
        %1306 = vmatpush1.bf16.msra.mxu0 0
        %1307 = vmatprep.subr.bf16.mxu0 0
        %1308 = vmatpush1.bf16.msra.mxu0 0
        %1309 = vmatprep.subr.bf16.mxu0 0
        %1310 = vmatpush1.bf16.msra.mxu0 0
        %1311 = vmatprep.subr.bf16.mxu0 0
        %1312 = vmatpush1.bf16.msra.mxu0 0
        %1313 = vmatprep.subr.bf16.mxu0 0
        %1314 = vmatpush1.bf16.msra.mxu0 0
        %1315 = vmatprep.subr.bf16.mxu0 0
        %1316 = vmatpush1.bf16.msra.mxu0 %v1299
        %1317 = vmatprep.subr.bf16.mxu0 0
        %1318 = vmatpush2.bf16.msra.mxu0 0
        %1319 = vmatprep.subr.bf16.mxu0 0
        %1320 = vmatpush2.bf16.msra.mxu0 0
        %1321 = vmatprep.subr.bf16.mxu0 0
        %1322 = vmatpush2.bf16.msra.mxu0 0
        %1323 = vmatprep.subr.bf16.mxu0 0
        %1324 = vmatpush2.bf16.msra.mxu0 0
        %1325 = vmatprep.subr.bf16.mxu0 0
        %1326 = vmatpush2.bf16.msra.mxu0 0
        %1327 = vmatprep.subr.bf16.mxu0 0
        %1328 = vmatpush2.bf16.msra.mxu0 0
        %1329 = vmatprep.subr.bf16.mxu0 0
        %1330 = vmatpush2.bf16.msra.mxu0 0
        %1331 = vmatprep.subr.bf16.mxu0 0
        %1332 = vmatpush2.bf16.msra.mxu0 0
        %1333 = vmatprep.mubr.bf16.mxu0 0
        %1334 = vmatmul.mubr.bf16.gmra.mxu0 %v1296
        %v1335 = vpop.f32.mrf.mxu0
        %v1336 = vadd.f32 0.0, %v1335
        %v1337 = vpop.f32.mrf.mxu0
        %v1338 = vpop.f32.mrf.mxu0
        %v1339 = vpop.f32.mrf.mxu0
        %1340 = vdwg.mxu0
        %v1341 = vrcp.pop %v1291
        %v1342 = vmul.f32 %v1336, %v1341
        %v1343 = vpack.c.bf16 %v1342, %v1342
        %s1344 = scalar_lea.vmem %s9, 8
        %v1345 = vld [vmem:[%s1344] sm:$0xf]
        %v1347 = vsel %vm917, %v1343, 0
        %v1350 = vsel %vm977, %v1345, 0
        %1352 = vmatprep.subr.bf16.mxu0 0
        %1353 = vmatpush1.bf16.msra.mxu0 0
        %1354 = vmatprep.subr.bf16.mxu0 0
        %1355 = vmatpush1.bf16.msra.mxu0 0
        %1356 = vmatprep.subr.bf16.mxu0 0
        %1357 = vmatpush1.bf16.msra.mxu0 0
        %1358 = vmatprep.subr.bf16.mxu0 0
        %1359 = vmatpush1.bf16.msra.mxu0 0
        %1360 = vmatprep.subr.bf16.mxu0 0
        %1361 = vmatpush1.bf16.msra.mxu0 0
        %1362 = vmatprep.subr.bf16.mxu0 0
        %1363 = vmatpush1.bf16.msra.mxu0 0
        %1364 = vmatprep.subr.bf16.mxu0 0
        %1365 = vmatpush1.bf16.msra.mxu0 0
        %1366 = vmatprep.subr.bf16.mxu0 0
        %1367 = vmatpush1.bf16.msra.mxu0 %v1350
        %1368 = vmatprep.subr.bf16.mxu0 0
        %1369 = vmatpush2.bf16.msra.mxu0 0
        %1370 = vmatprep.subr.bf16.mxu0 0
        %1371 = vmatpush2.bf16.msra.mxu0 0
        %1372 = vmatprep.subr.bf16.mxu0 0
        %1373 = vmatpush2.bf16.msra.mxu0 0
        %1374 = vmatprep.subr.bf16.mxu0 0
        %1375 = vmatpush2.bf16.msra.mxu0 0
        %1376 = vmatprep.subr.bf16.mxu0 0
        %1377 = vmatpush2.bf16.msra.mxu0 0
        %1378 = vmatprep.subr.bf16.mxu0 0
        %1379 = vmatpush2.bf16.msra.mxu0 0
        %1380 = vmatprep.subr.bf16.mxu0 0
        %1381 = vmatpush2.bf16.msra.mxu0 0
        %1382 = vmatprep.subr.bf16.mxu0 0
        %1383 = vmatpush2.bf16.msra.mxu0 0
        %1384 = vmatprep.mubr.bf16.mxu0 0
        %1385 = vmatmul.mubr.bf16.gmra.mxu0 %v1347
        %v1386 = vpop.f32.mrf.mxu0
        %v1387 = vadd.f32 0.0, %v1386
        %v1388 = vpop.f32.mrf.mxu0
        %v1389 = vpop.f32.mrf.mxu0
        %v1390 = vpop.f32.mrf.mxu0
        %1391 = vdwg.mxu0
        %v1392 = vadd.f32 %v1228, %v1387
        %1393 = vrot.lane.b32.xlu0 %v914, 104
        %v1394 = vpop.permute.xlu0 %1393
        %1395 = vrot.lane.b32.xlu0 %v915, 104
        %v1396 = vpop.permute.xlu0 %1395
        %v1398 = vsel %vm917, %v1394, 0
        %v1401 = vsel %vm917, %v1396, 0
        %1403 = vmatprep.subr.bf16.mxu0 0
        %1404 = vmatpush1.bf16.xpose.msra.mxu0 0
        %1405 = vmatprep.subr.bf16.mxu0 0
        %1406 = vmatpush1.bf16.xpose.msra.mxu0 0
        %1407 = vmatprep.subr.bf16.mxu0 0
        %1408 = vmatpush1.bf16.xpose.msra.mxu0 0
        %1409 = vmatprep.subr.bf16.mxu0 0
        %1410 = vmatpush1.bf16.xpose.msra.mxu0 0
        %1411 = vmatprep.subr.bf16.mxu0 0
        %1412 = vmatpush1.bf16.xpose.msra.mxu0 0
        %1413 = vmatprep.subr.bf16.mxu0 0
        %1414 = vmatpush1.bf16.xpose.msra.mxu0 0
        %1415 = vmatprep.subr.bf16.mxu0 0
        %1416 = vmatpush1.bf16.xpose.msra.mxu0 0
        %1417 = vmatprep.subr.bf16.mxu0 0
        %1418 = vmatpush1.bf16.xpose.msra.mxu0 %v1401
        %1419 = vmatprep.subr.bf16.mxu0 0
        %1420 = vmatpush2.bf16.xpose.msra.mxu0 0
        %1421 = vmatprep.subr.bf16.mxu0 0
        %1422 = vmatpush2.bf16.xpose.msra.mxu0 0
        %1423 = vmatprep.subr.bf16.mxu0 0
        %1424 = vmatpush2.bf16.xpose.msra.mxu0 0
        %1425 = vmatprep.subr.bf16.mxu0 0
        %1426 = vmatpush2.bf16.xpose.msra.mxu0 0
        %1427 = vmatprep.subr.bf16.mxu0 0
        %1428 = vmatpush2.bf16.xpose.msra.mxu0 0
        %1429 = vmatprep.subr.bf16.mxu0 0
        %1430 = vmatpush2.bf16.xpose.msra.mxu0 0
        %1431 = vmatprep.subr.bf16.mxu0 0
        %1432 = vmatpush2.bf16.xpose.msra.mxu0 0
        %1433 = vmatprep.subr.bf16.mxu0 0
        %1434 = vmatpush2.bf16.xpose.msra.mxu0 0
        %1435 = vmatprep.mubr.bf16.mxu0 0
        %1436 = vmatmul.mubr.bf16.gmra.mxu0 %v1398
        %v1437 = vpop.f32.mrf.mxu0
        %v1438 = vadd.f32 0.0, %v1437
        %v1439 = vpop.f32.mrf.mxu0
        %v1440 = vpop.f32.mrf.mxu0
        %v1441 = vpop.f32.mrf.mxu0
        %1442 = vdwg.mxu0
        %v1443 = vsel %vm917, %v1438, -inf
        %1444 = vmax.xlane.f32.xlu0 %v1443
        %v1445 = vpop.xlane.xlu0 %1444
        %v1446 = vsub.f32 %v1438, %v1445
        %v1447 = vmul.f32 %v1446, 1.442695
        %v1448 = vpow.pop %v1447
        %v1449 = vsel %vm917, %v1448, 0.0
        %1450 = vadd.xlane.f32.xlu0 %v1449
        %v1451 = vpop.xlane.xlu0 %1450
        %v1452 = vpack.c.bf16 %v1448, %v1448
        %1453 = vrot.lane.b32.xlu0 %v916, 104
        %v1454 = vpop.permute.xlu0 %1453
        %v1456 = vsel %vm917, %v1452, 0
        %v1459 = vsel %vm977, %v1454, 0
        %1461 = vmatprep.subr.bf16.mxu0 0
        %1462 = vmatpush1.bf16.msra.mxu0 0
        %1463 = vmatprep.subr.bf16.mxu0 0
        %1464 = vmatpush1.bf16.msra.mxu0 0
        %1465 = vmatprep.subr.bf16.mxu0 0
        %1466 = vmatpush1.bf16.msra.mxu0 0
        %1467 = vmatprep.subr.bf16.mxu0 0
        %1468 = vmatpush1.bf16.msra.mxu0 0
        %1469 = vmatprep.subr.bf16.mxu0 0
        %1470 = vmatpush1.bf16.msra.mxu0 0
        %1471 = vmatprep.subr.bf16.mxu0 0
        %1472 = vmatpush1.bf16.msra.mxu0 0
        %1473 = vmatprep.subr.bf16.mxu0 0
        %1474 = vmatpush1.bf16.msra.mxu0 0
        %1475 = vmatprep.subr.bf16.mxu0 0
        %1476 = vmatpush1.bf16.msra.mxu0 %v1459
        %1477 = vmatprep.subr.bf16.mxu0 0
        %1478 = vmatpush2.bf16.msra.mxu0 0
        %1479 = vmatprep.subr.bf16.mxu0 0
        %1480 = vmatpush2.bf16.msra.mxu0 0
        %1481 = vmatprep.subr.bf16.mxu0 0
        %1482 = vmatpush2.bf16.msra.mxu0 0
        %1483 = vmatprep.subr.bf16.mxu0 0
        %1484 = vmatpush2.bf16.msra.mxu0 0
        %1485 = vmatprep.subr.bf16.mxu0 0
        %1486 = vmatpush2.bf16.msra.mxu0 0
        %1487 = vmatprep.subr.bf16.mxu0 0
        %1488 = vmatpush2.bf16.msra.mxu0 0
        %1489 = vmatprep.subr.bf16.mxu0 0
        %1490 = vmatpush2.bf16.msra.mxu0 0
        %1491 = vmatprep.subr.bf16.mxu0 0
        %1492 = vmatpush2.bf16.msra.mxu0 0
        %1493 = vmatprep.mubr.bf16.mxu0 0
        %1494 = vmatmul.mubr.bf16.gmra.mxu0 %v1456
        %v1495 = vpop.f32.mrf.mxu0
        %v1496 = vadd.f32 0.0, %v1495
        %v1497 = vpop.f32.mrf.mxu0
        %v1498 = vpop.f32.mrf.mxu0
        %v1499 = vpop.f32.mrf.mxu0
        %1500 = vdwg.mxu0
        %v1501 = vrcp.pop %v1451
        %v1502 = vmul.f32 %v1496, %v1501
        %v1503 = vpack.c.bf16 %v1502, %v1502
        %s1504 = scalar_lea.vmem %s9, 12
        %v1505 = vld [vmem:[%s1504] sm:$0xf]
        %v1507 = vsel %vm917, %v1503, 0
        %v1510 = vsel %vm977, %v1505, 0
        %1512 = vmatprep.subr.bf16.mxu0 0
        %1513 = vmatpush1.bf16.msra.mxu0 0
        %1514 = vmatprep.subr.bf16.mxu0 0
        %1515 = vmatpush1.bf16.msra.mxu0 0
        %1516 = vmatprep.subr.bf16.mxu0 0
        %1517 = vmatpush1.bf16.msra.mxu0 0
        %1518 = vmatprep.subr.bf16.mxu0 0
        %1519 = vmatpush1.bf16.msra.mxu0 0
        %1520 = vmatprep.subr.bf16.mxu0 0
        %1521 = vmatpush1.bf16.msra.mxu0 0
        %1522 = vmatprep.subr.bf16.mxu0 0
        %1523 = vmatpush1.bf16.msra.mxu0 0
        %1524 = vmatprep.subr.bf16.mxu0 0
        %1525 = vmatpush1.bf16.msra.mxu0 0
        %1526 = vmatprep.subr.bf16.mxu0 0
        %1527 = vmatpush1.bf16.msra.mxu0 %v1510
        %1528 = vmatprep.subr.bf16.mxu0 0
        %1529 = vmatpush2.bf16.msra.mxu0 0
        %1530 = vmatprep.subr.bf16.mxu0 0
        %1531 = vmatpush2.bf16.msra.mxu0 0
        %1532 = vmatprep.subr.bf16.mxu0 0
        %1533 = vmatpush2.bf16.msra.mxu0 0
        %1534 = vmatprep.subr.bf16.mxu0 0
        %1535 = vmatpush2.bf16.msra.mxu0 0
        %1536 = vmatprep.subr.bf16.mxu0 0
        %1537 = vmatpush2.bf16.msra.mxu0 0
        %1538 = vmatprep.subr.bf16.mxu0 0
        %1539 = vmatpush2.bf16.msra.mxu0 0
        %1540 = vmatprep.subr.bf16.mxu0 0
        %1541 = vmatpush2.bf16.msra.mxu0 0
        %1542 = vmatprep.subr.bf16.mxu0 0
        %1543 = vmatpush2.bf16.msra.mxu0 0
        %1544 = vmatprep.mubr.bf16.mxu0 0
        %1545 = vmatmul.mubr.bf16.gmra.mxu0 %v1507
        %v1546 = vpop.f32.mrf.mxu0
        %v1547 = vadd.f32 0.0, %v1546
        %v1548 = vpop.f32.mrf.mxu0
        %v1549 = vpop.f32.mrf.mxu0
        %v1550 = vpop.f32.mrf.mxu0
        %1551 = vdwg.mxu0
        %v1552 = vadd.f32 %v1392, %v1547
        %v1553 = vld [vmem:[%s10] sm:$0x1]
        %v1555 = vlaneseq
        %v1556 = vshrl.u32 %v1555, 7
        %v1557 = vsub.s32 0, %v1556
        %v1558 = vrot.slane %v1553, %v1557
        %v1560 = vadd.f32 %v1552, %v1558
        %v1561 = vadd.f32 %v545, %v1560
        %v1562 = vld [vmem:[%s11] sm:$0x1]
        %v1563 = vld [vmem:[%s12] sm:$0x1]
        %v1564 = vmul.f32 %v1561, %v550
        %1565 = vadd.xlane.f32.xlu0 %v1564
        %v1566 = vpop.xlane.xlu0 %1565
        %v1567 = vmul.f32 %v1566, 0.03125
        %v1568 = vsub.f32 %v1561, %v1567
        %v1569 = vmul.f32 %v1568, %v550
        %v1570 = vmul.f32 %v1569, %v1569
        %1571 = vadd.xlane.f32.xlu0 %v1570
        %v1572 = vpop.xlane.xlu0 %1571
        %v1573 = vmul.f32 %v1572, 0.03125
        %v1574 = vadd.f32 %v1573, 1e-05
        %v1575 = vrsqrt.pop %v1574
        %v1576 = vmul.f32 %v1569, %v1575
        %v1578 = vlaneseq
        %v1579 = vshrl.u32 %v1578, 7
        %v1580 = vsub.s32 0, %v1579
        %v1581 = vrot.slane %v1562, %v1580
        %v1583 = vmul.f32 %v1576, %v1581
        %v1585 = vlaneseq
        %v1586 = vshrl.u32 %v1585, 7
        %v1587 = vsub.s32 0, %v1586
        %v1588 = vrot.slane %v1563, %v1587
        %v1590 = vadd.f32 %v1583, %v1588
        %v1591 = vpack.c.bf16 %v1590, %v1590
        %v1592 = vld [vmem:[%s13] sm:$0xf]
        %v1593 = vld [vmem:[%s13 + $0x4] sm:$0xf]
        %v1594 = vld [vmem:[%s13 + $0x8] sm:$0xf]
        %v1595 = vld [vmem:[%s13 + $0xc] sm:$0xf]
        %v1596 = vld [vmem:[%s13 + $0x10] sm:$0xf]
        %v1597 = vld [vmem:[%s13 + $0x14] sm:$0xf]
        %v1598 = vld [vmem:[%s13 + $0x18] sm:$0xf]
        %v1599 = vld [vmem:[%s13 + $0x1c] sm:$0xf]
        %v1600 = vld [vmem:[%s13 + $0x20] sm:$0xf]
        %v1601 = vld [vmem:[%s13 + $0x24] sm:$0xf]
        %v1602 = vld [vmem:[%s13 + $0x28] sm:$0xf]
        %v1603 = vld [vmem:[%s13 + $0x2c] sm:$0xf]
        %v1604 = vld [vmem:[%s13 + $0x30] sm:$0xf]
        %v1605 = vld [vmem:[%s13 + $0x34] sm:$0xf]
        %v1606 = vld [vmem:[%s13 + $0x38] sm:$0xf]
        %v1607 = vld [vmem:[%s13 + $0x3c] sm:$0xf]
        %v1608 = vld [vmem:[%s14] sm:$0x1]
        %v1610 = vlaneseq
        %v1611 = vshrl.u32 %v1610, 7
        %v1612 = vsub.s32 0, %v1611
        %v1613 = vrot.slane %v1608, %v1612
        %v1631 = vunpack.c.l.b16 %v1592
        %v1632 = vunpack.c.l.b16 %v1593
        %v1633 = vunpack.c.l.b16 %v1594
        %v1634 = vunpack.c.l.b16 %v1595
        %v1635 = vunpack.c.l.b16 %v1596
        %v1636 = vunpack.c.l.b16 %v1597
        %v1637 = vunpack.c.l.b16 %v1598
        %v1638 = vunpack.c.l.b16 %v1599
        %v1639 = vunpack.c.l.b16 %v1600
        %v1640 = vunpack.c.l.b16 %v1601
        %v1641 = vunpack.c.l.b16 %v1602
        %v1642 = vunpack.c.l.b16 %v1603
        %v1643 = vunpack.c.l.b16 %v1604
        %v1644 = vunpack.c.l.b16 %v1605
        %v1645 = vunpack.c.l.b16 %v1606
        %v1646 = vunpack.c.l.b16 %v1607
        %v1647 = vpack.c.b16 %v1632, %v1631
        %v1648 = vpack.c.b16 %v1634, %v1633
        %v1649 = vpack.c.b16 %v1636, %v1635
        %v1650 = vpack.c.b16 %v1638, %v1637
        %v1651 = vpack.c.b16 %v1640, %v1639
        %v1652 = vpack.c.b16 %v1642, %v1641
        %v1653 = vpack.c.b16 %v1644, %v1643
        %v1654 = vpack.c.b16 %v1646, %v1645
        %1663 = vmatprep.subr.bf16.mxu0 0
        %1664 = vmatpush1.bf16.msra.mxu0 %v1654
        %1665 = vmatprep.subr.bf16.mxu0 0
        %1666 = vmatpush1.bf16.msra.mxu0 %v1653
        %1667 = vmatprep.subr.bf16.mxu0 0
        %1668 = vmatpush1.bf16.msra.mxu0 %v1652
        %1669 = vmatprep.subr.bf16.mxu0 0
        %1670 = vmatpush1.bf16.msra.mxu0 %v1651
        %1671 = vmatprep.subr.bf16.mxu0 0
        %1672 = vmatpush1.bf16.msra.mxu0 %v1650
        %1673 = vmatprep.subr.bf16.mxu0 0
        %1674 = vmatpush1.bf16.msra.mxu0 %v1649
        %1675 = vmatprep.subr.bf16.mxu0 0
        %1676 = vmatpush1.bf16.msra.mxu0 %v1648
        %1677 = vmatprep.subr.bf16.mxu0 0
        %1678 = vmatpush1.bf16.msra.mxu0 %v1647
        %1679 = vmatprep.subr.bf16.mxu0 0
        %1680 = vmatpush2.bf16.msra.mxu0 0
        %1681 = vmatprep.subr.bf16.mxu0 0
        %1682 = vmatpush2.bf16.msra.mxu0 0
        %1683 = vmatprep.subr.bf16.mxu0 0
        %1684 = vmatpush2.bf16.msra.mxu0 0
        %1685 = vmatprep.subr.bf16.mxu0 0
        %1686 = vmatpush2.bf16.msra.mxu0 0
        %1687 = vmatprep.subr.bf16.mxu0 0
        %1688 = vmatpush2.bf16.msra.mxu0 0
        %1689 = vmatprep.subr.bf16.mxu0 0
        %1690 = vmatpush2.bf16.msra.mxu0 0
        %1691 = vmatprep.subr.bf16.mxu0 0
        %1692 = vmatpush2.bf16.msra.mxu0 0
        %1693 = vmatprep.subr.bf16.mxu0 0
        %1694 = vmatpush2.bf16.msra.mxu0 0
        %1695 = vmatprep.mubr.bf16.mxu0 0
        %1696 = vmatmul.mubr.bf16.gmra.mxu0 %v1591
        %v1697 = vpop.f32.mrf.mxu0
        %v1698 = vadd.f32 %v1613, %v1697
        %v1699 = vpop.f32.mrf.mxu0
        %v1700 = vpop.f32.mrf.mxu0
        %v1701 = vpop.f32.mrf.mxu0
        %1702 = vdwg.mxu0
        %v1703 = vmul.f32 %v1698, 0.5
        %v1704 = vmul.f32 %v1698, 0.70710677
        %v1705 = verf.f32.pop %v1704
        %v1706 = vadd.f32 %v1705, 1.0
        %v1707 = vmul.f32 %v1703, %v1706
        %v1708 = vpack.c.bf16 %v1707, %v1707
        %v1709 = vld [vmem:[%s15] sm:$0xf]
        %v1710 = vld [vmem:[%s15 + $0x4] sm:$0xf]
        %v1711 = vld [vmem:[%s15 + $0x8] sm:$0xf]
        %v1712 = vld [vmem:[%s15 + $0xc] sm:$0xf]
        %v1713 = vld [vmem:[%s15 + $0x10] sm:$0xf]
        %v1714 = vld [vmem:[%s15 + $0x14] sm:$0xf]
        %v1715 = vld [vmem:[%s15 + $0x18] sm:$0xf]
        %v1716 = vld [vmem:[%s15 + $0x1c] sm:$0xf]
        %v1717 = vld [vmem:[%s15 + $0x20] sm:$0xf]
        %v1718 = vld [vmem:[%s15 + $0x24] sm:$0xf]
        %v1719 = vld [vmem:[%s15 + $0x28] sm:$0xf]
        %v1720 = vld [vmem:[%s15 + $0x2c] sm:$0xf]
        %v1721 = vld [vmem:[%s15 + $0x30] sm:$0xf]
        %v1722 = vld [vmem:[%s15 + $0x34] sm:$0xf]
        %v1723 = vld [vmem:[%s15 + $0x38] sm:$0xf]
        %v1724 = vld [vmem:[%s15 + $0x3c] sm:$0xf]
        %v1725 = vld [vmem:[%s16] sm:$0x1]
        %v1727 = vlaneseq
        %v1728 = vshrl.u32 %v1727, 7
        %v1729 = vsub.s32 0, %v1728
        %v1730 = vrot.slane %v1725, %v1729
        %v1748 = vunpack.c.l.b16 %v1709
        %v1749 = vunpack.c.l.b16 %v1710
        %v1750 = vunpack.c.l.b16 %v1711
        %v1751 = vunpack.c.l.b16 %v1712
        %v1752 = vunpack.c.l.b16 %v1713
        %v1753 = vunpack.c.l.b16 %v1714
        %v1754 = vunpack.c.l.b16 %v1715
        %v1755 = vunpack.c.l.b16 %v1716
        %v1756 = vunpack.c.l.b16 %v1717
        %v1757 = vunpack.c.l.b16 %v1718
        %v1758 = vunpack.c.l.b16 %v1719
        %v1759 = vunpack.c.l.b16 %v1720
        %v1760 = vunpack.c.l.b16 %v1721
        %v1761 = vunpack.c.l.b16 %v1722
        %v1762 = vunpack.c.l.b16 %v1723
        %v1763 = vunpack.c.l.b16 %v1724
        %v1764 = vpack.c.b16 %v1749, %v1748
        %v1765 = vpack.c.b16 %v1751, %v1750
        %v1766 = vpack.c.b16 %v1753, %v1752
        %v1767 = vpack.c.b16 %v1755, %v1754
        %v1768 = vpack.c.b16 %v1757, %v1756
        %v1769 = vpack.c.b16 %v1759, %v1758
        %v1770 = vpack.c.b16 %v1761, %v1760
        %v1771 = vpack.c.b16 %v1763, %v1762
        %1780 = vmatprep.subr.bf16.mxu0 0
        %1781 = vmatpush1.bf16.msra.mxu0 %v1771
        %1782 = vmatprep.subr.bf16.mxu0 0
        %1783 = vmatpush1.bf16.msra.mxu0 %v1770
        %1784 = vmatprep.subr.bf16.mxu0 0
        %1785 = vmatpush1.bf16.msra.mxu0 %v1769
        %1786 = vmatprep.subr.bf16.mxu0 0
        %1787 = vmatpush1.bf16.msra.mxu0 %v1768
        %1788 = vmatprep.subr.bf16.mxu0 0
        %1789 = vmatpush1.bf16.msra.mxu0 %v1767
        %1790 = vmatprep.subr.bf16.mxu0 0
        %1791 = vmatpush1.bf16.msra.mxu0 %v1766
        %1792 = vmatprep.subr.bf16.mxu0 0
        %1793 = vmatpush1.bf16.msra.mxu0 %v1765
        %1794 = vmatprep.subr.bf16.mxu0 0
        %1795 = vmatpush1.bf16.msra.mxu0 %v1764
        %1796 = vmatprep.subr.bf16.mxu0 0
        %1797 = vmatpush2.bf16.msra.mxu0 0
        %1798 = vmatprep.subr.bf16.mxu0 0
        %1799 = vmatpush2.bf16.msra.mxu0 0
        %1800 = vmatprep.subr.bf16.mxu0 0
        %1801 = vmatpush2.bf16.msra.mxu0 0
        %1802 = vmatprep.subr.bf16.mxu0 0
        %1803 = vmatpush2.bf16.msra.mxu0 0
        %1804 = vmatprep.subr.bf16.mxu0 0
        %1805 = vmatpush2.bf16.msra.mxu0 0
        %1806 = vmatprep.subr.bf16.mxu0 0
        %1807 = vmatpush2.bf16.msra.mxu0 0
        %1808 = vmatprep.subr.bf16.mxu0 0
        %1809 = vmatpush2.bf16.msra.mxu0 0
        %1810 = vmatprep.subr.bf16.mxu0 0
        %1811 = vmatpush2.bf16.msra.mxu0 0
        %1812 = vmatprep.mubr.bf16.mxu0 0
        %1813 = vmatmul.mubr.bf16.gmra.mxu0 %v1708
        %v1814 = vpop.f32.mrf.mxu0
        %v1815 = vadd.f32 %v1730, %v1814
        %v1816 = vpop.f32.mrf.mxu0
        %v1817 = vpop.f32.mrf.mxu0
        %v1818 = vpop.f32.mrf.mxu0
        %1819 = vdwg.mxu0
        %v1820 = vadd.f32 %v1561, %v1815
        %1821 = vst [vmem:[%s539] sm:$0xff] %v1820
        %s1822 = sand.u32 %s401, 1
        %s1823 = scalar_lea.sflag [#allocation3], %s1822
        %s1824 = sand.u32 %s401, 1
        %s1825 = smul.addr %s1824, 8
        %s1826 = scalar_lea.vmem [#allocation2], %s1825
        // Predicated region
        $region89: #{tpu_custom_call.1} parent=87 // pred_check
          %p1827 = pneg %p411
        $region90: #{tpu_custom_call.1} parent=87 // pred_check_branch
          %1829 = sbr.rel (%p1827) target = $region92
        $region91: #{tpu_custom_call.1} parent=87 // pred_region
          %s1831 = ssub.s32 128, 128
          %1832 = vsyncadd %s1823, %s1831
          %s1833 = smul.addr %s31, 128
          %s1834 = scalar_lea.hbm %s17, %s1833
          %s1836 = sshll.u32 %s1826, 4
          %s1837 = int_to_ptr.vmem [resolvable:$true] %s1836
          %1839 = dma.vmem_to_hbm [thread:$0]  %s1837, 128, %s1834, %s1823
        $region92: #{tpu_custom_call.1} parent=87 // pred_fallthru
          _
      $region88: #{tpu_custom_call.1} parent=5 // pred_fallthru
        _
      %p1840 = scmp.le.s32.totalorder 2, %s26
      // Predicated region
      $region93: #{tpu_custom_call.1} parent=5 // pred_check
        %p1841 = pneg %p1840
      $region94: #{tpu_custom_call.1} parent=5 // pred_check_branch
        %1843 = sbr.rel (%p1841) target = $region96
      $region95: #{tpu_custom_call.1} parent=5 // pred_region
        %s1844 = ssub.s32 %s26, 2
        // Predicated region
        $region97: #{tpu_custom_call.1} parent=95 // pred_check
          %p1845 = pneg %p417
        $region98: #{tpu_custom_call.1} parent=95 // pred_check_branch
          %1847 = sbr.rel (%p1845) target = $region100
        $region99: #{tpu_custom_call.1} parent=95 // pred_region
          %s1848 = sand.u32 %s402, 1
          %s1849 = scalar_lea.sflag [#allocation3], %s1848
          %s1850 = sand.u32 %s402, 1
          %s1851 = smul.addr %s1850, 8
          %s1852 = scalar_lea.vmem [#allocation2], %s1851
          %1853 = dma.done %s1849, 128
        $region100: #{tpu_custom_call.1} parent=95 // pred_fallthru
          _
      $region96: #{tpu_custom_call.1} parent=5 // pred_fallthru
        _
    $region6: #{tpu_custom_call.1} parent=1 // loop_footer
      %s30 = sadd.s32 1, %s26
    $region7: #{tpu_custom_call.1} parent=1 // loop_footer_branch
      %25 = sbr.rel target = $region3
    $region8: #{tpu_custom_call.1} parent=1 // loop_exit
      _
    %1854 = vsyncpa [#allocation3], 1
    %s1855 = scalar_lea.sflag [#allocation3], 1
    %1856 = vsyncpa %s1855, 1

</llo_original>
